<compile_context>
chip_gen: v7x
topology: tpu7x:2x2x1
jax: 0.10.0
libtpu: 0.0.40
codegen_flags: <defaults>
</compile_context>

<pallas_src>
import functools

import jax
import jax.numpy as jnp
from jax import lax
from jax.experimental import pallas as pl
from jax.experimental.pallas import tpu as pltpu


# Comfortably under v7x's 64 MiB physical VMEM (leaves headroom for Mosaic
# scratch); also raises the 16/32 MiB scoped defaults on v5e/v6e.
_VMEM_LIMIT = 48 * 1024 * 1024


def _round_up(a, b):
    return (a + b - 1) // b * b


# --------------------- tiled linear: (x [+ add]) @ W + b --------------------

def _linear_kernel(x_ref, w_ref, b_ref, o_ref):
    y = jnp.dot(x_ref[...], w_ref[...], preferred_element_type=jnp.float32)
    o_ref[...] = (y + b_ref[...]).astype(o_ref.dtype)


def _linear_add_kernel(x_ref, a_ref, w_ref, b_ref, o_ref):
    x = x_ref[...] + a_ref[...]
    y = jnp.dot(x, w_ref[...], preferred_element_type=jnp.float32)
    o_ref[...] = (y + b_ref[...]).astype(o_ref.dtype)


def linear(x2d, w, b, add=None, block_m=512):
    """(x2d [+ add]) @ w + b.  x2d/add: (M, K), w: (K, Nout), b: (Nout,)."""
    M, K = x2d.shape
    Nout = w.shape[1]
    # Row tiling: large enough to amortize per-step overhead / reach the HBM
    # roofline, small enough that (x, add, w, out) double-buffered stays well
    # under the VMEM budget on every generation.
    tm = min(block_m, _round_up(M, 8))
    Mp = _round_up(M, tm)
    if Mp != M:  # ragged tail -> pad rows with zeros, slice afterwards
        x2d = jnp.pad(x2d, ((0, Mp - M), (0, 0)))
        if add is not None:
            add = jnp.pad(add, ((0, Mp - M), (0, 0)))

    row_spec = pl.BlockSpec((tm, K), lambda i: (i, 0))
    w_spec = pl.BlockSpec((K, Nout), lambda i: (0, 0))
    b_spec = pl.BlockSpec((1, Nout), lambda i: (0, 0))
    o_spec = pl.BlockSpec((tm, Nout), lambda i: (i, 0))
    cp = pltpu.CompilerParams(dimension_semantics=("parallel",),
                              vmem_limit_bytes=_VMEM_LIMIT)
    # NOTE: at production widths (dim=512 -> Nout in {1536, 512}) the output is
    # already lane-dense (multiple of 128); no extra padding needed there.
    if add is None:
        out = pl.pallas_call(
            _linear_kernel,
            out_shape=jax.ShapeDtypeStruct((Mp, Nout), x2d.dtype),
            grid=(Mp // tm,),
            in_specs=[row_spec, w_spec, b_spec],
            out_specs=o_spec,
            compiler_params=cp,
        )(x2d, w, b.reshape(1, Nout))
    else:
        out = pl.pallas_call(
            _linear_add_kernel,
            out_shape=jax.ShapeDtypeStruct((Mp, Nout), x2d.dtype),
            grid=(Mp // tm,),
            in_specs=[row_spec, row_spec, w_spec, b_spec],
            out_specs=o_spec,
            compiler_params=cp,
        )(x2d, add, w, b.reshape(1, Nout))
    return out[:M] if Mp != M else out


# ------------------- depthwise 3x3 conv (lepe), NHWC ------------------------

def _dwconv_kernel(xp_ref, w_ref, b_ref, o_ref, *, H, W, ksize):
    xp = xp_ref[0]               # (Hp, Wp, C) zero-padded image
    wt = w_ref[...]              # (k, k, C)
    b = b_ref[...]               # (1, C)
    C = xp.shape[-1]
    acc = jnp.zeros((H, W, C), jnp.float32)
    # Hoist the sublane-misaligned W-axis shifts: one shifted slice per kx
    # (3 relayouts) instead of one per tap (9); the H-axis taps are leading-dim
    # slices (pure address offsets, no relayout).
    for kx in range(ksize):
        xs = xp[:, kx:kx + W, :].astype(jnp.float32)        # (Hp, W, C)
        for ky in range(ksize):
            acc = acc + xs[ky:ky + H] * wt[ky, kx, :]
    o_ref[0] = (acc + b[0]).astype(o_ref.dtype)


def dwconv_nhwc(x, w, b, ksize=3):
    """Depthwise conv, stride 1, 'same' padding. x: (N,H,W,C), w:(k,k,C), b:(C,)."""
    N, H, W, C = x.shape
    pad = ksize // 2
    xp = jnp.pad(x, ((0, 0), (pad, pad), (pad, pad), (0, 0)))
    Hp, Wp = H + 2 * pad, W + 2 * pad
    kern = functools.partial(_dwconv_kernel, H=H, W=W, ksize=ksize)
    # TODO(synk): for very large feature maps, tile over H with a 1-row halo so
    # the per-step footprint stays small on v7x (64 MiB VMEM) and pipelines deeper.
    return pl.pallas_call(
        kern,
        out_shape=jax.ShapeDtypeStruct((N, H, W, C), x.dtype),
        grid=(N,),
        in_specs=[
            pl.BlockSpec((1, Hp, Wp, C), lambda n: (n, 0, 0, 0)),
            pl.BlockSpec((ksize, ksize, C), lambda n: (0, 0, 0)),
            pl.BlockSpec((1, C), lambda n: (0, 0)),
        ],
        out_specs=pl.BlockSpec((1, H, W, C), lambda n: (n, 0, 0, 0)),
        compiler_params=pltpu.CompilerParams(
            dimension_semantics=("parallel",),
            vmem_limit_bytes=_VMEM_LIMIT),
    )(xp, w, b.reshape(1, C))


# ------- fused top-k KV gather + multi-head window attention (routed) -------

def _routed_attn_kernel(ridx_ref, q_ref, kv_ref, o_ref, m_sc, l_sc, acc_sc,
                        *, num_heads, qk_dim, dim, scale):
    # grid = (N, p2, topk); the topk axis streams the router-selected KV
    # windows (picked by the data-dependent index_map) through an online
    # softmax with scratch accumulators that live across the topk axis.
    del ridx_ref  # only consumed by the index_maps
    t = pl.program_id(2)
    w2 = q_ref.shape[2]
    nh = num_heads
    cq = qk_dim // nh
    cv = dim // nh

    @pl.when(t == 0)
    def _init():
        m_sc[...] = jnp.full(m_sc.shape, -jnp.inf, m_sc.dtype)
        l_sc[...] = jnp.zeros(l_sc.shape, l_sc.dtype)
        acc_sc[...] = jnp.zeros(acc_sc.shape, acc_sc.dtype)

    q = q_ref[...].reshape(w2, qk_dim)              # bf16
    kv = kv_ref[...].reshape(w2, qk_dim + dim)      # bf16 (one gathered window)
    k = kv[:, :qk_dim]
    v = kv[:, qk_dim:]

    for h in range(nh):                             # head split on-chip
        qh = q[:, h * cq:(h + 1) * cq]              # (w2, cq) bf16
        kh = k[:, h * cq:(h + 1) * cq]              # (w2, cq) bf16
        vh = v[:, h * cv:(h + 1) * cv]              # (w2, cv) bf16
        # QK^T contracting the channel axis of both operands (K consumed in
        # (L, cq) layout -> no transpose); bf16 operands, f32 accumulation.
        s = lax.dot_general(qh, kh, (((1,), (1,)), ((), ())),
                            preferred_element_type=jnp.float32) * scale
        m_prev = m_sc[h]                                         # (w2, 1)
        m_new = jnp.maximum(m_prev, jnp.max(s, axis=-1, keepdims=True))
        alpha = jnp.exp(m_prev - m_new)                          # f32 softmax math
        p = jnp.exp(s - m_new)
        l_sc[h] = alpha * l_sc[h] + jnp.sum(p, axis=-1, keepdims=True)
        acc_sc[h] = alpha * acc_sc[h] + jnp.dot(
            p.astype(jnp.bfloat16), vh, preferred_element_type=jnp.float32)
        m_sc[h] = m_new

    @pl.when(t == pl.num_programs(2) - 1)
    def _finalize():
        outs = [acc_sc[h] * pl.reciprocal(l_sc[h], approx=True)
                for h in range(nh)]
        o = jnp.concatenate(outs, axis=-1)          # (w2, nh*cv) == (w2, dim)
        o_ref[...] = o.reshape(1, 1, w2, dim).astype(o_ref.dtype)


def routed_window_attention(q_pix, kv_pix, r_idx, *, num_heads, qk_dim, dim,
                            scale):
    """q_pix: (N,p2,w2,qk_dim) bf16, kv_pix: (N,p2,w2,qk_dim+dim) bf16,
    r_idx: (N,p2,topk) int32 -> (N,p2,w2,dim) f32 (heads merged, lane-dense)."""
    N, p2, w2, _ = q_pix.shape
    ckv = kv_pix.shape[-1]
    topk = r_idx.shape[-1]
    nh = num_heads
    cv = dim // nh

    r_idx_flat = r_idx.reshape(-1).astype(jnp.int32)   # 1-D SMEM prefetch operand

    def q_map(n, p, t, ridx):
        return (n, p, 0, 0)

    def kv_map(n, p, t, ridx):
        # data-dependent gather: DMA only the window chosen by the router
        return (n, ridx[(n * p2 + p) * topk + t], 0, 0)

    def o_map(n, p, t, ridx):
        return (n, p, 0, 0)

    kern = functools.partial(_routed_attn_kernel, num_heads=num_heads,
                             qk_dim=qk_dim, dim=dim, scale=scale)
    grid_spec = pltpu.PrefetchScalarGridSpec(
        num_scalar_prefetch=1,
        grid=(N, p2, topk),
        in_specs=[
            pl.BlockSpec((1, 1, w2, qk_dim), q_map),
            pl.BlockSpec((1, 1, w2, ckv), kv_map),
        ],
        out_specs=pl.BlockSpec((1, 1, w2, dim), o_map),
        scratch_shapes=[
            pltpu.VMEM((nh, w2, 1), jnp.float32),    # running max
            pltpu.VMEM((nh, w2, 1), jnp.float32),    # running denominator
            pltpu.VMEM((nh, w2, cv), jnp.float32),   # running numerator
        ],
    )
    return pl.pallas_call(
        kern,
        out_shape=jax.ShapeDtypeStruct((N, p2, w2, dim), jnp.float32),
        grid_spec=grid_spec,
        compiler_params=pltpu.CompilerParams(
            dimension_semantics=("parallel", "parallel", "arbitrary"),
            vmem_limit_bytes=_VMEM_LIMIT),
    )(r_idx_flat, q_pix, kv_pix)


# --------------------------- forward pass (glue) ----------------------------

def attention_forward(params, x, *, num_heads, n_win, qk_dim, topk):
    """Reproduces Attention.forward with defaults:
    kv_downsample_mode='identity', param_attention='qkvo', param_routing=False,
    diff_routing=False, soft_routing=False (mul_weight='none'), side_dwconv=3,
    auto_pad=True.
    """
    N, H_in, W_in, C = x.shape
    dim = C
    scale = qk_dim ** (-0.5)

    # auto_pad to multiples of n_win
    pad_b = (n_win - H_in % n_win) % n_win
    pad_r = (n_win - W_in % n_win) % n_win
    if pad_b or pad_r:
        x = jnp.pad(x, ((0, 0), (0, pad_b), (0, pad_r), (0, 0)))
    _, H, W, _ = x.shape
    j = i = n_win
    h, w = H // n_win, W // n_win
    p2 = n_win * n_win
    w2 = h * w

    # window partition: n (j h)(i w) c -> n (j i) h w c
    xw = x.reshape(N, j, h, i, w, C).transpose(0, 1, 3, 2, 4, 5) \
          .reshape(N, p2, h, w, C)

    # QKVLinear (tiled Pallas matmul)
    qkv = linear(xw.reshape(N * p2 * w2, C), params['qkv_w'], params['qkv_b'])
    qkv = qkv.reshape(N, p2, h, w, 2 * qk_dim + dim)
    q = qkv[..., :qk_dim]                       # (N, p2, h, w, qk_dim)
    kv = qkv[..., qk_dim:]                      # (N, p2, h, w, qk_dim + dim)

    q_pix = q.reshape(N, p2, w2, qk_dim)
    kv_pix = kv.reshape(N, p2, w2, qk_dim + dim)    # identity kv_down

    # window-level q/k (means over window pixels)
    q_win = q.mean(axis=(2, 3))                     # (N, p2, qk_dim)
    k_win = kv[..., :qk_dim].mean(axis=(2, 3))      # (N, p2, qk_dim)

    # lepe: depthwise 3x3 conv on v over the full image (Pallas kernel)
    v_img = kv[..., qk_dim:].reshape(N, j, i, h, w, dim) \
                             .transpose(0, 1, 3, 2, 4, 5).reshape(N, H, W, dim)
    lepe = dwconv_nhwc(v_img, params['lepe_w'], params['lepe_b'], ksize=3)

    # TopkRouting.  r_weight (softmax of top-k logits) is dead for
    # mul_weight='none' and is not computed.
    # TODO(synk): torch.topk has no clean Pallas equivalent; lax.top_k in XLA.
    attn_logit = jnp.einsum('npc,nqc->npq', q_win * scale, k_win)  # (N,p2,p2)
    _, r_idx = lax.top_k(attn_logit, topk)                         # (N,p2,topk)

    # fused KV gather + fine-grained attention (Pallas, bf16 MXU operands)
    out = routed_window_attention(
        q_pix.astype(jnp.bfloat16), kv_pix.astype(jnp.bfloat16), r_idx,
        num_heads=num_heads, qk_dim=qk_dim, dim=dim, scale=scale)
    # out: (N, p2, w2, dim) f32, heads already merged (lane-dense last dim)

    # window merge: n (j i)(h w) c -> n (j h)(i w) c
    out = out.reshape(N, j, i, h, w, dim).transpose(0, 1, 3, 2, 4, 5) \
             .reshape(N, H, W, dim)

    # wo projection fused with '+ lepe' (one Pallas matmul, one less HBM pass)
    out = linear(out.reshape(N * H * W, dim), params['wo_w'], params['wo_b'],
                 add=lepe.reshape(N * H * W, dim)).reshape(N, H, W, dim)

    if pad_b or pad_r:
        out = out[:, :H_in, :W_in, :]
    return out


# ---------------------------------- main ------------------------------------

if __name__ == "__main__":
    # small config consistent with the module: dim % num_heads == 0, topk <= n_win^2
    dim = 32
    num_heads = 4
    n_win = 2
    topk = 2
    qk_dim = dim
    N, H_in, W_in = 2, 8, 8

    key = jax.random.PRNGKey(0)
    k1, k2, k3, k4, k5, k6, k7 = jax.random.split(key, 7)
    params = {
        # nn.Linear(dim, 2*qk_dim+dim) stored pre-transposed as (in, out)
        'qkv_w': jax.random.normal(k1, (dim, 2 * qk_dim + dim), jnp.float32) * 0.05,
        'qkv_b': jax.random.normal(k2, (2 * qk_dim + dim,), jnp.float32) * 0.01,
        # nn.Linear(dim, dim)
        'wo_w': jax.random.normal(k3, (dim, dim), jnp.float32) * 0.05,
        'wo_b': jax.random.normal(k4, (dim,), jnp.float32) * 0.01,
        # depthwise Conv2d(dim, dim, 3, groups=dim) -> per-channel 3x3 taps
        'lepe_w': jax.random.normal(k5, (3, 3, dim), jnp.float32) * 0.05,
        'lepe_b': jax.random.normal(k6, (dim,), jnp.float32) * 0.01,
    }
    x = jax.random.normal(k7, (N, H_in, W_in, dim), jnp.float32)

    fwd = jax.jit(functools.partial(attention_forward, num_heads=num_heads,
                                    n_win=n_win, qk_dim=qk_dim, topk=topk))
    out = jax.block_until_ready(fwd(params, x))
    assert out.shape == (N, H_in, W_in, dim), out.shape
    assert bool(jnp.all(jnp.isfinite(out)))
    print("KERNEL_OK")
</pallas_src>

<mosaic_0001>
module attributes {stable_mosaic.version = 11 : i64} {
  func.func @_linear_kernel(%arg0: i32, %arg1: memref<128x32xf32, #tpu.memory_space<vmem>>, %arg2: memref<32x96xf32, #tpu.memory_space<vmem>>, %arg3: memref<1x96xf32, #tpu.memory_space<vmem>>, %arg4: memref<128x96xf32, #tpu.memory_space<vmem>>) attributes {dimension_semantics = [#tpu.dimension_semantics<parallel>], iteration_bounds = array<i64: 1>, scalar_prefetch = 0 : i64, scratch_operands = 0 : i64, tpu.core_type = #tpu.core_type<tc>, window_params = [{transform_indices = @transform_0, window_bounds = array<i64: 128, 32>}, {pipeline_mode = #tpu.pipeline_mode<synchronous>, transform_indices = @transform_1, window_bounds = array<i64: 32, 96>}, {pipeline_mode = #tpu.pipeline_mode<synchronous>, transform_indices = @transform_2, window_bounds = array<i64: 1, 96>}, {transform_indices = @transform_3, window_bounds = array<i64: 128, 96>}]} {
    %c0 = arith.constant 0 : index
    %c0_0 = arith.constant 0 : index
    %0 = vector.load %arg1[%c0, %c0_0] : memref<128x32xf32, #tpu.memory_space<vmem>>, vector<128x32xf32>
    %c0_1 = arith.constant 0 : index
    %c0_2 = arith.constant 0 : index
    %1 = vector.load %arg2[%c0_1, %c0_2] : memref<32x96xf32, #tpu.memory_space<vmem>>, vector<32x96xf32>
    %cst = arith.constant dense<0.000000e+00> : vector<128x96xf32>
    %2 = tpu.matmul %0, %1, %cst {dimension_numbers = #tpu.dot_dimension_numbers<[1], [0], [0], [1], [0, 0, 1, 1], [], []>} : vector<128x32xf32>, vector<32x96xf32>, vector<128x96xf32> -> vector<128x96xf32>
    %c0_3 = arith.constant 0 : index
    %c0_4 = arith.constant 0 : index
    %3 = vector.load %arg3[%c0_3, %c0_4] : memref<1x96xf32, #tpu.memory_space<vmem>>, vector<1x96xf32>
    %4 = vector.broadcast %3 : vector<1x96xf32> to vector<128x96xf32>
    %5 = arith.addf %2, %4 : vector<128x96xf32>
    %c0_5 = arith.constant 0 : index
    %c0_6 = arith.constant 0 : index
    %6 = vector.load %arg4[%c0_5, %c0_6] : memref<128x96xf32, #tpu.memory_space<vmem>>, vector<128x96xf32>
    tpu.vector_store %arg4[%c0_5, %c0_6], %5 {strides = array<i32>} : memref<128x96xf32, #tpu.memory_space<vmem>>, vector<128x96xf32>,
    return
  }
  func.func @transform_0(%arg0: i32) -> (i32, i32) {
    %c0_i32 = arith.constant 0 : i32
    %c0_i32_0 = arith.constant 0 : i32
    return %arg0, %c0_i32 : i32, i32
  }
  func.func @transform_1(%arg0: i32) -> (i32, i32) {
    %c0_i32 = arith.constant 0 : i32
    %c0_i32_0 = arith.constant 0 : i32
    %c0_i32_1 = arith.constant 0 : i32
    return %c0_i32, %c0_i32_0 : i32, i32
  }
  func.func @transform_2(%arg0: i32) -> (i32, i32) {
    %c0_i32 = arith.constant 0 : i32
    %c0_i32_0 = arith.constant 0 : i32
    %c0_i32_1 = arith.constant 0 : i32
    return %c0_i32, %c0_i32_0 : i32, i32
  }
  func.func @transform_3(%arg0: i32) -> (i32, i32) {
    %c0_i32 = arith.constant 0 : i32
    %c0_i32_0 = arith.constant 0 : i32
    return %arg0, %c0_i32 : i32, i32
  }
}

module attributes {stable_mosaic.version = 11 : i64} {
  func.func @_dwconv_kernel(%arg0: i32, %arg1: memref<1x10x10x32xf32, #tpu.memory_space<vmem>>, %arg2: memref<3x3x32xf32, #tpu.memory_space<vmem>>, %arg3: memref<1x32xf32, #tpu.memory_space<vmem>>, %arg4: memref<1x8x8x32xf32, #tpu.memory_space<vmem>>) attributes {dimension_semantics = [#tpu.dimension_semantics<parallel>], iteration_bounds = array<i64: 2>, scalar_prefetch = 0 : i64, scratch_operands = 0 : i64, tpu.core_type = #tpu.core_type<tc>, window_params = [{transform_indices = @transform_0, window_bounds = array<i64: 1, 10, 10, 32>}, {pipeline_mode = #tpu.pipeline_mode<synchronous>, transform_indices = @transform_1, window_bounds = array<i64: 3, 3, 32>}, {pipeline_mode = #tpu.pipeline_mode<synchronous>, transform_indices = @transform_2, window_bounds = array<i64: 1, 32>}, {transform_indices = @transform_3, window_bounds = array<i64: 1, 8, 8, 32>}]} {
    %c0 = arith.constant 0 : index
    %c0_0 = arith.constant 0 : index
    %c0_1 = arith.constant 0 : index
    %c0_2 = arith.constant 0 : index
    %0 = vector.load %arg1[%c0, %c0_0, %c0_1, %c0_2] : memref<1x10x10x32xf32, #tpu.memory_space<vmem>>, vector<1x10x10x32xf32>
    %1 = vector.shape_cast %0 : vector<1x10x10x32xf32> to vector<10x10x32xf32>
    %c0_3 = arith.constant 0 : index
    %c0_4 = arith.constant 0 : index
    %c0_5 = arith.constant 0 : index
    %2 = vector.load %arg2[%c0_3, %c0_4, %c0_5] : memref<3x3x32xf32, #tpu.memory_space<vmem>>, vector<3x3x32xf32>
    %c0_6 = arith.constant 0 : index
    %c0_7 = arith.constant 0 : index
    %3 = vector.load %arg3[%c0_6, %c0_7] : memref<1x32xf32, #tpu.memory_space<vmem>>, vector<1x32xf32>
    %cst = arith.constant 0.000000e+00 : f32
    %4 = vector.broadcast %cst : f32 to vector<8x8x32xf32>
    %5 = vector.extract_strided_slice %1 {offsets = [0, 0, 0], sizes = [10, 8, 32], strides = [1, 1, 1]} : vector<10x10x32xf32> to vector<10x8x32xf32>
    %6 = vector.extract_strided_slice %5 {offsets = [0, 0, 0], sizes = [8, 8, 32], strides = [1, 1, 1]} : vector<10x8x32xf32> to vector<8x8x32xf32>
    %7 = vector.extract_strided_slice %2 {offsets = [0, 0, 0], sizes = [1, 1, 32], strides = [1, 1, 1]} : vector<3x3x32xf32> to vector<1x1x32xf32>
    %8 = vector.shape_cast %7 : vector<1x1x32xf32> to vector<32xf32>
    %9 = vector.shape_cast %8 : vector<32xf32> to vector<1x1x32xf32>
    %10 = vector.broadcast %9 : vector<1x1x32xf32> to vector<8x8x32xf32>
    %11 = arith.mulf %6, %10 : vector<8x8x32xf32>
    %12 = arith.addf %4, %11 : vector<8x8x32xf32>
    %13 = vector.extract_strided_slice %5 {offsets = [1, 0, 0], sizes = [8, 8, 32], strides = [1, 1, 1]} : vector<10x8x32xf32> to vector<8x8x32xf32>
    %14 = vector.extract_strided_slice %2 {offsets = [1, 0, 0], sizes = [1, 1, 32], strides = [1, 1, 1]} : vector<3x3x32xf32> to vector<1x1x32xf32>
    %15 = vector.shape_cast %14 : vector<1x1x32xf32> to vector<32xf32>
    %16 = vector.shape_cast %15 : vector<32xf32> to vector<1x1x32xf32>
    %17 = vector.broadcast %16 : vector<1x1x32xf32> to vector<8x8x32xf32>
    %18 = arith.mulf %13, %17 : vector<8x8x32xf32>
    %19 = arith.addf %12, %18 : vector<8x8x32xf32>
    %20 = vector.extract_strided_slice %5 {offsets = [2, 0, 0], sizes = [8, 8, 32], strides = [1, 1, 1]} : vector<10x8x32xf32> to vector<8x8x32xf32>
    %21 = vector.extract_strided_slice %2 {offsets = [2, 0, 0], sizes = [1, 1, 32], strides = [1, 1, 1]} : vector<3x3x32xf32> to vector<1x1x32xf32>
    %22 = vector.shape_cast %21 : vector<1x1x32xf32> to vector<32xf32>
    %23 = vector.shape_cast %22 : vector<32xf32> to vector<1x1x32xf32>
    %24 = vector.broadcast %23 : vector<1x1x32xf32> to vector<8x8x32xf32>
    %25 = arith.mulf %20, %24 : vector<8x8x32xf32>
    %26 = arith.addf %19, %25 : vector<8x8x32xf32>
    %27 = vector.extract_strided_slice %1 {offsets = [0, 1, 0], sizes = [10, 8, 32], strides = [1, 1, 1]} : vector<10x10x32xf32> to vector<10x8x32xf32>
    %28 = vector.extract_strided_slice %27 {offsets = [0, 0, 0], sizes = [8, 8, 32], strides = [1, 1, 1]} : vector<10x8x32xf32> to vector<8x8x32xf32>
    %29 = vector.extract_strided_slice %2 {offsets = [0, 1, 0], sizes = [1, 1, 32], strides = [1, 1, 1]} : vector<3x3x32xf32> to vector<1x1x32xf32>
    %30 = vector.shape_cast %29 : vector<1x1x32xf32> to vector<32xf32>
    %31 = vector.shape_cast %30 : vector<32xf32> to vector<1x1x32xf32>
    %32 = vector.broadcast %31 : vector<1x1x32xf32> to vector<8x8x32xf32>
    %33 = arith.mulf %28, %32 : vector<8x8x32xf32>
    %34 = arith.addf %26, %33 : vector<8x8x32xf32>
    %35 = vector.extract_strided_slice %27 {offsets = [1, 0, 0], sizes = [8, 8, 32], strides = [1, 1, 1]} : vector<10x8x32xf32> to vector<8x8x32xf32>
    %36 = vector.extract_strided_slice %2 {offsets = [1, 1, 0], sizes = [1, 1, 32], strides = [1, 1, 1]} : vector<3x3x32xf32> to vector<1x1x32xf32>
    %37 = vector.shape_cast %36 : vector<1x1x32xf32> to vector<32xf32>
    %38 = vector.shape_cast %37 : vector<32xf32> to vector<1x1x32xf32>
    %39 = vector.broadcast %38 : vector<1x1x32xf32> to vector<8x8x32xf32>
    %40 = arith.mulf %35, %39 : vector<8x8x32xf32>
    %41 = arith.addf %34, %40 : vector<8x8x32xf32>
    %42 = vector.extract_strided_slice %27 {offsets = [2, 0, 0], sizes = [8, 8, 32], strides = [1, 1, 1]} : vector<10x8x32xf32> to vector<8x8x32xf32>
    %43 = vector.extract_strided_slice %2 {offsets = [2, 1, 0], sizes = [1, 1, 32], strides = [1, 1, 1]} : vector<3x3x32xf32> to vector<1x1x32xf32>
    %44 = vector.shape_cast %43 : vector<1x1x32xf32> to vector<32xf32>
    %45 = vector.shape_cast %44 : vector<32xf32> to vector<1x1x32xf32>
    %46 = vector.broadcast %45 : vector<1x1x32xf32> to vector<8x8x32xf32>
    %47 = arith.mulf %42, %46 : vector<8x8x32xf32>
    %48 = arith.addf %41, %47 : vector<8x8x32xf32>
    %49 = vector.extract_strided_slice %1 {offsets = [0, 2, 0], sizes = [10, 8, 32], strides = [1, 1, 1]} : vector<10x10x32xf32> to vector<10x8x32xf32>
    %50 = vector.extract_strided_slice %49 {offsets = [0, 0, 0], sizes = [8, 8, 32], strides = [1, 1, 1]} : vector<10x8x32xf32> to vector<8x8x32xf32>
    %51 = vector.extract_strided_slice %2 {offsets = [0, 2, 0], sizes = [1, 1, 32], strides = [1, 1, 1]} : vector<3x3x32xf32> to vector<1x1x32xf32>
    %52 = vector.shape_cast %51 : vector<1x1x32xf32> to vector<32xf32>
    %53 = vector.shape_cast %52 : vector<32xf32> to vector<1x1x32xf32>
    %54 = vector.broadcast %53 : vector<1x1x32xf32> to vector<8x8x32xf32>
    %55 = arith.mulf %50, %54 : vector<8x8x32xf32>
    %56 = arith.addf %48, %55 : vector<8x8x32xf32>
    %57 = vector.extract_strided_slice %49 {offsets = [1, 0, 0], sizes = [8, 8, 32], strides = [1, 1, 1]} : vector<10x8x32xf32> to vector<8x8x32xf32>
    %58 = vector.extract_strided_slice %2 {offsets = [1, 2, 0], sizes = [1, 1, 32], strides = [1, 1, 1]} : vector<3x3x32xf32> to vector<1x1x32xf32>
    %59 = vector.shape_cast %58 : vector<1x1x32xf32> to vector<32xf32>
    %60 = vector.shape_cast %59 : vector<32xf32> to vector<1x1x32xf32>
    %61 = vector.broadcast %60 : vector<1x1x32xf32> to vector<8x8x32xf32>
    %62 = arith.mulf %57, %61 : vector<8x8x32xf32>
    %63 = arith.addf %56, %62 : vector<8x8x32xf32>
    %64 = vector.extract_strided_slice %49 {offsets = [2, 0, 0], sizes = [8, 8, 32], strides = [1, 1, 1]} : vector<10x8x32xf32> to vector<8x8x32xf32>
    %65 = vector.extract_strided_slice %2 {offsets = [2, 2, 0], sizes = [1, 1, 32], strides = [1, 1, 1]} : vector<3x3x32xf32> to vector<1x1x32xf32>
    %66 = vector.shape_cast %65 : vector<1x1x32xf32> to vector<32xf32>
    %67 = vector.shape_cast %66 : vector<32xf32> to vector<1x1x32xf32>
    %68 = vector.broadcast %67 : vector<1x1x32xf32> to vector<8x8x32xf32>
    %69 = arith.mulf %64, %68 : vector<8x8x32xf32>
    %70 = arith.addf %63, %69 : vector<8x8x32xf32>
    %71 = vector.shape_cast %3 : vector<1x32xf32> to vector<32xf32>
    %72 = vector.shape_cast %71 : vector<32xf32> to vector<1x1x32xf32>
    %73 = vector.broadcast %72 : vector<1x1x32xf32> to vector<8x8x32xf32>
    %74 = arith.addf %70, %73 : vector<8x8x32xf32>
    %c0_8 = arith.constant 0 : index
    %c0_9 = arith.constant 0 : index
    %c0_10 = arith.constant 0 : index
    %c0_11 = arith.constant 0 : index
    %75 = vector.load %arg4[%c0_8, %c0_9, %c0_10, %c0_11] : memref<1x8x8x32xf32, #tpu.memory_space<vmem>>, vector<1x8x8x32xf32>
    %76 = vector.shape_cast %75 : vector<1x8x8x32xf32> to vector<8x8x32xf32>
    %77 = vector.shape_cast %74 : vector<8x8x32xf32> to vector<1x8x8x32xf32>
    tpu.vector_store %arg4[%c0_8, %c0_9, %c0_10, %c0_11], %77 {strides = array<i32>} : memref<1x8x8x32xf32, #tpu.memory_space<vmem>>, vector<1x8x8x32xf32>,
    return
  }
  func.func @transform_0(%arg0: i32) -> (i32, i32, i32, i32) {
    %c0_i32 = arith.constant 0 : i32
    %c0_i32_0 = arith.constant 0 : i32
    %c0_i32_1 = arith.constant 0 : i32
    %c0_i32_2 = arith.constant 0 : i32
    return %arg0, %c0_i32, %c0_i32_0, %c0_i32_1 : i32, i32, i32, i32
  }
  func.func @transform_1(%arg0: i32) -> (i32, i32, i32) {
    %c0_i32 = arith.constant 0 : i32
    %c0_i32_0 = arith.constant 0 : i32
    %c0_i32_1 = arith.constant 0 : i32
    %c0_i32_2 = arith.constant 0 : i32
    return %c0_i32, %c0_i32_0, %c0_i32_1 : i32, i32, i32
  }
  func.func @transform_2(%arg0: i32) -> (i32, i32) {
    %c0_i32 = arith.constant 0 : i32
    %c0_i32_0 = arith.constant 0 : i32
    %c0_i32_1 = arith.constant 0 : i32
    return %c0_i32, %c0_i32_0 : i32, i32
  }
  func.func @transform_3(%arg0: i32) -> (i32, i32, i32, i32) {
    %c0_i32 = arith.constant 0 : i32
    %c0_i32_0 = arith.constant 0 : i32
    %c0_i32_1 = arith.constant 0 : i32
    %c0_i32_2 = arith.constant 0 : i32
    return %arg0, %c0_i32, %c0_i32_0, %c0_i32_1 : i32, i32, i32, i32
  }
}

module attributes {stable_mosaic.version = 11 : i64} {
  func.func @_linear_add_kernel(%arg0: i32, %arg1: memref<128x32xf32, #tpu.memory_space<vmem>>, %arg2: memref<128x32xf32, #tpu.memory_space<vmem>>, %arg3: memref<32x32xf32, #tpu.memory_space<vmem>>, %arg4: memref<1x32xf32, #tpu.memory_space<vmem>>, %arg5: memref<128x32xf32, #tpu.memory_space<vmem>>) attributes {dimension_semantics = [#tpu.dimension_semantics<parallel>], iteration_bounds = array<i64: 1>, scalar_prefetch = 0 : i64, scratch_operands = 0 : i64, tpu.core_type = #tpu.core_type<tc>, window_params = [{transform_indices = @transform_0, window_bounds = array<i64: 128, 32>}, {transform_indices = @transform_1, window_bounds = array<i64: 128, 32>}, {pipeline_mode = #tpu.pipeline_mode<synchronous>, transform_indices = @transform_2, window_bounds = array<i64: 32, 32>}, {pipeline_mode = #tpu.pipeline_mode<synchronous>, transform_indices = @transform_3, window_bounds = array<i64: 1, 32>}, {transform_indices = @transform_4, window_bounds = array<i64: 128, 32>}]} {
    %c0 = arith.constant 0 : index
    %c0_0 = arith.constant 0 : index
    %0 = vector.load %arg1[%c0, %c0_0] : memref<128x32xf32, #tpu.memory_space<vmem>>, vector<128x32xf32>
    %c0_1 = arith.constant 0 : index
    %c0_2 = arith.constant 0 : index
    %1 = vector.load %arg2[%c0_1, %c0_2] : memref<128x32xf32, #tpu.memory_space<vmem>>, vector<128x32xf32>
    %2 = arith.addf %0, %1 : vector<128x32xf32>
    %c0_3 = arith.constant 0 : index
    %c0_4 = arith.constant 0 : index
    %3 = vector.load %arg3[%c0_3, %c0_4] : memref<32x32xf32, #tpu.memory_space<vmem>>, vector<32x32xf32>
    %cst = arith.constant dense<0.000000e+00> : vector<128x32xf32>
    %4 = tpu.matmul %2, %3, %cst {dimension_numbers = #tpu.dot_dimension_numbers<[1], [0], [0], [1], [0, 0, 1, 1], [], []>} : vector<128x32xf32>, vector<32x32xf32>, vector<128x32xf32> -> vector<128x32xf32>
    %c0_5 = arith.constant 0 : index
    %c0_6 = arith.constant 0 : index
    %5 = vector.load %arg4[%c0_5, %c0_6] : memref<1x32xf32, #tpu.memory_space<vmem>>, vector<1x32xf32>
    %6 = vector.broadcast %5 : vector<1x32xf32> to vector<128x32xf32>
    %7 = arith.addf %4, %6 : vector<128x32xf32>
    %c0_7 = arith.constant 0 : index
    %c0_8 = arith.constant 0 : index
    %8 = vector.load %arg5[%c0_7, %c0_8] : memref<128x32xf32, #tpu.memory_space<vmem>>, vector<128x32xf32>
    tpu.vector_store %arg5[%c0_7, %c0_8], %7 {strides = array<i32>} : memref<128x32xf32, #tpu.memory_space<vmem>>, vector<128x32xf32>,
    return
  }
  func.func @transform_0(%arg0: i32) -> (i32, i32) {
    %c0_i32 = arith.constant 0 : i32
    %c0_i32_0 = arith.constant 0 : i32
    return %arg0, %c0_i32 : i32, i32
  }
  func.func @transform_1(%arg0: i32) -> (i32, i32) {
    %c0_i32 = arith.constant 0 : i32
    %c0_i32_0 = arith.constant 0 : i32
    return %arg0, %c0_i32 : i32, i32
  }
  func.func @transform_2(%arg0: i32) -> (i32, i32) {
    %c0_i32 = arith.constant 0 : i32
    %c0_i32_0 = arith.constant 0 : i32
    %c0_i32_1 = arith.constant 0 : i32
    return %c0_i32, %c0_i32_0 : i32, i32
  }
  func.func @transform_3(%arg0: i32) -> (i32, i32) {
    %c0_i32 = arith.constant 0 : i32
    %c0_i32_0 = arith.constant 0 : i32
    %c0_i32_1 = arith.constant 0 : i32
    return %c0_i32, %c0_i32_0 : i32, i32
  }
  func.func @transform_4(%arg0: i32) -> (i32, i32) {
    %c0_i32 = arith.constant 0 : i32
    %c0_i32_0 = arith.constant 0 : i32
    return %arg0, %c0_i32 : i32, i32
  }
}

module attributes {stable_mosaic.version = 11 : i64} {
  func.func @_routed_attn_kernel(%arg0: i32, %arg1: i32, %arg2: i32, %arg3: memref<16xi32, #tpu.memory_space<smem>>, %arg4: memref<1x1x16x32xbf16, #tpu.memory_space<vmem>>, %arg5: memref<1x1x16x64xbf16, #tpu.memory_space<vmem>>, %arg6: memref<1x1x16x32xf32, #tpu.memory_space<vmem>>, %arg7: memref<4x16x1xf32, #tpu.memory_space<vmem>>, %arg8: memref<4x16x1xf32, #tpu.memory_space<vmem>>, %arg9: memref<4x16x8xf32, #tpu.memory_space<vmem>>) attributes {dimension_semantics = [#tpu.dimension_semantics<parallel>, #tpu.dimension_semantics<parallel>, #tpu.dimension_semantics<arbitrary>], iteration_bounds = array<i64: 2, 4, 2>, scalar_prefetch = 1 : i64, scratch_operands = 3 : i64, tpu.core_type = #tpu.core_type<tc>, window_params = [{transform_indices = @transform_0, window_bounds = array<i64: 1, 1, 16, 32>}, {transform_indices = @transform_1, window_bounds = array<i64: 1, 1, 16, 64>}, {transform_indices = @transform_2, window_bounds = array<i64: 1, 1, 16, 32>}]} {
    %c0_i32 = arith.constant 0 : i32
    %0 = arith.cmpi eq, %arg2, %c0_i32 : i32
    %1 = arith.extui %0 : i1 to i32
    %c0_i32_0 = arith.constant 0 : i32
    %2 = arith.cmpi ne, %1, %c0_i32_0 : i32
    scf.if %2 {
      %cst_97 = arith.constant 0xFF800000 : f32
      %164 = vector.broadcast %cst_97 : f32 to vector<4x16x1xf32>
      %c0_98 = arith.constant 0 : index
      %c0_99 = arith.constant 0 : index
      %c0_100 = arith.constant 0 : index
      %165 = vector.load %arg7[%c0_98, %c0_99, %c0_100] : memref<4x16x1xf32, #tpu.memory_space<vmem>>, vector<4x16x1xf32>
      tpu.vector_store %arg7[%c0_98, %c0_99, %c0_100], %164 {strides = array<i32>} : memref<4x16x1xf32, #tpu.memory_space<vmem>>, vector<4x16x1xf32>,
      %cst_101 = arith.constant 0.000000e+00 : f32
      %166 = vector.broadcast %cst_101 : f32 to vector<4x16x1xf32>
      %c0_102 = arith.constant 0 : index
      %c0_103 = arith.constant 0 : index
      %c0_104 = arith.constant 0 : index
      %167 = vector.load %arg8[%c0_102, %c0_103, %c0_104] : memref<4x16x1xf32, #tpu.memory_space<vmem>>, vector<4x16x1xf32>
      tpu.vector_store %arg8[%c0_102, %c0_103, %c0_104], %166 {strides = array<i32>} : memref<4x16x1xf32, #tpu.memory_space<vmem>>, vector<4x16x1xf32>,
      %cst_105 = arith.constant 0.000000e+00 : f32
      %168 = vector.broadcast %cst_105 : f32 to vector<4x16x8xf32>
      %c0_106 = arith.constant 0 : index
      %c0_107 = arith.constant 0 : index
      %c0_108 = arith.constant 0 : index
      %169 = vector.load %arg9[%c0_106, %c0_107, %c0_108] : memref<4x16x8xf32, #tpu.memory_space<vmem>>, vector<4x16x8xf32>
      tpu.vector_store %arg9[%c0_106, %c0_107, %c0_108], %168 {strides = array<i32>} : memref<4x16x8xf32, #tpu.memory_space<vmem>>, vector<4x16x8xf32>,
    } else {
    }
    %c0 = arith.constant 0 : index
    %c0_1 = arith.constant 0 : index
    %c0_2 = arith.constant 0 : index
    %c0_3 = arith.constant 0 : index
    %3 = vector.load %arg4[%c0, %c0_1, %c0_2, %c0_3] : memref<1x1x16x32xbf16, #tpu.memory_space<vmem>>, vector<1x1x16x32xbf16>
    %4 = vector.shape_cast %3 : vector<1x1x16x32xbf16> to vector<16x32xbf16>
    %c0_4 = arith.constant 0 : index
    %c0_5 = arith.constant 0 : index
    %c0_6 = arith.constant 0 : index
    %c0_7 = arith.constant 0 : index
    %5 = vector.load %arg5[%c0_4, %c0_5, %c0_6, %c0_7] : memref<1x1x16x64xbf16, #tpu.memory_space<vmem>>, vector<1x1x16x64xbf16>
    %6 = vector.shape_cast %5 : vector<1x1x16x64xbf16> to vector<16x64xbf16>
    %7 = vector.extract_strided_slice %6 {offsets = [0, 0], sizes = [16, 32], strides = [1, 1]} : vector<16x64xbf16> to vector<16x32xbf16>
    %8 = vector.extract_strided_slice %6 {offsets = [0, 32], sizes = [16, 32], strides = [1, 1]} : vector<16x64xbf16> to vector<16x32xbf16>
    %9 = vector.extract_strided_slice %4 {offsets = [0, 0], sizes = [16, 8], strides = [1, 1]} : vector<16x32xbf16> to vector<16x8xbf16>
    %10 = vector.extract_strided_slice %7 {offsets = [0, 0], sizes = [16, 8], strides = [1, 1]} : vector<16x32xbf16> to vector<16x8xbf16>
    %11 = vector.extract_strided_slice %8 {offsets = [0, 0], sizes = [16, 8], strides = [1, 1]} : vector<16x32xbf16> to vector<16x8xbf16>
    %cst = arith.constant dense<0.000000e+00> : vector<16x16xf32>
    %12 = tpu.matmul %9, %10, %cst {dimension_numbers = #tpu.dot_dimension_numbers<[1], [1], [0], [0], [0, 0, 1, 0], [], []>} : vector<16x8xbf16>, vector<16x8xbf16>, vector<16x16xf32> -> vector<16x16xf32>
    %cst_8 = arith.constant 0.176776692 : f32
    %13 = vector.broadcast %cst_8 : f32 to vector<16x16xf32>
    %14 = arith.mulf %12, %13 : vector<16x16xf32>
    %c0_9 = arith.constant 0 : index
    %c0_10 = arith.constant 0 : index
    %c0_11 = arith.constant 0 : index
    %15 = vector.load %arg7[%c0_9, %c0_10, %c0_11] : memref<4x16x1xf32, #tpu.memory_space<vmem>>, vector<1x16x1xf32>
    %16 = vector.shape_cast %15 : vector<1x16x1xf32> to vector<16x1xf32>
    %cst_12 = arith.constant dense<0xFF800000> : vector<16xf32>
    %17 = vector.multi_reduction <maximumf>, %14, %cst_12 [1] : vector<16x16xf32> to vector<16xf32>
    %18 = vector.shape_cast %17 : vector<16xf32> to vector<16x1xf32>
    %19 = arith.maximumf %16, %18 : vector<16x1xf32>
    %20 = arith.subf %16, %19 : vector<16x1xf32>
    %21 = math.exp %20 : vector<16x1xf32>
    %22 = vector.broadcast %19 : vector<16x1xf32> to vector<16x16xf32>
    %23 = arith.subf %14, %22 : vector<16x16xf32>
    %24 = math.exp %23 : vector<16x16xf32>
    %c0_13 = arith.constant 0 : index
    %c0_14 = arith.constant 0 : index
    %c0_15 = arith.constant 0 : index
    %25 = vector.load %arg8[%c0_13, %c0_14, %c0_15] : memref<4x16x1xf32, #tpu.memory_space<vmem>>, vector<1x16x1xf32>
    %26 = vector.shape_cast %25 : vector<1x16x1xf32> to vector<16x1xf32>
    %27 = arith.mulf %21, %26 : vector<16x1xf32>
    %cst_16 = arith.constant dense<0.000000e+00> : vector<16xf32>
    %28 = vector.multi_reduction <add>, %24, %cst_16 [1] : vector<16x16xf32> to vector<16xf32>
    %29 = vector.shape_cast %28 : vector<16xf32> to vector<16x1xf32>
    %30 = arith.addf %27, %29 : vector<16x1xf32>
    %c0_17 = arith.constant 0 : index
    %c0_18 = arith.constant 0 : index
    %c0_19 = arith.constant 0 : index
    %31 = vector.load %arg8[%c0_17, %c0_18, %c0_19] : memref<4x16x1xf32, #tpu.memory_space<vmem>>, vector<1x16x1xf32>
    %32 = vector.shape_cast %31 : vector<1x16x1xf32> to vector<16x1xf32>
    %33 = vector.shape_cast %30 : vector<16x1xf32> to vector<1x16x1xf32>
    tpu.vector_store %arg8[%c0_17, %c0_18, %c0_19], %33 {strides = array<i32>} : memref<4x16x1xf32, #tpu.memory_space<vmem>>, vector<1x16x1xf32>,
    %c0_20 = arith.constant 0 : index
    %c0_21 = arith.constant 0 : index
    %c0_22 = arith.constant 0 : index
    %34 = vector.load %arg9[%c0_20, %c0_21, %c0_22] : memref<4x16x8xf32, #tpu.memory_space<vmem>>, vector<1x16x8xf32>
    %35 = vector.shape_cast %34 : vector<1x16x8xf32> to vector<16x8xf32>
    %36 = vector.broadcast %21 : vector<16x1xf32> to vector<16x8xf32>
    %37 = arith.mulf %36, %35 : vector<16x8xf32>
    %38 = arith.truncf %24 : vector<16x16xf32> to vector<16x16xbf16>
    %cst_23 = arith.constant dense<0.000000e+00> : vector<16x8xf32>
    %39 = tpu.matmul %38, %11, %cst_23 {dimension_numbers = #tpu.dot_dimension_numbers<[1], [0], [0], [1], [0, 0, 1, 1], [], []>} : vector<16x16xbf16>, vector<16x8xbf16>, vector<16x8xf32> -> vector<16x8xf32>
    %40 = arith.addf %37, %39 : vector<16x8xf32>
    %c0_24 = arith.constant 0 : index
    %c0_25 = arith.constant 0 : index
    %c0_26 = arith.constant 0 : index
    %41 = vector.load %arg9[%c0_24, %c0_25, %c0_26] : memref<4x16x8xf32, #tpu.memory_space<vmem>>, vector<1x16x8xf32>
    %42 = vector.shape_cast %41 : vector<1x16x8xf32> to vector<16x8xf32>
    %43 = vector.shape_cast %40 : vector<16x8xf32> to vector<1x16x8xf32>
    tpu.vector_store %arg9[%c0_24, %c0_25, %c0_26], %43 {strides = array<i32>} : memref<4x16x8xf32, #tpu.memory_space<vmem>>, vector<1x16x8xf32>,
    %c0_27 = arith.constant 0 : index
    %c0_28 = arith.constant 0 : index
    %c0_29 = arith.constant 0 : index
    %44 = vector.load %arg7[%c0_27, %c0_28, %c0_29] : memref<4x16x1xf32, #tpu.memory_space<vmem>>, vector<1x16x1xf32>
    %45 = vector.shape_cast %44 : vector<1x16x1xf32> to vector<16x1xf32>
    %46 = vector.shape_cast %19 : vector<16x1xf32> to vector<1x16x1xf32>
    tpu.vector_store %arg7[%c0_27, %c0_28, %c0_29], %46 {strides = array<i32>} : memref<4x16x1xf32, #tpu.memory_space<vmem>>, vector<1x16x1xf32>,
    %47 = vector.extract_strided_slice %4 {offsets = [0, 8], sizes = [16, 8], strides = [1, 1]} : vector<16x32xbf16> to vector<16x8xbf16>
    %48 = vector.extract_strided_slice %7 {offsets = [0, 8], sizes = [16, 8], strides = [1, 1]} : vector<16x32xbf16> to vector<16x8xbf16>
    %49 = vector.extract_strided_slice %8 {offsets = [0, 8], sizes = [16, 8], strides = [1, 1]} : vector<16x32xbf16> to vector<16x8xbf16>
    %cst_30 = arith.constant dense<0.000000e+00> : vector<16x16xf32>
    %50 = tpu.matmul %47, %48, %cst_30 {dimension_numbers = #tpu.dot_dimension_numbers<[1], [1], [0], [0], [0, 0, 1, 0], [], []>} : vector<16x8xbf16>, vector<16x8xbf16>, vector<16x16xf32> -> vector<16x16xf32>
    %cst_31 = arith.constant 0.176776692 : f32
    %51 = vector.broadcast %cst_31 : f32 to vector<16x16xf32>
    %52 = arith.mulf %50, %51 : vector<16x16xf32>
    %c1 = arith.constant 1 : index
    %c0_32 = arith.constant 0 : index
    %c0_33 = arith.constant 0 : index
    %53 = vector.load %arg7[%c1, %c0_32, %c0_33] : memref<4x16x1xf32, #tpu.memory_space<vmem>>, vector<1x16x1xf32>
    %54 = vector.shape_cast %53 : vector<1x16x1xf32> to vector<16x1xf32>
    %cst_34 = arith.constant dense<0xFF800000> : vector<16xf32>
    %55 = vector.multi_reduction <maximumf>, %52, %cst_34 [1] : vector<16x16xf32> to vector<16xf32>
    %56 = vector.shape_cast %55 : vector<16xf32> to vector<16x1xf32>
    %57 = arith.maximumf %54, %56 : vector<16x1xf32>
    %58 = arith.subf %54, %57 : vector<16x1xf32>
    %59 = math.exp %58 : vector<16x1xf32>
    %60 = vector.broadcast %57 : vector<16x1xf32> to vector<16x16xf32>
    %61 = arith.subf %52, %60 : vector<16x16xf32>
    %62 = math.exp %61 : vector<16x16xf32>
    %c1_35 = arith.constant 1 : index
    %c0_36 = arith.constant 0 : index
    %c0_37 = arith.constant 0 : index
    %63 = vector.load %arg8[%c1_35, %c0_36, %c0_37] : memref<4x16x1xf32, #tpu.memory_space<vmem>>, vector<1x16x1xf32>
    %64 = vector.shape_cast %63 : vector<1x16x1xf32> to vector<16x1xf32>
    %65 = arith.mulf %59, %64 : vector<16x1xf32>
    %cst_38 = arith.constant dense<0.000000e+00> : vector<16xf32>
    %66 = vector.multi_reduction <add>, %62, %cst_38 [1] : vector<16x16xf32> to vector<16xf32>
    %67 = vector.shape_cast %66 : vector<16xf32> to vector<16x1xf32>
    %68 = arith.addf %65, %67 : vector<16x1xf32>
    %c1_39 = arith.constant 1 : index
    %c0_40 = arith.constant 0 : index
    %c0_41 = arith.constant 0 : index
    %69 = vector.load %arg8[%c1_39, %c0_40, %c0_41] : memref<4x16x1xf32, #tpu.memory_space<vmem>>, vector<1x16x1xf32>
    %70 = vector.shape_cast %69 : vector<1x16x1xf32> to vector<16x1xf32>
    %71 = vector.shape_cast %68 : vector<16x1xf32> to vector<1x16x1xf32>
    tpu.vector_store %arg8[%c1_39, %c0_40, %c0_41], %71 {strides = array<i32>} : memref<4x16x1xf32, #tpu.memory_space<vmem>>, vector<1x16x1xf32>,
    %c1_42 = arith.constant 1 : index
    %c0_43 = arith.constant 0 : index
    %c0_44 = arith.constant 0 : index
    %72 = vector.load %arg9[%c1_42, %c0_43, %c0_44] : memref<4x16x8xf32, #tpu.memory_space<vmem>>, vector<1x16x8xf32>
    %73 = vector.shape_cast %72 : vector<1x16x8xf32> to vector<16x8xf32>
    %74 = vector.broadcast %59 : vector<16x1xf32> to vector<16x8xf32>
    %75 = arith.mulf %74, %73 : vector<16x8xf32>
    %76 = arith.truncf %62 : vector<16x16xf32> to vector<16x16xbf16>
    %cst_45 = arith.constant dense<0.000000e+00> : vector<16x8xf32>
    %77 = tpu.matmul %76, %49, %cst_45 {dimension_numbers = #tpu.dot_dimension_numbers<[1], [0], [0], [1], [0, 0, 1, 1], [], []>} : vector<16x16xbf16>, vector<16x8xbf16>, vector<16x8xf32> -> vector<16x8xf32>
    %78 = arith.addf %75, %77 : vector<16x8xf32>
    %c1_46 = arith.constant 1 : index
    %c0_47 = arith.constant 0 : index
    %c0_48 = arith.constant 0 : index
    %79 = vector.load %arg9[%c1_46, %c0_47, %c0_48] : memref<4x16x8xf32, #tpu.memory_space<vmem>>, vector<1x16x8xf32>
    %80 = vector.shape_cast %79 : vector<1x16x8xf32> to vector<16x8xf32>
    %81 = vector.shape_cast %78 : vector<16x8xf32> to vector<1x16x8xf32>
    tpu.vector_store %arg9[%c1_46, %c0_47, %c0_48], %81 {strides = array<i32>} : memref<4x16x8xf32, #tpu.memory_space<vmem>>, vector<1x16x8xf32>,
    %c1_49 = arith.constant 1 : index
    %c0_50 = arith.constant 0 : index
    %c0_51 = arith.constant 0 : index
    %82 = vector.load %arg7[%c1_49, %c0_50, %c0_51] : memref<4x16x1xf32, #tpu.memory_space<vmem>>, vector<1x16x1xf32>
    %83 = vector.shape_cast %82 : vector<1x16x1xf32> to vector<16x1xf32>
    %84 = vector.shape_cast %57 : vector<16x1xf32> to vector<1x16x1xf32>
    tpu.vector_store %arg7[%c1_49, %c0_50, %c0_51], %84 {strides = array<i32>} : memref<4x16x1xf32, #tpu.memory_space<vmem>>, vector<1x16x1xf32>,
    %85 = vector.extract_strided_slice %4 {offsets = [0, 16], sizes = [16, 8], strides = [1, 1]} : vector<16x32xbf16> to vector<16x8xbf16>
    %86 = vector.extract_strided_slice %7 {offsets = [0, 16], sizes = [16, 8], strides = [1, 1]} : vector<16x32xbf16> to vector<16x8xbf16>
    %87 = vector.extract_strided_slice %8 {offsets = [0, 16], sizes = [16, 8], strides = [1, 1]} : vector<16x32xbf16> to vector<16x8xbf16>
    %cst_52 = arith.constant dense<0.000000e+00> : vector<16x16xf32>
    %88 = tpu.matmul %85, %86, %cst_52 {dimension_numbers = #tpu.dot_dimension_numbers<[1], [1], [0], [0], [0, 0, 1, 0], [], []>} : vector<16x8xbf16>, vector<16x8xbf16>, vector<16x16xf32> -> vector<16x16xf32>
    %cst_53 = arith.constant 0.176776692 : f32
    %89 = vector.broadcast %cst_53 : f32 to vector<16x16xf32>
    %90 = arith.mulf %88, %89 : vector<16x16xf32>
    %c2 = arith.constant 2 : index
    %c0_54 = arith.constant 0 : index
    %c0_55 = arith.constant 0 : index
    %91 = vector.load %arg7[%c2, %c0_54, %c0_55] : memref<4x16x1xf32, #tpu.memory_space<vmem>>, vector<1x16x1xf32>
    %92 = vector.shape_cast %91 : vector<1x16x1xf32> to vector<16x1xf32>
    %cst_56 = arith.constant dense<0xFF800000> : vector<16xf32>
    %93 = vector.multi_reduction <maximumf>, %90, %cst_56 [1] : vector<16x16xf32> to vector<16xf32>
    %94 = vector.shape_cast %93 : vector<16xf32> to vector<16x1xf32>
    %95 = arith.maximumf %92, %94 : vector<16x1xf32>
    %96 = arith.subf %92, %95 : vector<16x1xf32>
    %97 = math.exp %96 : vector<16x1xf32>
    %98 = vector.broadcast %95 : vector<16x1xf32> to vector<16x16xf32>
    %99 = arith.subf %90, %98 : vector<16x16xf32>
    %100 = math.exp %99 : vector<16x16xf32>
    %c2_57 = arith.constant 2 : index
    %c0_58 = arith.constant 0 : index
    %c0_59 = arith.constant 0 : index
    %101 = vector.load %arg8[%c2_57, %c0_58, %c0_59] : memref<4x16x1xf32, #tpu.memory_space<vmem>>, vector<1x16x1xf32>
    %102 = vector.shape_cast %101 : vector<1x16x1xf32> to vector<16x1xf32>
    %103 = arith.mulf %97, %102 : vector<16x1xf32>
    %cst_60 = arith.constant dense<0.000000e+00> : vector<16xf32>
    %104 = vector.multi_reduction <add>, %100, %cst_60 [1] : vector<16x16xf32> to vector<16xf32>
    %105 = vector.shape_cast %104 : vector<16xf32> to vector<16x1xf32>
    %106 = arith.addf %103, %105 : vector<16x1xf32>
    %c2_61 = arith.constant 2 : index
    %c0_62 = arith.constant 0 : index
    %c0_63 = arith.constant 0 : index
    %107 = vector.load %arg8[%c2_61, %c0_62, %c0_63] : memref<4x16x1xf32, #tpu.memory_space<vmem>>, vector<1x16x1xf32>
    %108 = vector.shape_cast %107 : vector<1x16x1xf32> to vector<16x1xf32>
    %109 = vector.shape_cast %106 : vector<16x1xf32> to vector<1x16x1xf32>
    tpu.vector_store %arg8[%c2_61, %c0_62, %c0_63], %109 {strides = array<i32>} : memref<4x16x1xf32, #tpu.memory_space<vmem>>, vector<1x16x1xf32>,
    %c2_64 = arith.constant 2 : index
    %c0_65 = arith.constant 0 : index
    %c0_66 = arith.constant 0 : index
    %110 = vector.load %arg9[%c2_64, %c0_65, %c0_66] : memref<4x16x8xf32, #tpu.memory_space<vmem>>, vector<1x16x8xf32>
    %111 = vector.shape_cast %110 : vector<1x16x8xf32> to vector<16x8xf32>
    %112 = vector.broadcast %97 : vector<16x1xf32> to vector<16x8xf32>
    %113 = arith.mulf %112, %111 : vector<16x8xf32>
    %114 = arith.truncf %100 : vector<16x16xf32> to vector<16x16xbf16>
    %cst_67 = arith.constant dense<0.000000e+00> : vector<16x8xf32>
    %115 = tpu.matmul %114, %87, %cst_67 {dimension_numbers = #tpu.dot_dimension_numbers<[1], [0], [0], [1], [0, 0, 1, 1], [], []>} : vector<16x16xbf16>, vector<16x8xbf16>, vector<16x8xf32> -> vector<16x8xf32>
    %116 = arith.addf %113, %115 : vector<16x8xf32>
    %c2_68 = arith.constant 2 : index
    %c0_69 = arith.constant 0 : index
    %c0_70 = arith.constant 0 : index
    %117 = vector.load %arg9[%c2_68, %c0_69, %c0_70] : memref<4x16x8xf32, #tpu.memory_space<vmem>>, vector<1x16x8xf32>
    %118 = vector.shape_cast %117 : vector<1x16x8xf32> to vector<16x8xf32>
    %119 = vector.shape_cast %116 : vector<16x8xf32> to vector<1x16x8xf32>
    tpu.vector_store %arg9[%c2_68, %c0_69, %c0_70], %119 {strides = array<i32>} : memref<4x16x8xf32, #tpu.memory_space<vmem>>, vector<1x16x8xf32>,
    %c2_71 = arith.constant 2 : index
    %c0_72 = arith.constant 0 : index
    %c0_73 = arith.constant 0 : index
    %120 = vector.load %arg7[%c2_71, %c0_72, %c0_73] : memref<4x16x1xf32, #tpu.memory_space<vmem>>, vector<1x16x1xf32>
    %121 = vector.shape_cast %120 : vector<1x16x1xf32> to vector<16x1xf32>
    %122 = vector.shape_cast %95 : vector<16x1xf32> to vector<1x16x1xf32>
    tpu.vector_store %arg7[%c2_71, %c0_72, %c0_73], %122 {strides = array<i32>} : memref<4x16x1xf32, #tpu.memory_space<vmem>>, vector<1x16x1xf32>,
    %123 = vector.extract_strided_slice %4 {offsets = [0, 24], sizes = [16, 8], strides = [1, 1]} : vector<16x32xbf16> to vector<16x8xbf16>
    %124 = vector.extract_strided_slice %7 {offsets = [0, 24], sizes = [16, 8], strides = [1, 1]} : vector<16x32xbf16> to vector<16x8xbf16>
    %125 = vector.extract_strided_slice %8 {offsets = [0, 24], sizes = [16, 8], strides = [1, 1]} : vector<16x32xbf16> to vector<16x8xbf16>
    %cst_74 = arith.constant dense<0.000000e+00> : vector<16x16xf32>
    %126 = tpu.matmul %123, %124, %cst_74 {dimension_numbers = #tpu.dot_dimension_numbers<[1], [1], [0], [0], [0, 0, 1, 0], [], []>} : vector<16x8xbf16>, vector<16x8xbf16>, vector<16x16xf32> -> vector<16x16xf32>
    %cst_75 = arith.constant 0.176776692 : f32
    %127 = vector.broadcast %cst_75 : f32 to vector<16x16xf32>
    %128 = arith.mulf %126, %127 : vector<16x16xf32>
    %c3 = arith.constant 3 : index
    %c0_76 = arith.constant 0 : index
    %c0_77 = arith.constant 0 : index
    %129 = vector.load %arg7[%c3, %c0_76, %c0_77] : memref<4x16x1xf32, #tpu.memory_space<vmem>>, vector<1x16x1xf32>
    %130 = vector.shape_cast %129 : vector<1x16x1xf32> to vector<16x1xf32>
    %cst_78 = arith.constant dense<0xFF800000> : vector<16xf32>
    %131 = vector.multi_reduction <maximumf>, %128, %cst_78 [1] : vector<16x16xf32> to vector<16xf32>
    %132 = vector.shape_cast %131 : vector<16xf32> to vector<16x1xf32>
    %133 = arith.maximumf %130, %132 : vector<16x1xf32>
    %134 = arith.subf %130, %133 : vector<16x1xf32>
    %135 = math.exp %134 : vector<16x1xf32>
    %136 = vector.broadcast %133 : vector<16x1xf32> to vector<16x16xf32>
    %137 = arith.subf %128, %136 : vector<16x16xf32>
    %138 = math.exp %137 : vector<16x16xf32>
    %c3_79 = arith.constant 3 : index
    %c0_80 = arith.constant 0 : index
    %c0_81 = arith.constant 0 : index
    %139 = vector.load %arg8[%c3_79, %c0_80, %c0_81] : memref<4x16x1xf32, #tpu.memory_space<vmem>>, vector<1x16x1xf32>
    %140 = vector.shape_cast %139 : vector<1x16x1xf32> to vector<16x1xf32>
    %141 = arith.mulf %135, %140 : vector<16x1xf32>
    %cst_82 = arith.constant dense<0.000000e+00> : vector<16xf32>
    %142 = vector.multi_reduction <add>, %138, %cst_82 [1] : vector<16x16xf32> to vector<16xf32>
    %143 = vector.shape_cast %142 : vector<16xf32> to vector<16x1xf32>
    %144 = arith.addf %141, %143 : vector<16x1xf32>
    %c3_83 = arith.constant 3 : index
    %c0_84 = arith.constant 0 : index
    %c0_85 = arith.constant 0 : index
    %145 = vector.load %arg8[%c3_83, %c0_84, %c0_85] : memref<4x16x1xf32, #tpu.memory_space<vmem>>, vector<1x16x1xf32>
    %146 = vector.shape_cast %145 : vector<1x16x1xf32> to vector<16x1xf32>
    %147 = vector.shape_cast %144 : vector<16x1xf32> to vector<1x16x1xf32>
    tpu.vector_store %arg8[%c3_83, %c0_84, %c0_85], %147 {strides = array<i32>} : memref<4x16x1xf32, #tpu.memory_space<vmem>>, vector<1x16x1xf32>,
    %c3_86 = arith.constant 3 : index
    %c0_87 = arith.constant 0 : index
    %c0_88 = arith.constant 0 : index
    %148 = vector.load %arg9[%c3_86, %c0_87, %c0_88] : memref<4x16x8xf32, #tpu.memory_space<vmem>>, vector<1x16x8xf32>
    %149 = vector.shape_cast %148 : vector<1x16x8xf32> to vector<16x8xf32>
    %150 = vector.broadcast %135 : vector<16x1xf32> to vector<16x8xf32>
    %151 = arith.mulf %150, %149 : vector<16x8xf32>
    %152 = arith.truncf %138 : vector<16x16xf32> to vector<16x16xbf16>
    %cst_89 = arith.constant dense<0.000000e+00> : vector<16x8xf32>
    %153 = tpu.matmul %152, %125, %cst_89 {dimension_numbers = #tpu.dot_dimension_numbers<[1], [0], [0], [1], [0, 0, 1, 1], [], []>} : vector<16x16xbf16>, vector<16x8xbf16>, vector<16x8xf32> -> vector<16x8xf32>
    %154 = arith.addf %151, %153 : vector<16x8xf32>
    %c3_90 = arith.constant 3 : index
    %c0_91 = arith.constant 0 : index
    %c0_92 = arith.constant 0 : index
    %155 = vector.load %arg9[%c3_90, %c0_91, %c0_92] : memref<4x16x8xf32, #tpu.memory_space<vmem>>, vector<1x16x8xf32>
    %156 = vector.shape_cast %155 : vector<1x16x8xf32> to vector<16x8xf32>
    %157 = vector.shape_cast %154 : vector<16x8xf32> to vector<1x16x8xf32>
    tpu.vector_store %arg9[%c3_90, %c0_91, %c0_92], %157 {strides = array<i32>} : memref<4x16x8xf32, #tpu.memory_space<vmem>>, vector<1x16x8xf32>,
    %c3_93 = arith.constant 3 : index
    %c0_94 = arith.constant 0 : index
    %c0_95 = arith.constant 0 : index
    %158 = vector.load %arg7[%c3_93, %c0_94, %c0_95] : memref<4x16x1xf32, #tpu.memory_space<vmem>>, vector<1x16x1xf32>
    %159 = vector.shape_cast %158 : vector<1x16x1xf32> to vector<16x1xf32>
    %160 = vector.shape_cast %133 : vector<16x1xf32> to vector<1x16x1xf32>
    tpu.vector_store %arg7[%c3_93, %c0_94, %c0_95], %160 {strides = array<i32>} : memref<4x16x1xf32, #tpu.memory_space<vmem>>, vector<1x16x1xf32>,
    %c1_i32 = arith.constant 1 : i32
    %161 = arith.cmpi eq, %arg2, %c1_i32 : i32
    %162 = arith.extui %161 : i1 to i32
    %c0_i32_96 = arith.constant 0 : i32
    %163 = arith.cmpi ne, %162, %c0_i32_96 : i32
    scf.if %163 {
      %c0_97 = arith.constant 0 : index
      %c0_98 = arith.constant 0 : index
      %c0_99 = arith.constant 0 : index
      %164 = vector.load %arg9[%c0_97, %c0_98, %c0_99] : memref<4x16x8xf32, #tpu.memory_space<vmem>>, vector<1x16x8xf32>
      %165 = vector.shape_cast %164 : vector<1x16x8xf32> to vector<16x8xf32>
      %c0_100 = arith.constant 0 : index
      %c0_101 = arith.constant 0 : index
      %c0_102 = arith.constant 0 : index
      %166 = vector.load %arg8[%c0_100, %c0_101, %c0_102] : memref<4x16x1xf32, #tpu.memory_space<vmem>>, vector<1x16x1xf32>
      %167 = vector.shape_cast %166 : vector<1x16x1xf32> to vector<16x1xf32>
      %168 = tpu.reciprocal %167 {approx = true} : vector<16x1xf32> -> vector<16x1xf32>
      %169 = vector.broadcast %168 : vector<16x1xf32> to vector<16x8xf32>
      %170 = arith.mulf %165, %169 : vector<16x8xf32>
      %c1_103 = arith.constant 1 : index
      %c0_104 = arith.constant 0 : index
      %c0_105 = arith.constant 0 : index
      %171 = vector.load %arg9[%c1_103, %c0_104, %c0_105] : memref<4x16x8xf32, #tpu.memory_space<vmem>>, vector<1x16x8xf32>
      %172 = vector.shape_cast %171 : vector<1x16x8xf32> to vector<16x8xf32>
      %c1_106 = arith.constant 1 : index
      %c0_107 = arith.constant 0 : index
      %c0_108 = arith.constant 0 : index
      %173 = vector.load %arg8[%c1_106, %c0_107, %c0_108] : memref<4x16x1xf32, #tpu.memory_space<vmem>>, vector<1x16x1xf32>
      %174 = vector.shape_cast %173 : vector<1x16x1xf32> to vector<16x1xf32>
      %175 = tpu.reciprocal %174 {approx = true} : vector<16x1xf32> -> vector<16x1xf32>
      %176 = vector.broadcast %175 : vector<16x1xf32> to vector<16x8xf32>
      %177 = arith.mulf %172, %176 : vector<16x8xf32>
      %c2_109 = arith.constant 2 : index
      %c0_110 = arith.constant 0 : index
      %c0_111 = arith.constant 0 : index
      %178 = vector.load %arg9[%c2_109, %c0_110, %c0_111] : memref<4x16x8xf32, #tpu.memory_space<vmem>>, vector<1x16x8xf32>
      %179 = vector.shape_cast %178 : vector<1x16x8xf32> to vector<16x8xf32>
      %c2_112 = arith.constant 2 : index
      %c0_113 = arith.constant 0 : index
      %c0_114 = arith.constant 0 : index
      %180 = vector.load %arg8[%c2_112, %c0_113, %c0_114] : memref<4x16x1xf32, #tpu.memory_space<vmem>>, vector<1x16x1xf32>
      %181 = vector.shape_cast %180 : vector<1x16x1xf32> to vector<16x1xf32>
      %182 = tpu.reciprocal %181 {approx = true} : vector<16x1xf32> -> vector<16x1xf32>
      %183 = vector.broadcast %182 : vector<16x1xf32> to vector<16x8xf32>
      %184 = arith.mulf %179, %183 : vector<16x8xf32>
      %c3_115 = arith.constant 3 : index
      %c0_116 = arith.constant 0 : index
      %c0_117 = arith.constant 0 : index
      %185 = vector.load %arg9[%c3_115, %c0_116, %c0_117] : memref<4x16x8xf32, #tpu.memory_space<vmem>>, vector<1x16x8xf32>
      %186 = vector.shape_cast %185 : vector<1x16x8xf32> to vector<16x8xf32>
      %c3_118 = arith.constant 3 : index
      %c0_119 = arith.constant 0 : index
      %c0_120 = arith.constant 0 : index
      %187 = vector.load %arg8[%c3_118, %c0_119, %c0_120] : memref<4x16x1xf32, #tpu.memory_space<vmem>>, vector<1x16x1xf32>
      %188 = vector.shape_cast %187 : vector<1x16x1xf32> to vector<16x1xf32>
      %189 = tpu.reciprocal %188 {approx = true} : vector<16x1xf32> -> vector<16x1xf32>
      %190 = vector.broadcast %189 : vector<16x1xf32> to vector<16x8xf32>
      %191 = arith.mulf %186, %190 : vector<16x8xf32>
      %192 = tpu.concatenate %170, %177, %184, %191 in 1 : vector<16x8xf32>, vector<16x8xf32>, vector<16x8xf32>, vector<16x8xf32> -> vector<16x32xf32>
      %193 = vector.shape_cast %192 : vector<16x32xf32> to vector<1x1x16x32xf32>
      %c0_121 = arith.constant 0 : index
      %c0_122 = arith.constant 0 : index
      %c0_123 = arith.constant 0 : index
      %c0_124 = arith.constant 0 : index
      %194 = vector.load %arg6[%c0_121, %c0_122, %c0_123, %c0_124] : memref<1x1x16x32xf32, #tpu.memory_space<vmem>>, vector<1x1x16x32xf32>
      tpu.vector_store %arg6[%c0_121, %c0_122, %c0_123, %c0_124], %193 {strides = array<i32>} : memref<1x1x16x32xf32, #tpu.memory_space<vmem>>, vector<1x1x16x32xf32>,
    } else {
    }
    return
  }
  func.func @transform_0(%arg0: i32, %arg1: i32, %arg2: i32, %arg3: memref<16xi32, #tpu.memory_space<smem>>) -> (i32, i32, i32, i32) {
    %c0_i32 = arith.constant 0 : i32
    %c0_i32_0 = arith.constant 0 : i32
    %c0_i32_1 = arith.constant 0 : i32
    return %arg0, %arg1, %c0_i32, %c0_i32_0 : i32, i32, i32, i32
  }
  func.func @transform_1(%arg0: i32, %arg1: i32, %arg2: i32, %arg3: memref<16xi32, #tpu.memory_space<smem>>) -> (i32, i32, i32, i32) {
    %c4_i32 = arith.constant 4 : i32
    %0 = arith.muli %arg0, %c4_i32 : i32
    %1 = arith.addi %0, %arg1 : i32
    %c2_i32 = arith.constant 2 : i32
    %2 = arith.muli %1, %c2_i32 : i32
    %3 = arith.addi %2, %arg2 : i32
    %4 = arith.index_cast %3 : i32 to index
    %5 = memref.load %arg3[%4] : memref<16xi32, #tpu.memory_space<smem>>
    %c0_i32 = arith.constant 0 : i32
    %c0_i32_0 = arith.constant 0 : i32
    %c0_i32_1 = arith.constant 0 : i32
    return %arg0, %5, %c0_i32, %c0_i32_0 : i32, i32, i32, i32
  }
  func.func @transform_2(%arg0: i32, %arg1: i32, %arg2: i32, %arg3: memref<16xi32, #tpu.memory_space<smem>>) -> (i32, i32, i32, i32) {
    %c0_i32 = arith.constant 0 : i32
    %c0_i32_0 = arith.constant 0 : i32
    %c0_i32_1 = arith.constant 0 : i32
    return %arg0, %arg1, %c0_i32, %c0_i32_0 : i32, i32, i32, i32
  }
}

</mosaic_0001>

<llo_original>
// kernel: attention_forward.4
$region0: #{attention_forward.4}
  #allocation0 [shape = 'u32[]', space=smem, size = 0x4, offset = 0x4, fixed_abs, tag = 'smem constant byte address 0x4 - core index']
  #allocation1 [shape = 'u32[144,128]{1,0:T(1,128)}', space=vmem, size = 0x12000, scoped, tag = 'internal scratch']
  %s0 = inlined_call_operand.vmem [shape: f32[128,32], index: 0, kind: input, shape index: {}]
  %s1 = inlined_call_operand.vmem [shape: f32[32,96], index: 1, kind: input, shape index: {}]
  %s2 = inlined_call_operand.vmem [shape: f32[1,96], index: 2, kind: input, shape index: {}]
  %s3 = inlined_call_operand.vmem [shape: f32[128,96], index: 3, kind: output, shape index: {}]
  %s4 = sld [smem:[#allocation0]]
  $region22: #{attention_forward.4} parent=0
    _
  %s6 = ssub.s32 1, %s4
  %s7 = scalar_select 0, %s6, %s4
  // Predicated region
  $region2: #{attention_forward.4} parent=0 // pred_check
    _
  $region3: #{attention_forward.4} parent=0 // pred_check_branch
    %9 = sbr.rel (0) target = $region5
  $region4: #{attention_forward.4} parent=0 // pred_region
    _
  $region5: #{attention_forward.4} parent=0 // pred_fallthru
    _
  // Predicated region
  $region6: #{attention_forward.4} parent=0 // pred_check
    _
  $region7: #{attention_forward.4} parent=0 // pred_check_branch
    %11 = sbr.rel (0) target = $region9
  $region8: #{attention_forward.4} parent=0 // pred_region
    _
  $region9: #{attention_forward.4} parent=0 // pred_fallthru
    _
  // Predicated region
  $region10: #{attention_forward.4} parent=0 // pred_check
    _
  $region11: #{attention_forward.4} parent=0 // pred_check_branch
    %13 = sbr.rel (0) target = $region13
  $region12: #{attention_forward.4} parent=0 // pred_region
    _
  $region13: #{attention_forward.4} parent=0 // pred_fallthru
    _
  %v14 = vld [vmem:[%s0] sm:$0xff]
  %v15 = vld [vmem:[%s0 + $0x8] sm:$0xff]
  %v16 = vld [vmem:[%s0 + $0x10] sm:$0xff]
  %v17 = vld [vmem:[%s0 + $0x18] sm:$0xff]
  %v18 = vld [vmem:[%s0 + $0x20] sm:$0xff]
  %v19 = vld [vmem:[%s0 + $0x28] sm:$0xff]
  %v20 = vld [vmem:[%s0 + $0x30] sm:$0xff]
  %v21 = vld [vmem:[%s0 + $0x38] sm:$0xff]
  %v22 = vld [vmem:[%s0 + $0x40] sm:$0xff]
  %v23 = vld [vmem:[%s0 + $0x48] sm:$0xff]
  %v24 = vld [vmem:[%s0 + $0x50] sm:$0xff]
  %v25 = vld [vmem:[%s0 + $0x58] sm:$0xff]
  %v26 = vld [vmem:[%s0 + $0x60] sm:$0xff]
  %v27 = vld [vmem:[%s0 + $0x68] sm:$0xff]
  %v28 = vld [vmem:[%s0 + $0x70] sm:$0xff]
  %v29 = vld [vmem:[%s0 + $0x78] sm:$0xff]
  %v30 = vld [vmem:[%s1] sm:$0xff]
  %v31 = vld [vmem:[%s1 + $0x8] sm:$0xff]
  %v32 = vld [vmem:[%s1 + $0x10] sm:$0xff]
  %v33 = vld [vmem:[%s1 + $0x18] sm:$0xff]
  %v34 = vld [vmem:[%s2] sm:$0x1]
  %v36 = vlaneseq
  %v37 = vshrl.u32 %v36, 7
  %v38 = vsub.s32 0, %v37
  %v39 = vrot.slane %v34, %v38
  %vm41 = vcmask 261120
  %v43 = vsel %vm41, %v14, 0
  %v46 = vsel %vm41, %v15, 0
  %v49 = vsel %vm41, %v16, 0
  %v52 = vsel %vm41, %v17, 0
  %v55 = vsel %vm41, %v18, 0
  %v58 = vsel %vm41, %v19, 0
  %v61 = vsel %vm41, %v20, 0
  %v64 = vsel %vm41, %v21, 0
  %v67 = vsel %vm41, %v22, 0
  %v70 = vsel %vm41, %v23, 0
  %v73 = vsel %vm41, %v24, 0
  %v76 = vsel %vm41, %v25, 0
  %v79 = vsel %vm41, %v26, 0
  %v82 = vsel %vm41, %v27, 0
  %v85 = vsel %vm41, %v28, 0
  %v88 = vsel %vm41, %v29, 0
  %90 = vmatprep.subr.mxu0 0.0
  %91 = vmatpush1.msra.mxu0 %v30
  %92 = vmatprep.subr.mxu0 0.0
  %93 = vmatpush1.msra.mxu0 %v31
  %94 = vmatprep.subr.mxu0 0.0
  %95 = vmatpush1.msra.mxu0 %v32
  %96 = vmatprep.subr.mxu0 0.0
  %97 = vmatpush1.msra.mxu0 %v33
  %98 = vmatprep.subr.mxu0 0.0
  %99 = vmatpush1.msra.mxu0 0.0
  %100 = vmatprep.subr.mxu0 0.0
  %101 = vmatpush1.msra.mxu0 0.0
  %102 = vmatprep.subr.mxu0 0.0
  %103 = vmatpush1.msra.mxu0 0.0
  %104 = vmatprep.subr.mxu0 0.0
  %105 = vmatpush1.msra.mxu0 0.0
  %106 = vmatprep.subr.mxu0 0.0
  %107 = vmatpush1.msra.mxu0 0.0
  %108 = vmatprep.subr.mxu0 0.0
  %109 = vmatpush1.msra.mxu0 0.0
  %110 = vmatprep.subr.mxu0 0.0
  %111 = vmatpush1.msra.mxu0 0.0
  %112 = vmatprep.subr.mxu0 0.0
  %113 = vmatpush1.msra.mxu0 0.0
  %114 = vmatprep.subr.mxu0 0.0
  %115 = vmatpush1.msra.mxu0 0.0
  %116 = vmatprep.subr.mxu0 0.0
  %117 = vmatpush1.msra.mxu0 0.0
  %118 = vmatprep.subr.mxu0 0.0
  %119 = vmatpush1.msra.mxu0 0.0
  %120 = vmatprep.subr.mxu0 0.0
  %121 = vmatpush1.msra.mxu0 0.0
  %122 = vmatprep.subr.mxu0 0.0
  %123 = vmatpush1.msra.mxu0 0.0
  %124 = vmatprep.subr.mxu0 0.0
  %125 = vmatpush1.msra.mxu0 0.0
  %126 = vmatprep.subr.mxu0 0.0
  %127 = vmatpush1.msra.mxu0 0.0
  %128 = vmatprep.subr.mxu0 0.0
  %129 = vmatpush1.msra.mxu0 0.0
  %130 = vmatprep.subr.mxu0 0.0
  %131 = vmatpush1.msra.mxu0 0.0
  %132 = vmatprep.subr.mxu0 0.0
  %133 = vmatpush1.msra.mxu0 0.0
  %134 = vmatprep.subr.mxu0 0.0
  %135 = vmatpush1.msra.mxu0 0.0
  %136 = vmatprep.subr.mxu0 0.0
  %137 = vmatpush1.msra.mxu0 0.0
  %138 = vmatprep.subr.mxu0 0.0
  %139 = vmatpush1.msra.mxu0 0.0
  %140 = vmatprep.subr.mxu0 0.0
  %141 = vmatpush1.msra.mxu0 0.0
  %142 = vmatprep.subr.mxu0 0.0
  %143 = vmatpush1.msra.mxu0 0.0
  %144 = vmatprep.subr.mxu0 0.0
  %145 = vmatpush1.msra.mxu0 0.0
  %146 = vmatprep.subr.mxu0 0.0
  %147 = vmatpush1.msra.mxu0 0.0
  %148 = vmatprep.subr.mxu0 0.0
  %149 = vmatpush1.msra.mxu0 0.0
  %150 = vmatprep.subr.mxu0 0.0
  %151 = vmatpush1.msra.mxu0 0.0
  %152 = vmatprep.subr.mxu0 0.0
  %153 = vmatpush1.msra.mxu0 0.0
  %154 = vmatprep.mubr.f32.mxu0 0.0
  %155 = vmatmul.mubr.f32.gmra.mrb[0].mxu0 %v43
  %v156 = vpop.f32.mrb[0].mxu0
  %v157 = vadd.f32 %v39, %v156
  %v158 = vpop.f32.mrb[0].mxu0
  %159 = vmatprep.mubr.f32.mxu0 0.0
  %160 = vmatmul.mubr.f32.gmra.mrb[0].mxu0 %v46
  %v161 = vpop.f32.mrb[0].mxu0
  %v162 = vadd.f32 %v39, %v161
  %v163 = vpop.f32.mrb[0].mxu0
  %164 = vmatprep.mubr.f32.mxu0 0.0
  %165 = vmatmul.mubr.f32.gmra.mrb[0].mxu0 %v49
  %v166 = vpop.f32.mrb[0].mxu0
  %v167 = vadd.f32 %v39, %v166
  %v168 = vpop.f32.mrb[0].mxu0
  %169 = vmatprep.mubr.f32.mxu0 0.0
  %170 = vmatmul.mubr.f32.gmra.mrb[0].mxu0 %v52
  %v171 = vpop.f32.mrb[0].mxu0
  %v172 = vadd.f32 %v39, %v171
  %v173 = vpop.f32.mrb[0].mxu0
  %174 = vmatprep.mubr.f32.mxu0 0.0
  %175 = vmatmul.mubr.f32.gmra.mrb[0].mxu0 %v55
  %v176 = vpop.f32.mrb[0].mxu0
  %v177 = vadd.f32 %v39, %v176
  %v178 = vpop.f32.mrb[0].mxu0
  %179 = vmatprep.mubr.f32.mxu0 0.0
  %180 = vmatmul.mubr.f32.gmra.mrb[0].mxu0 %v58
  %v181 = vpop.f32.mrb[0].mxu0
  %v182 = vadd.f32 %v39, %v181
  %v183 = vpop.f32.mrb[0].mxu0
  %184 = vmatprep.mubr.f32.mxu0 0.0
  %185 = vmatmul.mubr.f32.gmra.mrb[0].mxu0 %v61
  %v186 = vpop.f32.mrb[0].mxu0
  %v187 = vadd.f32 %v39, %v186
  %v188 = vpop.f32.mrb[0].mxu0
  %189 = vmatprep.mubr.f32.mxu0 0.0
  %190 = vmatmul.mubr.f32.gmra.mrb[0].mxu0 %v64
  %v191 = vpop.f32.mrb[0].mxu0
  %v192 = vadd.f32 %v39, %v191
  %v193 = vpop.f32.mrb[0].mxu0
  %194 = vmatprep.mubr.f32.mxu0 0.0
  %195 = vmatmul.mubr.f32.gmra.mrb[0].mxu0 %v67
  %v196 = vpop.f32.mrb[0].mxu0
  %v197 = vadd.f32 %v39, %v196
  %v198 = vpop.f32.mrb[0].mxu0
  %199 = vmatprep.mubr.f32.mxu0 0.0
  %200 = vmatmul.mubr.f32.gmra.mrb[0].mxu0 %v70
  %v201 = vpop.f32.mrb[0].mxu0
  %v202 = vadd.f32 %v39, %v201
  %v203 = vpop.f32.mrb[0].mxu0
  %204 = vmatprep.mubr.f32.mxu0 0.0
  %205 = vmatmul.mubr.f32.gmra.mrb[0].mxu0 %v73
  %v206 = vpop.f32.mrb[0].mxu0
  %v207 = vadd.f32 %v39, %v206
  %v208 = vpop.f32.mrb[0].mxu0
  %209 = vmatprep.mubr.f32.mxu0 0.0
  %210 = vmatmul.mubr.f32.gmra.mrb[0].mxu0 %v76
  %v211 = vpop.f32.mrb[0].mxu0
  %v212 = vadd.f32 %v39, %v211
  %v213 = vpop.f32.mrb[0].mxu0
  %214 = vmatprep.mubr.f32.mxu0 0.0
  %215 = vmatmul.mubr.f32.gmra.mrb[0].mxu0 %v79
  %v216 = vpop.f32.mrb[0].mxu0
  %v217 = vadd.f32 %v39, %v216
  %v218 = vpop.f32.mrb[0].mxu0
  %219 = vmatprep.mubr.f32.mxu0 0.0
  %220 = vmatmul.mubr.f32.gmra.mrb[0].mxu0 %v82
  %v221 = vpop.f32.mrb[0].mxu0
  %v222 = vadd.f32 %v39, %v221
  %v223 = vpop.f32.mrb[0].mxu0
  %224 = vmatprep.mubr.f32.mxu0 0.0
  %225 = vmatmul.mubr.f32.gmra.mrb[0].mxu0 %v85
  %v226 = vpop.f32.mrb[0].mxu0
  %v227 = vadd.f32 %v39, %v226
  %v228 = vpop.f32.mrb[0].mxu0
  %229 = vmatprep.mubr.f32.mxu0 0.0
  %230 = vmatmul.mubr.f32.gmra.mrb[0].mxu0 %v88
  %v231 = vpop.f32.mrb[0].mxu0
  %v232 = vadd.f32 %v39, %v231
  %v233 = vpop.f32.mrb[0].mxu0
  %234 = vdwg.mxu0
  %vm235 = vcmask 785408
  %236 = vst.msk [vmem:[%s3] sm:$0xff] %vm235, %v157
  %237 = vst.msk [vmem:[%s3 + $0x8] sm:$0xff] %vm235, %v162
  %238 = vst.msk [vmem:[%s3 + $0x10] sm:$0xff] %vm235, %v167
  %239 = vst.msk [vmem:[%s3 + $0x18] sm:$0xff] %vm235, %v172
  %240 = vst.msk [vmem:[%s3 + $0x20] sm:$0xff] %vm235, %v177
  %241 = vst.msk [vmem:[%s3 + $0x28] sm:$0xff] %vm235, %v182
  %242 = vst.msk [vmem:[%s3 + $0x30] sm:$0xff] %vm235, %v187
  %243 = vst.msk [vmem:[%s3 + $0x38] sm:$0xff] %vm235, %v192
  %244 = vst.msk [vmem:[%s3 + $0x40] sm:$0xff] %vm235, %v197
  %245 = vst.msk [vmem:[%s3 + $0x48] sm:$0xff] %vm235, %v202
  %246 = vst.msk [vmem:[%s3 + $0x50] sm:$0xff] %vm235, %v207
  %247 = vst.msk [vmem:[%s3 + $0x58] sm:$0xff] %vm235, %v212
  %248 = vst.msk [vmem:[%s3 + $0x60] sm:$0xff] %vm235, %v217
  %249 = vst.msk [vmem:[%s3 + $0x68] sm:$0xff] %vm235, %v222
  %250 = vst.msk [vmem:[%s3 + $0x70] sm:$0xff] %vm235, %v227
  %251 = vst.msk [vmem:[%s3 + $0x78] sm:$0xff] %vm235, %v232
  // Predicated region
  $region14: #{attention_forward.4} parent=0 // pred_check
    _
  $region15: #{attention_forward.4} parent=0 // pred_check_branch
    %253 = sbr.rel (0) target = $region17
  $region16: #{attention_forward.4} parent=0 // pred_region
    _
  $region17: #{attention_forward.4} parent=0 // pred_fallthru
    _
  // Predicated region
  $region18: #{attention_forward.4} parent=0 // pred_check
    _
  $region19: #{attention_forward.4} parent=0 // pred_check_branch
    %255 = sbr.rel (0) target = $region21
  $region20: #{attention_forward.4} parent=0 // pred_region
    _
  $region21: #{attention_forward.4} parent=0 // pred_fallthru
    _

// kernel: attention_forward.7
$region0: #{attention_forward.7}
  #allocation0 [shape = 'u32[]', space=smem, size = 0x4, offset = 0x4, fixed_abs, tag = 'smem constant byte address 0x4 - core index']
  #allocation1 [shape = 'u32[144,128]{1,0:T(1,128)}', space=vmem, size = 0x12000, scoped, tag = 'internal scratch']
  %s0 = inlined_call_operand.vmem [shape: f32[128,32], index: 0, kind: input, shape index: {}]
  %s1 = inlined_call_operand.vmem [shape: f32[128,32], index: 1, kind: input, shape index: {}]
  %s2 = inlined_call_operand.vmem [shape: f32[32,32], index: 2, kind: input, shape index: {}]
  %s3 = inlined_call_operand.vmem [shape: f32[1,32], index: 3, kind: input, shape index: {}]
  %s4 = inlined_call_operand.hbm [shape: f32[128,32], index: 4, kind: output, shape index: {}]
  %s5 = sld [smem:[#allocation0]]
  $region26: #{attention_forward.7} parent=0
    _
  %s7 = ssub.s32 1, %s5
  %s8 = scalar_select 0, %s7, %s5
  $region1: #{attention_forward.7} parent=0
    #allocation2 [shape = 'u8[65536]{0}', space=vmem, size = 0x10000, scoped, tag = 'output window, operand 0, single buffered']
    #allocation3 [shape = 's32[1]{0}', space=sflag, size = 0x4, scoped, tag = 'scoped memory for attention_forward.7']
    %9 = vsyncpa [#allocation3], 0
    // Predicated region
    $region2: #{attention_forward.7} parent=1 // pred_check
      _
    $region3: #{attention_forward.7} parent=1 // pred_check_branch
      %11 = sbr.rel (0) target = $region5
    $region4: #{attention_forward.7} parent=1 // pred_region
      _
    $region5: #{attention_forward.7} parent=1 // pred_fallthru
      _
    // Predicated region
    $region6: #{attention_forward.7} parent=1 // pred_check
      _
    $region7: #{attention_forward.7} parent=1 // pred_check_branch
      %13 = sbr.rel (0) target = $region9
    $region8: #{attention_forward.7} parent=1 // pred_region
      _
    $region9: #{attention_forward.7} parent=1 // pred_fallthru
      _
    // Predicated region
    $region10: #{attention_forward.7} parent=1 // pred_check
      _
    $region11: #{attention_forward.7} parent=1 // pred_check_branch
      %15 = sbr.rel (0) target = $region13
    $region12: #{attention_forward.7} parent=1 // pred_region
      _
    $region13: #{attention_forward.7} parent=1 // pred_fallthru
      _
    // Predicated region
    $region14: #{attention_forward.7} parent=1 // pred_check
      _
    $region15: #{attention_forward.7} parent=1 // pred_check_branch
      %17 = sbr.rel (0) target = $region17
    $region16: #{attention_forward.7} parent=1 // pred_region
      _
    $region17: #{attention_forward.7} parent=1 // pred_fallthru
      _
    %v18 = vld [vmem:[%s0] sm:$0xff]
    %v19 = vld [vmem:[%s0 + $0x8] sm:$0xff]
    %v20 = vld [vmem:[%s0 + $0x10] sm:$0xff]
    %v21 = vld [vmem:[%s0 + $0x18] sm:$0xff]
    %v22 = vld [vmem:[%s0 + $0x20] sm:$0xff]
    %v23 = vld [vmem:[%s0 + $0x28] sm:$0xff]
    %v24 = vld [vmem:[%s0 + $0x30] sm:$0xff]
    %v25 = vld [vmem:[%s0 + $0x38] sm:$0xff]
    %v26 = vld [vmem:[%s0 + $0x40] sm:$0xff]
    %v27 = vld [vmem:[%s0 + $0x48] sm:$0xff]
    %v28 = vld [vmem:[%s0 + $0x50] sm:$0xff]
    %v29 = vld [vmem:[%s0 + $0x58] sm:$0xff]
    %v30 = vld [vmem:[%s0 + $0x60] sm:$0xff]
    %v31 = vld [vmem:[%s0 + $0x68] sm:$0xff]
    %v32 = vld [vmem:[%s0 + $0x70] sm:$0xff]
    %v33 = vld [vmem:[%s0 + $0x78] sm:$0xff]
    %v34 = vld [vmem:[%s1] sm:$0xff]
    %v35 = vld [vmem:[%s1 + $0x8] sm:$0xff]
    %v36 = vld [vmem:[%s1 + $0x10] sm:$0xff]
    %v37 = vld [vmem:[%s1 + $0x18] sm:$0xff]
    %v38 = vld [vmem:[%s1 + $0x20] sm:$0xff]
    %v39 = vld [vmem:[%s1 + $0x28] sm:$0xff]
    %v40 = vld [vmem:[%s1 + $0x30] sm:$0xff]
    %v41 = vld [vmem:[%s1 + $0x38] sm:$0xff]
    %v42 = vld [vmem:[%s1 + $0x40] sm:$0xff]
    %v43 = vld [vmem:[%s1 + $0x48] sm:$0xff]
    %v44 = vld [vmem:[%s1 + $0x50] sm:$0xff]
    %v45 = vld [vmem:[%s1 + $0x58] sm:$0xff]
    %v46 = vld [vmem:[%s1 + $0x60] sm:$0xff]
    %v47 = vld [vmem:[%s1 + $0x68] sm:$0xff]
    %v48 = vld [vmem:[%s1 + $0x70] sm:$0xff]
    %v49 = vld [vmem:[%s1 + $0x78] sm:$0xff]
    %v50 = vadd.f32 %v18, %v34
    %v51 = vadd.f32 %v19, %v35
    %v52 = vadd.f32 %v20, %v36
    %v53 = vadd.f32 %v21, %v37
    %v54 = vadd.f32 %v22, %v38
    %v55 = vadd.f32 %v23, %v39
    %v56 = vadd.f32 %v24, %v40
    %v57 = vadd.f32 %v25, %v41
    %v58 = vadd.f32 %v26, %v42
    %v59 = vadd.f32 %v27, %v43
    %v60 = vadd.f32 %v28, %v44
    %v61 = vadd.f32 %v29, %v45
    %v62 = vadd.f32 %v30, %v46
    %v63 = vadd.f32 %v31, %v47
    %v64 = vadd.f32 %v32, %v48
    %v65 = vadd.f32 %v33, %v49
    %v66 = vld [vmem:[%s2] sm:$0xff]
    %v67 = vld [vmem:[%s2 + $0x8] sm:$0xff]
    %v68 = vld [vmem:[%s2 + $0x10] sm:$0xff]
    %v69 = vld [vmem:[%s2 + $0x18] sm:$0xff]
    %v70 = vld [vmem:[%s3] sm:$0x1]
    %v72 = vlaneseq
    %v73 = vshrl.u32 %v72, 7
    %v74 = vsub.s32 0, %v73
    %v75 = vrot.slane %v70, %v74
    %vm77 = vcmask 261120
    %v79 = vsel %vm77, %v50, 0
    %v82 = vsel %vm77, %v51, 0
    %v85 = vsel %vm77, %v52, 0
    %v88 = vsel %vm77, %v53, 0
    %v91 = vsel %vm77, %v54, 0
    %v94 = vsel %vm77, %v55, 0
    %v97 = vsel %vm77, %v56, 0
    %v100 = vsel %vm77, %v57, 0
    %v103 = vsel %vm77, %v58, 0
    %v106 = vsel %vm77, %v59, 0
    %v109 = vsel %vm77, %v60, 0
    %v112 = vsel %vm77, %v61, 0
    %v115 = vsel %vm77, %v62, 0
    %v118 = vsel %vm77, %v63, 0
    %v121 = vsel %vm77, %v64, 0
    %v124 = vsel %vm77, %v65, 0
    %126 = vmatprep.subr.mxu0 0.0
    %127 = vmatpush1.msra.mxu0 %v66
    %128 = vmatprep.subr.mxu0 0.0
    %129 = vmatpush1.msra.mxu0 %v67
    %130 = vmatprep.subr.mxu0 0.0
    %131 = vmatpush1.msra.mxu0 %v68
    %132 = vmatprep.subr.mxu0 0.0
    %133 = vmatpush1.msra.mxu0 %v69
    %134 = vmatprep.subr.mxu0 0.0
    %135 = vmatpush1.msra.mxu0 0.0
    %136 = vmatprep.subr.mxu0 0.0
    %137 = vmatpush1.msra.mxu0 0.0
    %138 = vmatprep.subr.mxu0 0.0
    %139 = vmatpush1.msra.mxu0 0.0
    %140 = vmatprep.subr.mxu0 0.0
    %141 = vmatpush1.msra.mxu0 0.0
    %142 = vmatprep.subr.mxu0 0.0
    %143 = vmatpush1.msra.mxu0 0.0
    %144 = vmatprep.subr.mxu0 0.0
    %145 = vmatpush1.msra.mxu0 0.0
    %146 = vmatprep.subr.mxu0 0.0
    %147 = vmatpush1.msra.mxu0 0.0
    %148 = vmatprep.subr.mxu0 0.0
    %149 = vmatpush1.msra.mxu0 0.0
    %150 = vmatprep.subr.mxu0 0.0
    %151 = vmatpush1.msra.mxu0 0.0
    %152 = vmatprep.subr.mxu0 0.0
    %153 = vmatpush1.msra.mxu0 0.0
    %154 = vmatprep.subr.mxu0 0.0
    %155 = vmatpush1.msra.mxu0 0.0
    %156 = vmatprep.subr.mxu0 0.0
    %157 = vmatpush1.msra.mxu0 0.0
    %158 = vmatprep.subr.mxu0 0.0
    %159 = vmatpush1.msra.mxu0 0.0
    %160 = vmatprep.subr.mxu0 0.0
    %161 = vmatpush1.msra.mxu0 0.0
    %162 = vmatprep.subr.mxu0 0.0
    %163 = vmatpush1.msra.mxu0 0.0
    %164 = vmatprep.subr.mxu0 0.0
    %165 = vmatpush1.msra.mxu0 0.0
    %166 = vmatprep.subr.mxu0 0.0
    %167 = vmatpush1.msra.mxu0 0.0
    %168 = vmatprep.subr.mxu0 0.0
    %169 = vmatpush1.msra.mxu0 0.0
    %170 = vmatprep.subr.mxu0 0.0
    %171 = vmatpush1.msra.mxu0 0.0
    %172 = vmatprep.subr.mxu0 0.0
    %173 = vmatpush1.msra.mxu0 0.0
    %174 = vmatprep.subr.mxu0 0.0
    %175 = vmatpush1.msra.mxu0 0.0
    %176 = vmatprep.subr.mxu0 0.0
    %177 = vmatpush1.msra.mxu0 0.0
    %178 = vmatprep.subr.mxu0 0.0
    %179 = vmatpush1.msra.mxu0 0.0
    %180 = vmatprep.subr.mxu0 0.0
    %181 = vmatpush1.msra.mxu0 0.0
    %182 = vmatprep.subr.mxu0 0.0
    %183 = vmatpush1.msra.mxu0 0.0
    %184 = vmatprep.subr.mxu0 0.0
    %185 = vmatpush1.msra.mxu0 0.0
    %186 = vmatprep.subr.mxu0 0.0
    %187 = vmatpush1.msra.mxu0 0.0
    %188 = vmatprep.subr.mxu0 0.0
    %189 = vmatpush1.msra.mxu0 0.0
    %190 = vmatprep.mubr.f32.mxu0 0.0
    %191 = vmatmul.mubr.f32.gmra.mrb[0].mxu0 %v79
    %v192 = vpop.f32.mrb[0].mxu0
    %v193 = vadd.f32 %v75, %v192
    %v194 = vpop.f32.mrb[0].mxu0
    %195 = vmatprep.mubr.f32.mxu0 0.0
    %196 = vmatmul.mubr.f32.gmra.mrb[0].mxu0 %v82
    %v197 = vpop.f32.mrb[0].mxu0
    %v198 = vadd.f32 %v75, %v197
    %v199 = vpop.f32.mrb[0].mxu0
    %200 = vmatprep.mubr.f32.mxu0 0.0
    %201 = vmatmul.mubr.f32.gmra.mrb[0].mxu0 %v85
    %v202 = vpop.f32.mrb[0].mxu0
    %v203 = vadd.f32 %v75, %v202
    %v204 = vpop.f32.mrb[0].mxu0
    %205 = vmatprep.mubr.f32.mxu0 0.0
    %206 = vmatmul.mubr.f32.gmra.mrb[0].mxu0 %v88
    %v207 = vpop.f32.mrb[0].mxu0
    %v208 = vadd.f32 %v75, %v207
    %v209 = vpop.f32.mrb[0].mxu0
    %210 = vmatprep.mubr.f32.mxu0 0.0
    %211 = vmatmul.mubr.f32.gmra.mrb[0].mxu0 %v91
    %v212 = vpop.f32.mrb[0].mxu0
    %v213 = vadd.f32 %v75, %v212
    %v214 = vpop.f32.mrb[0].mxu0
    %215 = vmatprep.mubr.f32.mxu0 0.0
    %216 = vmatmul.mubr.f32.gmra.mrb[0].mxu0 %v94
    %v217 = vpop.f32.mrb[0].mxu0
    %v218 = vadd.f32 %v75, %v217
    %v219 = vpop.f32.mrb[0].mxu0
    %220 = vmatprep.mubr.f32.mxu0 0.0
    %221 = vmatmul.mubr.f32.gmra.mrb[0].mxu0 %v97
    %v222 = vpop.f32.mrb[0].mxu0
    %v223 = vadd.f32 %v75, %v222
    %v224 = vpop.f32.mrb[0].mxu0
    %225 = vmatprep.mubr.f32.mxu0 0.0
    %226 = vmatmul.mubr.f32.gmra.mrb[0].mxu0 %v100
    %v227 = vpop.f32.mrb[0].mxu0
    %v228 = vadd.f32 %v75, %v227
    %v229 = vpop.f32.mrb[0].mxu0
    %230 = vmatprep.mubr.f32.mxu0 0.0
    %231 = vmatmul.mubr.f32.gmra.mrb[0].mxu0 %v103
    %v232 = vpop.f32.mrb[0].mxu0
    %v233 = vadd.f32 %v75, %v232
    %v234 = vpop.f32.mrb[0].mxu0
    %235 = vmatprep.mubr.f32.mxu0 0.0
    %236 = vmatmul.mubr.f32.gmra.mrb[0].mxu0 %v106
    %v237 = vpop.f32.mrb[0].mxu0
    %v238 = vadd.f32 %v75, %v237
    %v239 = vpop.f32.mrb[0].mxu0
    %240 = vmatprep.mubr.f32.mxu0 0.0
    %241 = vmatmul.mubr.f32.gmra.mrb[0].mxu0 %v109
    %v242 = vpop.f32.mrb[0].mxu0
    %v243 = vadd.f32 %v75, %v242
    %v244 = vpop.f32.mrb[0].mxu0
    %245 = vmatprep.mubr.f32.mxu0 0.0
    %246 = vmatmul.mubr.f32.gmra.mrb[0].mxu0 %v112
    %v247 = vpop.f32.mrb[0].mxu0
    %v248 = vadd.f32 %v75, %v247
    %v249 = vpop.f32.mrb[0].mxu0
    %250 = vmatprep.mubr.f32.mxu0 0.0
    %251 = vmatmul.mubr.f32.gmra.mrb[0].mxu0 %v115
    %v252 = vpop.f32.mrb[0].mxu0
    %v253 = vadd.f32 %v75, %v252
    %v254 = vpop.f32.mrb[0].mxu0
    %255 = vmatprep.mubr.f32.mxu0 0.0
    %256 = vmatmul.mubr.f32.gmra.mrb[0].mxu0 %v118
    %v257 = vpop.f32.mrb[0].mxu0
    %v258 = vadd.f32 %v75, %v257
    %v259 = vpop.f32.mrb[0].mxu0
    %260 = vmatprep.mubr.f32.mxu0 0.0
    %261 = vmatmul.mubr.f32.gmra.mrb[0].mxu0 %v121
    %v262 = vpop.f32.mrb[0].mxu0
    %v263 = vadd.f32 %v75, %v262
    %v264 = vpop.f32.mrb[0].mxu0
    %265 = vmatprep.mubr.f32.mxu0 0.0
    %266 = vmatmul.mubr.f32.gmra.mrb[0].mxu0 %v124
    %v267 = vpop.f32.mrb[0].mxu0
    %v268 = vadd.f32 %v75, %v267
    %v269 = vpop.f32.mrb[0].mxu0
    %270 = vdwg.mxu0
    %271 = vst.msk [vmem:[#allocation2] sm:$0xff] %vm77, %v193
    %272 = vst.msk [vmem:[#allocation2 + $0x8] sm:$0xff] %vm77, %v198
    %273 = vst.msk [vmem:[#allocation2 + $0x10] sm:$0xff] %vm77, %v203
    %274 = vst.msk [vmem:[#allocation2 + $0x18] sm:$0xff] %vm77, %v208
    %275 = vst.msk [vmem:[#allocation2 + $0x20] sm:$0xff] %vm77, %v213
    %276 = vst.msk [vmem:[#allocation2 + $0x28] sm:$0xff] %vm77, %v218
    %277 = vst.msk [vmem:[#allocation2 + $0x30] sm:$0xff] %vm77, %v223
    %278 = vst.msk [vmem:[#allocation2 + $0x38] sm:$0xff] %vm77, %v228
    %279 = vst.msk [vmem:[#allocation2 + $0x40] sm:$0xff] %vm77, %v233
    %280 = vst.msk [vmem:[#allocation2 + $0x48] sm:$0xff] %vm77, %v238
    %281 = vst.msk [vmem:[#allocation2 + $0x50] sm:$0xff] %vm77, %v243
    %282 = vst.msk [vmem:[#allocation2 + $0x58] sm:$0xff] %vm77, %v248
    %283 = vst.msk [vmem:[#allocation2 + $0x60] sm:$0xff] %vm77, %v253
    %284 = vst.msk [vmem:[#allocation2 + $0x68] sm:$0xff] %vm77, %v258
    %285 = vst.msk [vmem:[#allocation2 + $0x70] sm:$0xff] %vm77, %v263
    %286 = vst.msk [vmem:[#allocation2 + $0x78] sm:$0xff] %vm77, %v268
    // Predicated region
    $region18: #{attention_forward.7} parent=1 // pred_check
      _
    $region19: #{attention_forward.7} parent=1 // pred_check_branch
      %288 = sbr.rel (0) target = $region21
    $region20: #{attention_forward.7} parent=1 // pred_region
      %s290 = ssub.s32 2048, 2048
      %291 = vsyncadd [#allocation3], %s290
      %s292 = sshll.u32 [#allocation2], 4
      %s293 = int_to_ptr.vmem [resolvable:$true] %s292
      %298 = dma.vmem_to_hbm [thread:$0]  %s293, 2048, %s4, [#allocation3], 128, 128, 8
    $region21: #{attention_forward.7} parent=1 // pred_fallthru
      _
    // Predicated region
    $region22: #{attention_forward.7} parent=1 // pred_check
      _
    $region23: #{attention_forward.7} parent=1 // pred_check_branch
      %300 = sbr.rel (0) target = $region25
    $region24: #{attention_forward.7} parent=1 // pred_region
      %301 = dma.done [#allocation3], 2048
    $region25: #{attention_forward.7} parent=1 // pred_fallthru
      _
    %302 = vsyncpa [#allocation3], 1

// kernel: attention_forward.5
$region0: #{attention_forward.5}
  #allocation0 [shape = 'u32[]', space=smem, size = 0x4, offset = 0x4, fixed_abs, tag = 'smem constant byte address 0x4 - core index']
  #allocation1 [shape = 'u32[144,128]{1,0:T(1,128)}', space=vmem, size = 0x12000, scoped, tag = 'internal scratch']
  %s0 = inlined_call_operand.vmem [shape: f32[2,10,10,32], index: 0, kind: input, shape index: {}]
  %s1 = inlined_call_operand.vmem [shape: f32[3,3,32], index: 1, kind: input, shape index: {}]
  %s2 = inlined_call_operand.vmem [shape: f32[1,32], index: 2, kind: input, shape index: {}]
  %s3 = inlined_call_operand.vmem [shape: f32[2,8,8,32], index: 3, kind: output, shape index: {}]
  %s4 = sld [smem:[#allocation0]]
  $region45: #{attention_forward.5} parent=0
    _
  %s6 = ssub.s32 1, %s4
  %s7 = scalar_select 0, %s6, %s4
  loop: start=0, step=1, limit=4
  $region2: #{attention_forward.5} parent=0 // loop_pre_header
    _
  $region3: #{attention_forward.5} parent=0 // loop_header
    %s9 = sphi 0, %s13
    %p10 = scmp.ge.s32.totalorder %s9, 4
    %s19 = sphi 0, %s21
    %s22 = sphi 0, %s19
    %s23 = sphi 0, %s22
    %s39 = sphi 0, %s23
    %s43 = sphi 0, %s43
    %s45 = sphi 0, %s43
    %s46 = sphi 0, %s45
    %s60 = sphi 0, %s46
    %s64 = sphi 0, %s64
    %s66 = sphi 0, %s64
    %s67 = sphi 0, %s66
    %s81 = sphi 0, %s67
    %s87 = sphi 0, %s89
    %s90 = sphi 0, %s87
    %s91 = sphi 0, %s90
    %s107 = sphi 0, %s91
  $region4: #{attention_forward.5} parent=0 // loop_header_branch
    %12 = sbr.rel (%p10) target = $region8
  $region5: #{attention_forward.5} parent=0 // loop_body
    %s14 = ssub.s32 %s9, 1
    %s15 = ssub.s32 %s9, 2
    %s16 = sadd.s32 %s9, 1
    %s17 = ssub.s32 %s9, %s16
    %p18 = scmp.eq.s32.totalorder %s17, 0
    %s20 = sadd.s32 %s19, 1
    %s21 = scalar_select %p18, %s19, %s20
    %p24 = pneg %p18
    %p25 = scmp.eq.s32.totalorder %s9, 1
    %p26 = por %p24, %p25
    %p27 = scmp.ne.s32.totalorder %s19, %s22
    %p28 = scmp.eq.s32.totalorder %s9, 0
    %p29 = por %p27, %p28
    %p30 = scmp.ne.s32.totalorder %s19, %s22
    %p31 = scmp.eq.s32.totalorder %s14, 1
    %p32 = por %p30, %p31
    %p33 = scmp.ne.s32.totalorder %s22, %s23
    %p34 = scmp.eq.s32.totalorder %s14, 0
    %p35 = por %p33, %p34
    %p36 = scmp.ne.s32.totalorder %s22, %s23
    %p37 = scmp.eq.s32.totalorder %s15, 1
    %p38 = por %p36, %p37
    %p40 = scmp.ne.s32.totalorder %s23, %s39
    %p41 = scmp.eq.s32.totalorder %s15, 0
    %p42 = por %p40, %p41
    %s44 = sadd.s32 %s43, 1
    %p47 = scmp.eq.s32.totalorder %s9, 1
    %p48 = scmp.ne.s32.totalorder %s43, %s45
    %p49 = scmp.eq.s32.totalorder %s9, 0
    %p50 = por %p48, %p49
    %p51 = scmp.ne.s32.totalorder %s43, %s45
    %p52 = scmp.eq.s32.totalorder %s14, 1
    %p53 = por %p51, %p52
    %p54 = scmp.ne.s32.totalorder %s45, %s46
    %p55 = scmp.eq.s32.totalorder %s14, 0
    %p56 = por %p54, %p55
    %p57 = scmp.ne.s32.totalorder %s45, %s46
    %p58 = scmp.eq.s32.totalorder %s15, 1
    %p59 = por %p57, %p58
    %p61 = scmp.ne.s32.totalorder %s46, %s60
    %p62 = scmp.eq.s32.totalorder %s15, 0
    %p63 = por %p61, %p62
    %s65 = sadd.s32 %s64, 1
    %p68 = scmp.eq.s32.totalorder %s9, 1
    %p69 = scmp.ne.s32.totalorder %s64, %s66
    %p70 = scmp.eq.s32.totalorder %s9, 0
    %p71 = por %p69, %p70
    %p72 = scmp.ne.s32.totalorder %s64, %s66
    %p73 = scmp.eq.s32.totalorder %s14, 1
    %p74 = por %p72, %p73
    %p75 = scmp.ne.s32.totalorder %s66, %s67
    %p76 = scmp.eq.s32.totalorder %s14, 0
    %p77 = por %p75, %p76
    %p78 = scmp.ne.s32.totalorder %s66, %s67
    %p79 = scmp.eq.s32.totalorder %s15, 1
    %p80 = por %p78, %p79
    %p82 = scmp.ne.s32.totalorder %s67, %s81
    %p83 = scmp.eq.s32.totalorder %s15, 0
    %p84 = por %p82, %p83
    %s85 = ssub.s32 %s9, %s16
    %p86 = scmp.eq.s32.totalorder %s85, 0
    %s88 = sadd.s32 %s87, 1
    %s89 = scalar_select %p86, %s87, %s88
    %p92 = pneg %p86
    %p93 = scmp.eq.s32.totalorder %s9, 1
    %p94 = por %p92, %p93
    %p95 = scmp.ne.s32.totalorder %s87, %s90
    %p96 = scmp.eq.s32.totalorder %s9, 0
    %p97 = por %p95, %p96
    %p98 = scmp.ne.s32.totalorder %s87, %s90
    %p99 = scmp.eq.s32.totalorder %s14, 1
    %p100 = por %p98, %p99
    %p101 = scmp.ne.s32.totalorder %s90, %s91
    %p102 = scmp.eq.s32.totalorder %s14, 0
    %p103 = por %p101, %p102
    %p104 = scmp.ne.s32.totalorder %s90, %s91
    %p105 = scmp.eq.s32.totalorder %s15, 1
    %p106 = por %p104, %p105
    %p108 = scmp.ne.s32.totalorder %s91, %s107
    %p109 = scmp.eq.s32.totalorder %s15, 0
    %p110 = por %p108, %p109
    %p111 = scmp.le.s32.totalorder 1, %s9
    %p112 = scmp.lt.s32.totalorder %s9, 3
    %p113 = pnand %p111, %p112
    %p114 = pneg %p113
    // Predicated region
    $region9: #{attention_forward.5} parent=5 // pred_check
      _
    $region10: #{attention_forward.5} parent=5 // pred_check_branch
      %116 = sbr.rel (%p113) target = $region12
    $region11: #{attention_forward.5} parent=5 // pred_region
      %s117 = ssub.s32 %s9, 1
      // Predicated region
      $region13: #{attention_forward.5} parent=11 // pred_check
        %p118 = pneg %p56
      $region14: #{attention_forward.5} parent=11 // pred_check_branch
        %120 = sbr.rel (%p118) target = $region16
      $region15: #{attention_forward.5} parent=11 // pred_region
        _
      $region16: #{attention_forward.5} parent=11 // pred_fallthru
        _
      // Predicated region
      $region17: #{attention_forward.5} parent=11 // pred_check
        %p121 = pneg %p77
      $region18: #{attention_forward.5} parent=11 // pred_check_branch
        %123 = sbr.rel (%p121) target = $region20
      $region19: #{attention_forward.5} parent=11 // pred_region
        _
      $region20: #{attention_forward.5} parent=11 // pred_fallthru
        _
    $region12: #{attention_forward.5} parent=5 // pred_fallthru
      _
    %p124 = scmp.lt.s32.totalorder %s9, 2
    // Predicated region
    $region21: #{attention_forward.5} parent=5 // pred_check
      %p125 = pneg %p124
    $region22: #{attention_forward.5} parent=5 // pred_check_branch
      %127 = sbr.rel (%p125) target = $region24
    $region23: #{attention_forward.5} parent=5 // pred_region
      // Predicated region
      $region25: #{attention_forward.5} parent=23 // pred_check
        %p128 = pneg %p29
      $region26: #{attention_forward.5} parent=23 // pred_check_branch
        %130 = sbr.rel (%p128) target = $region28
      $region27: #{attention_forward.5} parent=23 // pred_region
        %p131 = scmp.lt.s32.totalorder %s9, 1
        %s132 = scalar_select %p131, %s9, 1
        %s133 = smul.addr %s132, 20
        %s134 = smul.addr %s133, 8
        %s135 = scalar_lea.vmem %s0, %s134
      $region28: #{attention_forward.5} parent=23 // pred_fallthru
        _
    $region24: #{attention_forward.5} parent=5 // pred_fallthru
      _
    %p136 = scmp.le.s32.totalorder 1, %s9
    %p137 = scmp.lt.s32.totalorder %s9, 3
    %p138 = pnand %p136, %p137
    %p139 = pneg %p138
    // Predicated region
    $region29: #{attention_forward.5} parent=5 // pred_check
      _
    $region30: #{attention_forward.5} parent=5 // pred_check_branch
      %141 = sbr.rel (%p138) target = $region32
    $region31: #{attention_forward.5} parent=5 // pred_region
      %s142 = ssub.s32 %s9, 1
      %p143 = scmp.lt.s32.totalorder %s14, 1
      %s144 = scalar_select %p143, %s14, 1
      %s145 = smul.addr %s144, 20
      %s146 = smul.addr %s145, 8
      %s147 = scalar_lea.vmem %s0, %s146
      %p148 = pneg %p35
      %p149 = pneg %p32
      %p150 = pneg %p56
      %p151 = pneg %p53
      %p152 = pneg %p77
      %p153 = pneg %p74
      %p154 = pneg %p103
      %p155 = pneg %p100
      %p156 = scmp.lt.s32.totalorder %s14, 1
      %s157 = scalar_select %p156, %s14, 1
      %s158 = smul.addr %s157, 8
      %s159 = smul.addr %s158, 8
      %s160 = scalar_lea.vmem %s3, %s159
      %p161 = scmp.lt.s32.totalorder %s14, 1
      %s162 = scalar_select %p161, %s14, 1
      %s163 = smul.addr %s162, 20
      %s164 = smul.addr %s163, 8
      %s165 = scalar_lea.vmem %s0, %s164
      %p166 = scmp.lt.s32.totalorder %s14, 1
      %s167 = scalar_select %p166, %s14, 1
      %s168 = smul.addr %s167, 8
      %s169 = smul.addr %s168, 8
      %s170 = scalar_lea.vmem %s3, %s169
      %v171 = vld [vmem:[%s165] sm:$0xff]
      %v172 = vld [vmem:[%s165 + $0x8] sm:$0x3]
      %v173 = vld [vmem:[%s165 + $0x10] sm:$0xff]
      %v174 = vld [vmem:[%s165 + $0x18] sm:$0x3]
      %v175 = vld [vmem:[%s165 + $0x20] sm:$0xff]
      %v176 = vld [vmem:[%s165 + $0x28] sm:$0x3]
      %v177 = vld [vmem:[%s165 + $0x30] sm:$0xff]
      %v178 = vld [vmem:[%s165 + $0x38] sm:$0x3]
      %v179 = vld [vmem:[%s165 + $0x40] sm:$0xff]
      %v180 = vld [vmem:[%s165 + $0x48] sm:$0x3]
      %v181 = vld [vmem:[%s165 + $0x50] sm:$0xff]
      %v182 = vld [vmem:[%s165 + $0x58] sm:$0x3]
      %v183 = vld [vmem:[%s165 + $0x60] sm:$0xff]
      %v184 = vld [vmem:[%s165 + $0x68] sm:$0x3]
      %v185 = vld [vmem:[%s165 + $0x70] sm:$0xff]
      %v186 = vld [vmem:[%s165 + $0x78] sm:$0x3]
      %v187 = vld [vmem:[%s165 + $0x80] sm:$0xff]
      %v188 = vld [vmem:[%s165 + $0x88] sm:$0x3]
      %v189 = vld [vmem:[%s165 + $0x90] sm:$0xff]
      %v190 = vld [vmem:[%s165 + $0x98] sm:$0x3]
      %v191 = vld [vmem:[%s1] sm:$0x7]
      %v192 = vld [vmem:[%s1 + $0x4] sm:$0x7]
      %v193 = vld [vmem:[%s1 + $0x8] sm:$0x7]
      %v194 = vld [vmem:[%s2] sm:$0x1]
      %v195 = vlaneseq
      %v196 = vshrl.u32 %v195, 7
      %v197 = vsub.s32 0, %v196
      %v198 = vrot.slane %v191, %v197
      %v199 = vmul.f32 %v171, %v198
      %v200 = vmul.f32 %v173, %v198
      %v201 = vmul.f32 %v175, %v198
      %v202 = vmul.f32 %v177, %v198
      %v203 = vmul.f32 %v179, %v198
      %v204 = vmul.f32 %v181, %v198
      %v205 = vmul.f32 %v183, %v198
      %v206 = vmul.f32 %v185, %v198
      %v207 = vadd.f32 %v199, 0.0
      %v208 = vadd.f32 %v200, 0.0
      %v209 = vadd.f32 %v201, 0.0
      %v210 = vadd.f32 %v202, 0.0
      %v211 = vadd.f32 %v203, 0.0
      %v212 = vadd.f32 %v204, 0.0
      %v213 = vadd.f32 %v205, 0.0
      %v214 = vadd.f32 %v206, 0.0
      %v215 = vlaneseq
      %v216 = vshrl.u32 %v215, 7
      %v217 = vsub.s32 0, %v216
      %v218 = vrot.slane %v192, %v217
      %v219 = vmul.f32 %v173, %v218
      %v220 = vmul.f32 %v175, %v218
      %v221 = vmul.f32 %v177, %v218
      %v222 = vmul.f32 %v179, %v218
      %v223 = vmul.f32 %v181, %v218
      %v224 = vmul.f32 %v183, %v218
      %v225 = vmul.f32 %v185, %v218
      %v226 = vmul.f32 %v187, %v218
      %v227 = vadd.f32 %v207, %v219
      %v228 = vadd.f32 %v208, %v220
      %v229 = vadd.f32 %v209, %v221
      %v230 = vadd.f32 %v210, %v222
      %v231 = vadd.f32 %v211, %v223
      %v232 = vadd.f32 %v212, %v224
      %v233 = vadd.f32 %v213, %v225
      %v234 = vadd.f32 %v214, %v226
      %v235 = vlaneseq
      %v236 = vshrl.u32 %v235, 7
      %v237 = vsub.s32 0, %v236
      %v238 = vrot.slane %v193, %v237
      %v239 = vmul.f32 %v175, %v238
      %v240 = vmul.f32 %v177, %v238
      %v241 = vmul.f32 %v179, %v238
      %v242 = vmul.f32 %v181, %v238
      %v243 = vmul.f32 %v183, %v238
      %v244 = vmul.f32 %v185, %v238
      %v245 = vmul.f32 %v187, %v238
      %v246 = vmul.f32 %v189, %v238
      %v247 = vadd.f32 %v227, %v239
      %v248 = vadd.f32 %v228, %v240
      %v249 = vadd.f32 %v229, %v241
      %v250 = vadd.f32 %v230, %v242
      %v251 = vadd.f32 %v231, %v243
      %v252 = vadd.f32 %v232, %v244
      %v253 = vadd.f32 %v233, %v245
      %v254 = vadd.f32 %v234, %v246
      %v255 = vlaneseq
      %v256 = vshrl.u32 %v255, 7
      %v257 = vsub.s32 1, %v256
      %v258 = vrot.slane %v191, %v257
      %v259 = vmul.f32 %v171, %v258
      %v260 = vmul.f32 %v172, %v258
      %v261 = vmul.f32 %v173, %v258
      %v262 = vmul.f32 %v174, %v258
      %v263 = vmul.f32 %v175, %v258
      %v264 = vmul.f32 %v176, %v258
      %v265 = vmul.f32 %v177, %v258
      %v266 = vmul.f32 %v178, %v258
      %v267 = vmul.f32 %v179, %v258
      %v268 = vmul.f32 %v180, %v258
      %v269 = vmul.f32 %v181, %v258
      %v270 = vmul.f32 %v182, %v258
      %v271 = vmul.f32 %v183, %v258
      %v272 = vmul.f32 %v184, %v258
      %v273 = vmul.f32 %v185, %v258
      %v274 = vmul.f32 %v186, %v258
      %vm291 = vcmask 1046528
      %v292 = vrot.slane %v259, 1
      %v293 = vrot.slane %v260, 1
      %v294 = vsel %vm291, %v292, %v293
      %v295 = vrot.slane %v261, 1
      %v296 = vrot.slane %v262, 1
      %v297 = vsel %vm291, %v295, %v296
      %v298 = vrot.slane %v263, 1
      %v299 = vrot.slane %v264, 1
      %v300 = vsel %vm291, %v298, %v299
      %v301 = vrot.slane %v265, 1
      %v302 = vrot.slane %v266, 1
      %v303 = vsel %vm291, %v301, %v302
      %v304 = vrot.slane %v267, 1
      %v305 = vrot.slane %v268, 1
      %v306 = vsel %vm291, %v304, %v305
      %v307 = vrot.slane %v269, 1
      %v308 = vrot.slane %v270, 1
      %v309 = vsel %vm291, %v307, %v308
      %v310 = vrot.slane %v271, 1
      %v311 = vrot.slane %v272, 1
      %v312 = vsel %vm291, %v310, %v311
      %v313 = vrot.slane %v273, 1
      %v314 = vrot.slane %v274, 1
      %v315 = vsel %vm291, %v313, %v314
      %v324 = vadd.f32 %v247, %v294
      %v325 = vadd.f32 %v248, %v297
      %v326 = vadd.f32 %v249, %v300
      %v327 = vadd.f32 %v250, %v303
      %v328 = vadd.f32 %v251, %v306
      %v329 = vadd.f32 %v252, %v309
      %v330 = vadd.f32 %v253, %v312
      %v331 = vadd.f32 %v254, %v315
      %v332 = vlaneseq
      %v333 = vshrl.u32 %v332, 7
      %v334 = vsub.s32 1, %v333
      %v335 = vrot.slane %v192, %v334
      %v336 = vmul.f32 %v173, %v335
      %v337 = vmul.f32 %v174, %v335
      %v338 = vmul.f32 %v175, %v335
      %v339 = vmul.f32 %v176, %v335
      %v340 = vmul.f32 %v177, %v335
      %v341 = vmul.f32 %v178, %v335
      %v342 = vmul.f32 %v179, %v335
      %v343 = vmul.f32 %v180, %v335
      %v344 = vmul.f32 %v181, %v335
      %v345 = vmul.f32 %v182, %v335
      %v346 = vmul.f32 %v183, %v335
      %v347 = vmul.f32 %v184, %v335
      %v348 = vmul.f32 %v185, %v335
      %v349 = vmul.f32 %v186, %v335
      %v350 = vmul.f32 %v187, %v335
      %v351 = vmul.f32 %v188, %v335
      %v368 = vrot.slane %v336, 1
      %v369 = vrot.slane %v337, 1
      %v370 = vsel %vm291, %v368, %v369
      %v371 = vrot.slane %v338, 1
      %v372 = vrot.slane %v339, 1
      %v373 = vsel %vm291, %v371, %v372
      %v374 = vrot.slane %v340, 1
      %v375 = vrot.slane %v341, 1
      %v376 = vsel %vm291, %v374, %v375
      %v377 = vrot.slane %v342, 1
      %v378 = vrot.slane %v343, 1
      %v379 = vsel %vm291, %v377, %v378
      %v380 = vrot.slane %v344, 1
      %v381 = vrot.slane %v345, 1
      %v382 = vsel %vm291, %v380, %v381
      %v383 = vrot.slane %v346, 1
      %v384 = vrot.slane %v347, 1
      %v385 = vsel %vm291, %v383, %v384
      %v386 = vrot.slane %v348, 1
      %v387 = vrot.slane %v349, 1
      %v388 = vsel %vm291, %v386, %v387
      %v389 = vrot.slane %v350, 1
      %v390 = vrot.slane %v351, 1
      %v391 = vsel %vm291, %v389, %v390
      %v400 = vadd.f32 %v324, %v370
      %v401 = vadd.f32 %v325, %v373
      %v402 = vadd.f32 %v326, %v376
      %v403 = vadd.f32 %v327, %v379
      %v404 = vadd.f32 %v328, %v382
      %v405 = vadd.f32 %v329, %v385
      %v406 = vadd.f32 %v330, %v388
      %v407 = vadd.f32 %v331, %v391
      %v408 = vlaneseq
      %v409 = vshrl.u32 %v408, 7
      %v410 = vsub.s32 1, %v409
      %v411 = vrot.slane %v193, %v410
      %v412 = vmul.f32 %v175, %v411
      %v413 = vmul.f32 %v176, %v411
      %v414 = vmul.f32 %v177, %v411
      %v415 = vmul.f32 %v178, %v411
      %v416 = vmul.f32 %v179, %v411
      %v417 = vmul.f32 %v180, %v411
      %v418 = vmul.f32 %v181, %v411
      %v419 = vmul.f32 %v182, %v411
      %v420 = vmul.f32 %v183, %v411
      %v421 = vmul.f32 %v184, %v411
      %v422 = vmul.f32 %v185, %v411
      %v423 = vmul.f32 %v186, %v411
      %v424 = vmul.f32 %v187, %v411
      %v425 = vmul.f32 %v188, %v411
      %v426 = vmul.f32 %v189, %v411
      %v427 = vmul.f32 %v190, %v411
      %v444 = vrot.slane %v412, 1
      %v445 = vrot.slane %v413, 1
      %v446 = vsel %vm291, %v444, %v445
      %v447 = vrot.slane %v414, 1
      %v448 = vrot.slane %v415, 1
      %v449 = vsel %vm291, %v447, %v448
      %v450 = vrot.slane %v416, 1
      %v451 = vrot.slane %v417, 1
      %v452 = vsel %vm291, %v450, %v451
      %v453 = vrot.slane %v418, 1
      %v454 = vrot.slane %v419, 1
      %v455 = vsel %vm291, %v453, %v454
      %v456 = vrot.slane %v420, 1
      %v457 = vrot.slane %v421, 1
      %v458 = vsel %vm291, %v456, %v457
      %v459 = vrot.slane %v422, 1
      %v460 = vrot.slane %v423, 1
      %v461 = vsel %vm291, %v459, %v460
      %v462 = vrot.slane %v424, 1
      %v463 = vrot.slane %v425, 1
      %v464 = vsel %vm291, %v462, %v463
      %v465 = vrot.slane %v426, 1
      %v466 = vrot.slane %v427, 1
      %v467 = vsel %vm291, %v465, %v466
      %v476 = vadd.f32 %v400, %v446
      %v477 = vadd.f32 %v401, %v449
      %v478 = vadd.f32 %v402, %v452
      %v479 = vadd.f32 %v403, %v455
      %v480 = vadd.f32 %v404, %v458
      %v481 = vadd.f32 %v405, %v461
      %v482 = vadd.f32 %v406, %v464
      %v483 = vadd.f32 %v407, %v467
      %v484 = vlaneseq
      %v485 = vshrl.u32 %v484, 7
      %v486 = vsub.s32 2, %v485
      %v487 = vrot.slane %v191, %v486
      %v488 = vmul.f32 %v171, %v487
      %v489 = vmul.f32 %v172, %v487
      %v490 = vmul.f32 %v173, %v487
      %v491 = vmul.f32 %v174, %v487
      %v492 = vmul.f32 %v175, %v487
      %v493 = vmul.f32 %v176, %v487
      %v494 = vmul.f32 %v177, %v487
      %v495 = vmul.f32 %v178, %v487
      %v496 = vmul.f32 %v179, %v487
      %v497 = vmul.f32 %v180, %v487
      %v498 = vmul.f32 %v181, %v487
      %v499 = vmul.f32 %v182, %v487
      %v500 = vmul.f32 %v183, %v487
      %v501 = vmul.f32 %v184, %v487
      %v502 = vmul.f32 %v185, %v487
      %v503 = vmul.f32 %v186, %v487
      %vm520 = vcmask 1045504
      %v521 = vrot.slane %v488, 2
      %v522 = vrot.slane %v489, 2
      %v523 = vsel %vm520, %v521, %v522
      %v524 = vrot.slane %v490, 2
      %v525 = vrot.slane %v491, 2
      %v526 = vsel %vm520, %v524, %v525
      %v527 = vrot.slane %v492, 2
      %v528 = vrot.slane %v493, 2
      %v529 = vsel %vm520, %v527, %v528
      %v530 = vrot.slane %v494, 2
      %v531 = vrot.slane %v495, 2
      %v532 = vsel %vm520, %v530, %v531
      %v533 = vrot.slane %v496, 2
      %v534 = vrot.slane %v497, 2
      %v535 = vsel %vm520, %v533, %v534
      %v536 = vrot.slane %v498, 2
      %v537 = vrot.slane %v499, 2
      %v538 = vsel %vm520, %v536, %v537
      %v539 = vrot.slane %v500, 2
      %v540 = vrot.slane %v501, 2
      %v541 = vsel %vm520, %v539, %v540
      %v542 = vrot.slane %v502, 2
      %v543 = vrot.slane %v503, 2
      %v544 = vsel %vm520, %v542, %v543
      %v553 = vadd.f32 %v476, %v523
      %v554 = vadd.f32 %v477, %v526
      %v555 = vadd.f32 %v478, %v529
      %v556 = vadd.f32 %v479, %v532
      %v557 = vadd.f32 %v480, %v535
      %v558 = vadd.f32 %v481, %v538
      %v559 = vadd.f32 %v482, %v541
      %v560 = vadd.f32 %v483, %v544
      %v561 = vlaneseq
      %v562 = vshrl.u32 %v561, 7
      %v563 = vsub.s32 2, %v562
      %v564 = vrot.slane %v192, %v563
      %v565 = vmul.f32 %v173, %v564
      %v566 = vmul.f32 %v174, %v564
      %v567 = vmul.f32 %v175, %v564
      %v568 = vmul.f32 %v176, %v564
      %v569 = vmul.f32 %v177, %v564
      %v570 = vmul.f32 %v178, %v564
      %v571 = vmul.f32 %v179, %v564
      %v572 = vmul.f32 %v180, %v564
      %v573 = vmul.f32 %v181, %v564
      %v574 = vmul.f32 %v182, %v564
      %v575 = vmul.f32 %v183, %v564
      %v576 = vmul.f32 %v184, %v564
      %v577 = vmul.f32 %v185, %v564
      %v578 = vmul.f32 %v186, %v564
      %v579 = vmul.f32 %v187, %v564
      %v580 = vmul.f32 %v188, %v564
      %v597 = vrot.slane %v565, 2
      %v598 = vrot.slane %v566, 2
      %v599 = vsel %vm520, %v597, %v598
      %v600 = vrot.slane %v567, 2
      %v601 = vrot.slane %v568, 2
      %v602 = vsel %vm520, %v600, %v601
      %v603 = vrot.slane %v569, 2
      %v604 = vrot.slane %v570, 2
      %v605 = vsel %vm520, %v603, %v604
      %v606 = vrot.slane %v571, 2
      %v607 = vrot.slane %v572, 2
      %v608 = vsel %vm520, %v606, %v607
      %v609 = vrot.slane %v573, 2
      %v610 = vrot.slane %v574, 2
      %v611 = vsel %vm520, %v609, %v610
      %v612 = vrot.slane %v575, 2
      %v613 = vrot.slane %v576, 2
      %v614 = vsel %vm520, %v612, %v613
      %v615 = vrot.slane %v577, 2
      %v616 = vrot.slane %v578, 2
      %v617 = vsel %vm520, %v615, %v616
      %v618 = vrot.slane %v579, 2
      %v619 = vrot.slane %v580, 2
      %v620 = vsel %vm520, %v618, %v619
      %v629 = vadd.f32 %v553, %v599
      %v630 = vadd.f32 %v554, %v602
      %v631 = vadd.f32 %v555, %v605
      %v632 = vadd.f32 %v556, %v608
      %v633 = vadd.f32 %v557, %v611
      %v634 = vadd.f32 %v558, %v614
      %v635 = vadd.f32 %v559, %v617
      %v636 = vadd.f32 %v560, %v620
      %v637 = vlaneseq
      %v638 = vshrl.u32 %v637, 7
      %v639 = vsub.s32 2, %v638
      %v640 = vrot.slane %v193, %v639
      %v641 = vmul.f32 %v175, %v640
      %v642 = vmul.f32 %v176, %v640
      %v643 = vmul.f32 %v177, %v640
      %v644 = vmul.f32 %v178, %v640
      %v645 = vmul.f32 %v179, %v640
      %v646 = vmul.f32 %v180, %v640
      %v647 = vmul.f32 %v181, %v640
      %v648 = vmul.f32 %v182, %v640
      %v649 = vmul.f32 %v183, %v640
      %v650 = vmul.f32 %v184, %v640
      %v651 = vmul.f32 %v185, %v640
      %v652 = vmul.f32 %v186, %v640
      %v653 = vmul.f32 %v187, %v640
      %v654 = vmul.f32 %v188, %v640
      %v655 = vmul.f32 %v189, %v640
      %v656 = vmul.f32 %v190, %v640
      %v673 = vrot.slane %v641, 2
      %v674 = vrot.slane %v642, 2
      %v675 = vsel %vm520, %v673, %v674
      %v676 = vrot.slane %v643, 2
      %v677 = vrot.slane %v644, 2
      %v678 = vsel %vm520, %v676, %v677
      %v679 = vrot.slane %v645, 2
      %v680 = vrot.slane %v646, 2
      %v681 = vsel %vm520, %v679, %v680
      %v682 = vrot.slane %v647, 2
      %v683 = vrot.slane %v648, 2
      %v684 = vsel %vm520, %v682, %v683
      %v685 = vrot.slane %v649, 2
      %v686 = vrot.slane %v650, 2
      %v687 = vsel %vm520, %v685, %v686
      %v688 = vrot.slane %v651, 2
      %v689 = vrot.slane %v652, 2
      %v690 = vsel %vm520, %v688, %v689
      %v691 = vrot.slane %v653, 2
      %v692 = vrot.slane %v654, 2
      %v693 = vsel %vm520, %v691, %v692
      %v694 = vrot.slane %v655, 2
      %v695 = vrot.slane %v656, 2
      %v696 = vsel %vm520, %v694, %v695
      %v705 = vadd.f32 %v629, %v675
      %v706 = vadd.f32 %v630, %v678
      %v707 = vadd.f32 %v631, %v681
      %v708 = vadd.f32 %v632, %v684
      %v709 = vadd.f32 %v633, %v687
      %v710 = vadd.f32 %v634, %v690
      %v711 = vadd.f32 %v635, %v693
      %v712 = vadd.f32 %v636, %v696
      %v714 = vlaneseq
      %v715 = vshrl.u32 %v714, 7
      %v716 = vsub.s32 0, %v715
      %v717 = vrot.slane %v194, %v716
      %v719 = vadd.f32 %v705, %v717
      %v720 = vadd.f32 %v706, %v717
      %v721 = vadd.f32 %v707, %v717
      %v722 = vadd.f32 %v708, %v717
      %v723 = vadd.f32 %v709, %v717
      %v724 = vadd.f32 %v710, %v717
      %v725 = vadd.f32 %v711, %v717
      %v726 = vadd.f32 %v712, %v717
      %vm727 = vcmask 261120
      %728 = vst.msk [vmem:[%s170] sm:$0xff] %vm727, %v719
      %729 = vst.msk [vmem:[%s170 + $0x8] sm:$0xff] %vm727, %v720
      %730 = vst.msk [vmem:[%s170 + $0x10] sm:$0xff] %vm727, %v721
      %731 = vst.msk [vmem:[%s170 + $0x18] sm:$0xff] %vm727, %v722
      %732 = vst.msk [vmem:[%s170 + $0x20] sm:$0xff] %vm727, %v723
      %733 = vst.msk [vmem:[%s170 + $0x28] sm:$0xff] %vm727, %v724
      %734 = vst.msk [vmem:[%s170 + $0x30] sm:$0xff] %vm727, %v725
      %735 = vst.msk [vmem:[%s170 + $0x38] sm:$0xff] %vm727, %v726
      %p736 = scmp.lt.s32.totalorder %s14, 1
      %s737 = scalar_select %p736, %s14, 1
      %s738 = smul.addr %s737, 8
      %s739 = smul.addr %s738, 8
      %s740 = scalar_lea.vmem %s3, %s739
      // Predicated region
      $region33: #{attention_forward.5} parent=31 // pred_check
        %p741 = pneg %p100
      $region34: #{attention_forward.5} parent=31 // pred_check_branch
        %743 = sbr.rel (%p741) target = $region36
      $region35: #{attention_forward.5} parent=31 // pred_region
        _
      $region36: #{attention_forward.5} parent=31 // pred_fallthru
        _
    $region32: #{attention_forward.5} parent=5 // pred_fallthru
      _
    %p744 = scmp.le.s32.totalorder 2, %s9
    // Predicated region
    $region37: #{attention_forward.5} parent=5 // pred_check
      %p745 = pneg %p744
    $region38: #{attention_forward.5} parent=5 // pred_check_branch
      %747 = sbr.rel (%p745) target = $region40
    $region39: #{attention_forward.5} parent=5 // pred_region
      %s748 = ssub.s32 %s9, 2
      // Predicated region
      $region41: #{attention_forward.5} parent=39 // pred_check
        %p749 = pneg %p106
      $region42: #{attention_forward.5} parent=39 // pred_check_branch
        %751 = sbr.rel (%p749) target = $region44
      $region43: #{attention_forward.5} parent=39 // pred_region
        %p752 = scmp.lt.s32.totalorder %s15, 1
        %s753 = scalar_select %p752, %s15, 1
        %s754 = smul.addr %s753, 8
        %s755 = smul.addr %s754, 8
        %s756 = scalar_lea.vmem %s3, %s755
      $region44: #{attention_forward.5} parent=39 // pred_fallthru
        _
    $region40: #{attention_forward.5} parent=5 // pred_fallthru
      _
  $region6: #{attention_forward.5} parent=0 // loop_footer
    %s13 = sadd.s32 1, %s9
  $region7: #{attention_forward.5} parent=0 // loop_footer_branch
    %8 = sbr.rel target = $region3
  $region8: #{attention_forward.5} parent=0 // loop_exit
    _

// kernel: attention_forward.6
$region0: #{attention_forward.6}
  #allocation0 [shape = 'u32[]', space=smem, size = 0x4, offset = 0x4, fixed_abs, tag = 'smem constant byte address 0x4 - core index']
  #allocation1 [shape = 'u32[144,128]{1,0:T(1,128)}', space=vmem, size = 0x12000, scoped, tag = 'internal scratch']
  #allocation2 [shape = 'f32[4,16,1]{2,1,0:T(8,128)}', space=vmem, size = 0x8000, scoped, tag = 'scratch operand']
  #allocation3 [shape = 'f32[4,16,1]{2,1,0:T(8,128)}', space=vmem, size = 0x8000, scoped, tag = 'scratch operand']
  #allocation4 [shape = 'f32[4,16,8]{2,1,0:T(8,128)}', space=vmem, size = 0x8000, scoped, tag = 'scratch operand']
  #allocation5 [shape = 's32[1]{0}', space=sflag, size = 0x4, scoped, tag = 'scoped memory for attention_forward.6']
  #allocation6 [shape = 'u8[512]{0}', space=smem, size = 0x200, scoped, tag = 'prefetched SMEM operand 0']
  %s0 = inlined_call_operand.vmem [shape: s32[16], index: 0, kind: input, shape index: {}]
  %s1 = inlined_call_operand.vmem [shape: bf16[2,4,16,32], index: 1, kind: input, shape index: {}]
  %s2 = inlined_call_operand.vmem [shape: bf16[2,4,16,64], index: 2, kind: input, shape index: {}]
  %s3 = inlined_call_operand.vmem [shape: f32[2,4,16,32], index: 3, kind: output, shape index: {}]
  %s4 = sld [smem:[#allocation0]]
  $region49: #{attention_forward.6} parent=0
    _
  %s6 = ssub.s32 1, %s4
  %s7 = scalar_select 0, %s6, %s4
  %s8 = sshll.u32 %s0, 4
  %s9 = int_to_ptr.vmem [resolvable:$true] %s8
  %11 = dma.vmem_to_smem %s9, 16, [#allocation6], [#allocation5]
  %12 = dma.done [#allocation5], 16
  %13 = sfence
  loop: start=0, step=1, limit=18
  $region2: #{attention_forward.6} parent=0 // loop_pre_header
    _
  $region3: #{attention_forward.6} parent=0 // loop_header
    %s15 = sphi 0, %s19
    %p16 = scmp.ge.s32.totalorder %s15, 18
    %s22 = sphi 0, %s41
    %s23 = sphi 0, %s37
    %s24 = sphi 0, %s33
    %s25 = sphi 0, %s22
    %s26 = sphi 0, %s23
    %s27 = sphi 0, %s24
    %s28 = sphi 0, %s25
    %s29 = sphi 0, %s26
    %s30 = sphi 0, %s27
    %s46 = sphi 0, %s48
    %s49 = sphi 0, %s46
    %s50 = sphi 0, %s49
    %s66 = sphi 0, %s50
    %s84 = sphi 0, %s86
    %s87 = sphi 0, %s84
    %s88 = sphi 0, %s87
    %s104 = sphi 0, %s88
    %s112 = sphi 0, %s114
    %s115 = sphi 0, %s112
    %s116 = sphi 0, %s115
    %s132 = sphi 0, %s116
  $region4: #{attention_forward.6} parent=0 // loop_header_branch
    %18 = sbr.rel (%p16) target = $region8
  $region5: #{attention_forward.6} parent=0 // loop_body
    %s20 = ssub.s32 %s15, 1
    %s21 = ssub.s32 %s15, 2
    %s31 = sadd.s32 1, %s24
    %p32 = scmp.ge.s32.totalorder %s31, 2
    %s33 = scalar_select %p32, 0, %s31
    %s34 = sadd.s32 1, %s23
    %s35 = scalar_select %p32, %s34, %s23
    %p36 = scmp.ge.s32.totalorder %s35, 4
    %s37 = scalar_select %p36, 0, %s35
    %s38 = sadd.s32 1, %s22
    %s39 = scalar_select %p36, %s38, %s22
    %p40 = scmp.ge.s32.totalorder %s39, 2
    %s41 = scalar_select %p40, 0, %s39
    %s42 = ssub.s32 %s22, %s41
    %s43 = ssub.s32 %s23, %s37
    %s44 = sor.u32 %s42, %s43
    %p45 = scmp.eq.s32.totalorder %s44, 0
    %s47 = sadd.s32 %s46, 1
    %s48 = scalar_select %p45, %s46, %s47
    %p51 = pneg %p45
    %p52 = scmp.eq.s32.totalorder %s15, 15
    %p53 = por %p51, %p52
    %p54 = scmp.ne.s32.totalorder %s46, %s49
    %p55 = scmp.eq.s32.totalorder %s15, 0
    %p56 = por %p54, %p55
    %p57 = scmp.ne.s32.totalorder %s46, %s49
    %p58 = scmp.eq.s32.totalorder %s20, 15
    %p59 = por %p57, %p58
    %p60 = scmp.ne.s32.totalorder %s49, %s50
    %p61 = scmp.eq.s32.totalorder %s20, 0
    %p62 = por %p60, %p61
    %p63 = scmp.ne.s32.totalorder %s49, %s50
    %p64 = scmp.eq.s32.totalorder %s21, 15
    %p65 = por %p63, %p64
    %p67 = scmp.ne.s32.totalorder %s50, %s66
    %p68 = scmp.eq.s32.totalorder %s21, 0
    %p69 = por %p67, %p68
    %s70 = smul.u32 %s22, 4
    %s71 = sadd.s32 %s70, %s23
    %s72 = smul.u32 %s71, 2
    %s73 = sadd.s32 %s72, %s24
    %s74 = sld [smem:[#allocation6 + %s73]]
    %s75 = smul.u32 %s41, 4
    %s76 = sadd.s32 %s75, %s37
    %s77 = smul.u32 %s76, 2
    %s78 = sadd.s32 %s77, %s33
    %s79 = sld [smem:[#allocation6 + %s78]]
    %s80 = ssub.s32 %s22, %s41
    %s81 = ssub.s32 %s74, %s79
    %s82 = sor.u32 %s80, %s81
    %p83 = scmp.eq.s32.totalorder %s82, 0
    %s85 = sadd.s32 %s84, 1
    %s86 = scalar_select %p83, %s84, %s85
    %p89 = pneg %p83
    %p90 = scmp.eq.s32.totalorder %s15, 15
    %p91 = por %p89, %p90
    %p92 = scmp.ne.s32.totalorder %s84, %s87
    %p93 = scmp.eq.s32.totalorder %s15, 0
    %p94 = por %p92, %p93
    %p95 = scmp.ne.s32.totalorder %s84, %s87
    %p96 = scmp.eq.s32.totalorder %s20, 15
    %p97 = por %p95, %p96
    %p98 = scmp.ne.s32.totalorder %s87, %s88
    %p99 = scmp.eq.s32.totalorder %s20, 0
    %p100 = por %p98, %p99
    %p101 = scmp.ne.s32.totalorder %s87, %s88
    %p102 = scmp.eq.s32.totalorder %s21, 15
    %p103 = por %p101, %p102
    %p105 = scmp.ne.s32.totalorder %s88, %s104
    %p106 = scmp.eq.s32.totalorder %s21, 0
    %p107 = por %p105, %p106
    %s108 = ssub.s32 %s22, %s41
    %s109 = ssub.s32 %s23, %s37
    %s110 = sor.u32 %s108, %s109
    %p111 = scmp.eq.s32.totalorder %s110, 0
    %s113 = sadd.s32 %s112, 1
    %s114 = scalar_select %p111, %s112, %s113
    %p117 = pneg %p111
    %p118 = scmp.eq.s32.totalorder %s15, 15
    %p119 = por %p117, %p118
    %p120 = scmp.ne.s32.totalorder %s112, %s115
    %p121 = scmp.eq.s32.totalorder %s15, 0
    %p122 = por %p120, %p121
    %p123 = scmp.ne.s32.totalorder %s112, %s115
    %p124 = scmp.eq.s32.totalorder %s20, 15
    %p125 = por %p123, %p124
    %p126 = scmp.ne.s32.totalorder %s115, %s116
    %p127 = scmp.eq.s32.totalorder %s20, 0
    %p128 = por %p126, %p127
    %p129 = scmp.ne.s32.totalorder %s115, %s116
    %p130 = scmp.eq.s32.totalorder %s21, 15
    %p131 = por %p129, %p130
    %p133 = scmp.ne.s32.totalorder %s116, %s132
    %p134 = scmp.eq.s32.totalorder %s21, 0
    %p135 = por %p133, %p134
    %p136 = scmp.le.s32.totalorder 1, %s15
    %p137 = scmp.lt.s32.totalorder %s15, 17
    %p138 = pnand %p136, %p137
    %p139 = pneg %p138
    // Predicated region
    $region9: #{attention_forward.6} parent=5 // pred_check
      _
    $region10: #{attention_forward.6} parent=5 // pred_check_branch
      %141 = sbr.rel (%p138) target = $region12
    $region11: #{attention_forward.6} parent=5 // pred_region
      %s142 = ssub.s32 %s15, 1
    $region12: #{attention_forward.6} parent=5 // pred_fallthru
      _
    %p143 = scmp.lt.s32.totalorder %s15, 16
    // Predicated region
    $region13: #{attention_forward.6} parent=5 // pred_check
      %p144 = pneg %p143
    $region14: #{attention_forward.6} parent=5 // pred_check_branch
      %146 = sbr.rel (%p144) target = $region16
    $region15: #{attention_forward.6} parent=5 // pred_region
      // Predicated region
      $region17: #{attention_forward.6} parent=15 // pred_check
        %p147 = pneg %p56
      $region18: #{attention_forward.6} parent=15 // pred_check_branch
        %149 = sbr.rel (%p147) target = $region20
      $region19: #{attention_forward.6} parent=15 // pred_region
        %p150 = scmp.lt.s32.totalorder %s22, 1
        %s151 = scalar_select %p150, %s22, 1
        %p152 = scmp.lt.s32.totalorder %s23, 3
        %s153 = scalar_select %p152, %s23, 3
        %s154 = smul.addr %s153, 2
        %s155 = smul.addr %s151, 8
        %s156 = sadd.s32 %s154, %s155
        %s157 = smul.addr %s156, 4
        %s158 = scalar_lea.vmem %s1, %s157
      $region20: #{attention_forward.6} parent=15 // pred_fallthru
        _
      // Predicated region
      $region21: #{attention_forward.6} parent=15 // pred_check
        %p159 = pneg %p94
      $region22: #{attention_forward.6} parent=15 // pred_check_branch
        %161 = sbr.rel (%p159) target = $region24
      $region23: #{attention_forward.6} parent=15 // pred_region
        %s162 = smul.u32 %s22, 4
        %s163 = sadd.s32 %s162, %s23
        %s164 = smul.u32 %s163, 2
        %s165 = sadd.s32 %s164, %s24
        %s166 = sld [smem:[#allocation6 + %s165]]
        %p167 = scmp.lt.s32.totalorder %s22, 1
        %s168 = scalar_select %p167, %s22, 1
        %p169 = scmp.lt.s32.totalorder %s166, 3
        %s170 = scalar_select %p169, %s166, 3
        %s171 = smul.addr %s170, 2
        %s172 = smul.addr %s168, 8
        %s173 = sadd.s32 %s171, %s172
        %s174 = smul.addr %s173, 4
        %s175 = scalar_lea.vmem %s2, %s174
        %s176 = smul.u32 %s22, 4
        %s177 = sadd.s32 %s176, %s23
        %s178 = smul.u32 %s177, 2
        %s179 = sadd.s32 %s178, %s24
        %s180 = sld [smem:[#allocation6 + %s179]]
      $region24: #{attention_forward.6} parent=15 // pred_fallthru
        _
    $region16: #{attention_forward.6} parent=5 // pred_fallthru
      _
    %p181 = scmp.le.s32.totalorder 1, %s15
    %p182 = scmp.lt.s32.totalorder %s15, 17
    %p183 = pnand %p181, %p182
    %p184 = pneg %p183
    // Predicated region
    $region25: #{attention_forward.6} parent=5 // pred_check
      _
    $region26: #{attention_forward.6} parent=5 // pred_check_branch
      %186 = sbr.rel (%p183) target = $region28
    $region27: #{attention_forward.6} parent=5 // pred_region
      %s187 = ssub.s32 %s15, 1
      %p188 = scmp.lt.s32.totalorder %s25, 1
      %s189 = scalar_select %p188, %s25, 1
      %p190 = scmp.lt.s32.totalorder %s26, 3
      %s191 = scalar_select %p190, %s26, 3
      %s192 = smul.addr %s191, 2
      %s193 = smul.addr %s189, 8
      %s194 = sadd.s32 %s192, %s193
      %s195 = smul.addr %s194, 4
      %s196 = scalar_lea.vmem %s1, %s195
      %p197 = pneg %p62
      %p198 = pneg %p59
      %s199 = smul.u32 %s25, 4
      %s200 = sadd.s32 %s199, %s26
      %s201 = smul.u32 %s200, 2
      %s202 = sadd.s32 %s201, %s27
      %s203 = sld [smem:[#allocation6 + %s202]]
      %p204 = scmp.lt.s32.totalorder %s25, 1
      %s205 = scalar_select %p204, %s25, 1
      %p206 = scmp.lt.s32.totalorder %s203, 3
      %s207 = scalar_select %p206, %s203, 3
      %s208 = smul.addr %s207, 2
      %s209 = smul.addr %s205, 8
      %s210 = sadd.s32 %s208, %s209
      %s211 = smul.addr %s210, 4
      %s212 = scalar_lea.vmem %s2, %s211
      %p213 = pneg %p100
      %p214 = pneg %p97
      %p215 = pneg %p128
      %p216 = pneg %p125
      %p217 = scmp.lt.s32.totalorder %s25, 1
      %s218 = scalar_select %p217, %s25, 1
      %p219 = scmp.lt.s32.totalorder %s26, 3
      %s220 = scalar_select %p219, %s26, 3
      %s221 = smul.addr %s220, 2
      %s222 = smul.addr %s218, 8
      %s223 = sadd.s32 %s221, %s222
      %s224 = smul.addr %s223, 8
      %s225 = scalar_lea.vmem %s3, %s224
      %p226 = scmp.lt.s32.totalorder %s25, 1
      %s227 = scalar_select %p226, %s25, 1
      %p228 = scmp.lt.s32.totalorder %s26, 3
      %s229 = scalar_select %p228, %s26, 3
      %s230 = smul.addr %s229, 2
      %s231 = smul.addr %s227, 8
      %s232 = sadd.s32 %s230, %s231
      %s233 = smul.addr %s232, 4
      %s234 = scalar_lea.vmem %s1, %s233
      %s235 = smul.u32 %s25, 4
      %s236 = sadd.s32 %s235, %s26
      %s237 = smul.u32 %s236, 2
      %s238 = sadd.s32 %s237, %s27
      %s239 = sld [smem:[#allocation6 + %s238]]
      %p240 = scmp.lt.s32.totalorder %s25, 1
      %s241 = scalar_select %p240, %s25, 1
      %p242 = scmp.lt.s32.totalorder %s239, 3
      %s243 = scalar_select %p242, %s239, 3
      %s244 = smul.addr %s243, 2
      %s245 = smul.addr %s241, 8
      %s246 = sadd.s32 %s244, %s245
      %s247 = smul.addr %s246, 4
      %s248 = scalar_lea.vmem %s2, %s247
      %s249 = smul.u32 %s25, 4
      %s250 = sadd.s32 %s249, %s26
      %s251 = smul.u32 %s250, 2
      %s252 = sadd.s32 %s251, %s27
      %s253 = sld [smem:[#allocation6 + %s252]]
      %p254 = scmp.lt.s32.totalorder %s25, 1
      %s255 = scalar_select %p254, %s25, 1
      %p256 = scmp.lt.s32.totalorder %s26, 3
      %s257 = scalar_select %p256, %s26, 3
      %s258 = smul.addr %s257, 2
      %s259 = smul.addr %s255, 8
      %s260 = sadd.s32 %s258, %s259
      %s261 = smul.addr %s260, 8
      %s262 = scalar_lea.vmem %s3, %s261
      %p264 = scmp.eq.s32.totalorder %s27, 0
      // Predicated region
      $region29: #{attention_forward.6} parent=27 // pred_check
        %p265 = pneg %p264
      $region30: #{attention_forward.6} parent=27 // pred_check_branch
        %267 = sbr.rel (%p265) target = $region32
      $region31: #{attention_forward.6} parent=27 // pred_region
        %vm268 = vcmask 7168
        %269 = vst.msk [vmem:[#allocation2] sm:$0xff] %vm268, -inf
        %270 = vst.msk [vmem:[#allocation2 + $0x8] sm:$0xff] %vm268, -inf
        %271 = vst.msk [vmem:[#allocation2 + $0x10] sm:$0xff] %vm268, -inf
        %272 = vst.msk [vmem:[#allocation2 + $0x18] sm:$0xff] %vm268, -inf
        %273 = vst.msk [vmem:[#allocation2 + $0x20] sm:$0xff] %vm268, -inf
        %274 = vst.msk [vmem:[#allocation2 + $0x28] sm:$0xff] %vm268, -inf
        %275 = vst.msk [vmem:[#allocation2 + $0x30] sm:$0xff] %vm268, -inf
        %276 = vst.msk [vmem:[#allocation2 + $0x38] sm:$0xff] %vm268, -inf
        %277 = vst.msk [vmem:[#allocation3] sm:$0xff] %vm268, 0.0
        %278 = vst.msk [vmem:[#allocation3 + $0x8] sm:$0xff] %vm268, 0.0
        %279 = vst.msk [vmem:[#allocation3 + $0x10] sm:$0xff] %vm268, 0.0
        %280 = vst.msk [vmem:[#allocation3 + $0x18] sm:$0xff] %vm268, 0.0
        %281 = vst.msk [vmem:[#allocation3 + $0x20] sm:$0xff] %vm268, 0.0
        %282 = vst.msk [vmem:[#allocation3 + $0x28] sm:$0xff] %vm268, 0.0
        %283 = vst.msk [vmem:[#allocation3 + $0x30] sm:$0xff] %vm268, 0.0
        %284 = vst.msk [vmem:[#allocation3 + $0x38] sm:$0xff] %vm268, 0.0
        %vm285 = vcmask 64512
        %286 = vst.msk [vmem:[#allocation4] sm:$0xff] %vm285, 0.0
        %287 = vst.msk [vmem:[#allocation4 + $0x8] sm:$0xff] %vm285, 0.0
        %288 = vst.msk [vmem:[#allocation4 + $0x10] sm:$0xff] %vm285, 0.0
        %289 = vst.msk [vmem:[#allocation4 + $0x18] sm:$0xff] %vm285, 0.0
        %290 = vst.msk [vmem:[#allocation4 + $0x20] sm:$0xff] %vm285, 0.0
        %291 = vst.msk [vmem:[#allocation4 + $0x28] sm:$0xff] %vm285, 0.0
        %292 = vst.msk [vmem:[#allocation4 + $0x30] sm:$0xff] %vm285, 0.0
        %293 = vst.msk [vmem:[#allocation4 + $0x38] sm:$0xff] %vm285, 0.0
      $region32: #{attention_forward.6} parent=27 // pred_fallthru
        _
      %v294 = vld [vmem:[%s234] sm:$0xf]
      %v295 = vld [vmem:[%s234 + $0x4] sm:$0xf]
      %v296 = vld [vmem:[%s248] sm:$0xf]
      %v297 = vld [vmem:[%s248 + $0x4] sm:$0xf]
      %v300 = vunpack.c.l.b16 %v294
      %v301 = vunpack.c.l.b16 %v295
      %v302 = vpack.c.b16 %v301, %v300
      %v305 = vunpack.c.l.b16 %v296
      %v306 = vunpack.c.l.b16 %v297
      %v307 = vpack.c.b16 %v306, %v305
      %vm308 = vcmask 64512
      %v310 = vsel %vm308, %v302, 0
      %v313 = vsel %vm308, %v307, 0
      %315 = vmatprep.subr.bf16.mxu0 0
      %316 = vmatpush1.bf16.xpose.msra.mxu0 %v313
      %317 = vmatprep.subr.bf16.mxu0 0
      %318 = vmatpush1.bf16.xpose.msra.mxu0 0
      %319 = vmatprep.subr.bf16.mxu0 0
      %320 = vmatpush1.bf16.xpose.msra.mxu0 0
      %321 = vmatprep.subr.bf16.mxu0 0
      %322 = vmatpush1.bf16.xpose.msra.mxu0 0
      %323 = vmatprep.subr.bf16.mxu0 0
      %324 = vmatpush1.bf16.xpose.msra.mxu0 0
      %325 = vmatprep.subr.bf16.mxu0 0
      %326 = vmatpush1.bf16.xpose.msra.mxu0 0
      %327 = vmatprep.subr.bf16.mxu0 0
      %328 = vmatpush1.bf16.xpose.msra.mxu0 0
      %329 = vmatprep.subr.bf16.mxu0 0
      %330 = vmatpush1.bf16.xpose.msra.mxu0 0
      %331 = vmatprep.subr.bf16.mxu0 0
      %332 = vmatpush1.bf16.xpose.msra.mxu0 0
      %333 = vmatprep.subr.bf16.mxu0 0
      %334 = vmatpush1.bf16.xpose.msra.mxu0 0
      %335 = vmatprep.subr.bf16.mxu0 0
      %336 = vmatpush1.bf16.xpose.msra.mxu0 0
      %337 = vmatprep.subr.bf16.mxu0 0
      %338 = vmatpush1.bf16.xpose.msra.mxu0 0
      %339 = vmatprep.subr.bf16.mxu0 0
      %340 = vmatpush1.bf16.xpose.msra.mxu0 0
      %341 = vmatprep.subr.bf16.mxu0 0
      %342 = vmatpush1.bf16.xpose.msra.mxu0 0
      %343 = vmatprep.subr.bf16.mxu0 0
      %344 = vmatpush1.bf16.xpose.msra.mxu0 0
      %345 = vmatprep.subr.bf16.mxu0 0
      %346 = vmatpush1.bf16.xpose.msra.mxu0 0
      %347 = vmatprep.mubr.bf16.mxu0 0
      %348 = vmatmul.mubr.bf16.gmra.mrb[0].mxu0 %v310
      %v349 = vpop.f32.mrb[0].mxu0
      %v350 = vadd.f32 0.0, %v349
      %v351 = vpop.f32.mrb[0].mxu0
      %v352 = vpop.f32.mrb[0].mxu0
      %v353 = vadd.f32 0.0, %v352
      %v354 = vpop.f32.mrb[0].mxu0
      %355 = vdwg.mxu0
      %v356 = vmul.f32 %v350, 0.17677669
      %v357 = vmul.f32 %v353, 0.17677669
      %v358 = vld [vmem:[#allocation2] sm:$0xff]
      %v359 = vld [vmem:[#allocation2 + $0x8] sm:$0xff]
      %vm360 = vcmask 130048
      %v361 = vsel %vm360, %v356, -inf
      %362 = vmax.xlane.f32.xlu0 %v361
      %v363 = vpop.xlane.xlu0 %362
      %v364 = vsel %vm360, %v357, -inf
      %365 = vmax.xlane.f32.xlu0 %v364
      %v366 = vpop.xlane.xlu0 %365
      %v367 = vmax.f32 %v358, %v363
      %v368 = vmax.f32 %v359, %v366
      %v369 = vsub.f32 %v358, %v367
      %v370 = vsub.f32 %v359, %v368
      %v371 = vmul.f32 %v369, 1.442695
      %v372 = vpow.pop %v371
      %v373 = vmul.f32 %v370, 1.442695
      %v374 = vpow.pop %v373
      %376 = vset.pattern.permute.xlu0 0
      %377 = vperm.xlu0 %376, %v367
      %v378 = vpop.permute.xlu0 %377
      %381 = vset.pattern.permute.xlu0 0
      %382 = vperm.xlu0 %381, %v368
      %v383 = vpop.permute.xlu0 %382
      %v385 = vsub.f32 %v356, %v378
      %v386 = vsub.f32 %v357, %v383
      %v387 = vmul.f32 %v385, 1.442695
      %v388 = vpow.pop %v387
      %v389 = vmul.f32 %v386, 1.442695
      %v390 = vpow.pop %v389
      %v391 = vld [vmem:[#allocation3] sm:$0xff]
      %v392 = vld [vmem:[#allocation3 + $0x8] sm:$0xff]
      %v393 = vmul.f32 %v372, %v391
      %v394 = vmul.f32 %v374, %v392
      %v395 = vsel %vm360, %v388, 0.0
      %396 = vadd.xlane.f32.xlu0 %v395
      %v397 = vpop.xlane.xlu0 %396
      %v398 = vsel %vm360, %v390, 0.0
      %399 = vadd.xlane.f32.xlu0 %v398
      %v400 = vpop.xlane.xlu0 %399
      %v401 = vadd.f32 %v393, %v397
      %v402 = vadd.f32 %v394, %v400
      %vm403 = vcmask 7168
      %404 = vst.msk [vmem:[#allocation3] sm:$0xff] %vm403, %v401
      %405 = vst.msk [vmem:[#allocation3 + $0x8] sm:$0xff] %vm403, %v402
      %v406 = vld [vmem:[#allocation4] sm:$0xff]
      %v407 = vld [vmem:[#allocation4 + $0x8] sm:$0xff]
      %409 = vset.pattern.permute.xlu0 0
      %410 = vperm.xlu0 %409, %v372
      %v411 = vpop.permute.xlu0 %410
      %414 = vset.pattern.permute.xlu0 0
      %415 = vperm.xlu0 %414, %v374
      %v416 = vpop.permute.xlu0 %415
      %v418 = vmul.f32 %v411, %v406
      %v419 = vmul.f32 %v416, %v407
      %v420 = vpack.c.bf16 %v390, %v388
      %421 = vrot.lane.b32.xlu0 %v307, 96
      %v422 = vpop.permute.xlu0 %421
      %v425 = vsel %vm360, %v420, 0
      %427 = vmatprep.subr.bf16.mxu0 0
      %428 = vmatpush1.bf16.msra.mxu0 %v422
      %429 = vmatprep.subr.bf16.mxu0 0
      %430 = vmatpush1.bf16.msra.mxu0 0
      %431 = vmatprep.subr.bf16.mxu0 0
      %432 = vmatpush1.bf16.msra.mxu0 0
      %433 = vmatprep.subr.bf16.mxu0 0
      %434 = vmatpush1.bf16.msra.mxu0 0
      %435 = vmatprep.subr.bf16.mxu0 0
      %436 = vmatpush1.bf16.msra.mxu0 0
      %437 = vmatprep.subr.bf16.mxu0 0
      %438 = vmatpush1.bf16.msra.mxu0 0
      %439 = vmatprep.subr.bf16.mxu0 0
      %440 = vmatpush1.bf16.msra.mxu0 0
      %441 = vmatprep.subr.bf16.mxu0 0
      %442 = vmatpush1.bf16.msra.mxu0 0
      %443 = vmatprep.subr.bf16.mxu0 0
      %444 = vmatpush1.bf16.msra.mxu0 0
      %445 = vmatprep.subr.bf16.mxu0 0
      %446 = vmatpush1.bf16.msra.mxu0 0
      %447 = vmatprep.subr.bf16.mxu0 0
      %448 = vmatpush1.bf16.msra.mxu0 0
      %449 = vmatprep.subr.bf16.mxu0 0
      %450 = vmatpush1.bf16.msra.mxu0 0
      %451 = vmatprep.subr.bf16.mxu0 0
      %452 = vmatpush1.bf16.msra.mxu0 0
      %453 = vmatprep.subr.bf16.mxu0 0
      %454 = vmatpush1.bf16.msra.mxu0 0
      %455 = vmatprep.subr.bf16.mxu0 0
      %456 = vmatpush1.bf16.msra.mxu0 0
      %457 = vmatprep.subr.bf16.mxu0 0
      %458 = vmatpush1.bf16.msra.mxu0 0
      %459 = vmatprep.mubr.bf16.mxu0 0
      %460 = vmatmul.mubr.bf16.gmra.mrb[0].mxu0 %v425
      %v461 = vpop.f32.mrb[0].mxu0
      %v462 = vadd.f32 0.0, %v461
      %v463 = vpop.f32.mrb[0].mxu0
      %v464 = vpop.f32.mrb[0].mxu0
      %v465 = vadd.f32 0.0, %v464
      %v466 = vpop.f32.mrb[0].mxu0
      %467 = vdwg.mxu0
      %v468 = vadd.f32 %v418, %v462
      %v469 = vadd.f32 %v419, %v465
      %470 = vst.msk [vmem:[#allocation4] sm:$0xff] %vm308, %v468
      %471 = vst.msk [vmem:[#allocation4 + $0x8] sm:$0xff] %vm308, %v469
      %472 = vst.msk [vmem:[#allocation2] sm:$0xff] %vm403, %v367
      %473 = vst.msk [vmem:[#allocation2 + $0x8] sm:$0xff] %vm403, %v368
      %474 = vrot.lane.b32.xlu0 %v302, 120
      %v475 = vpop.permute.xlu0 %474
      %476 = vrot.lane.b32.xlu0 %v307, 120
      %v477 = vpop.permute.xlu0 %476
      %v479 = vsel %vm308, %v475, 0
      %v482 = vsel %vm308, %v477, 0
      %484 = vmatprep.subr.bf16.mxu0 0
      %485 = vmatpush1.bf16.xpose.msra.mxu0 %v482
      %486 = vmatprep.subr.bf16.mxu0 0
      %487 = vmatpush1.bf16.xpose.msra.mxu0 0
      %488 = vmatprep.subr.bf16.mxu0 0
      %489 = vmatpush1.bf16.xpose.msra.mxu0 0
      %490 = vmatprep.subr.bf16.mxu0 0
      %491 = vmatpush1.bf16.xpose.msra.mxu0 0
      %492 = vmatprep.subr.bf16.mxu0 0
      %493 = vmatpush1.bf16.xpose.msra.mxu0 0
      %494 = vmatprep.subr.bf16.mxu0 0
      %495 = vmatpush1.bf16.xpose.msra.mxu0 0
      %496 = vmatprep.subr.bf16.mxu0 0
      %497 = vmatpush1.bf16.xpose.msra.mxu0 0
      %498 = vmatprep.subr.bf16.mxu0 0
      %499 = vmatpush1.bf16.xpose.msra.mxu0 0
      %500 = vmatprep.subr.bf16.mxu0 0
      %501 = vmatpush1.bf16.xpose.msra.mxu0 0
      %502 = vmatprep.subr.bf16.mxu0 0
      %503 = vmatpush1.bf16.xpose.msra.mxu0 0
      %504 = vmatprep.subr.bf16.mxu0 0
      %505 = vmatpush1.bf16.xpose.msra.mxu0 0
      %506 = vmatprep.subr.bf16.mxu0 0
      %507 = vmatpush1.bf16.xpose.msra.mxu0 0
      %508 = vmatprep.subr.bf16.mxu0 0
      %509 = vmatpush1.bf16.xpose.msra.mxu0 0
      %510 = vmatprep.subr.bf16.mxu0 0
      %511 = vmatpush1.bf16.xpose.msra.mxu0 0
      %512 = vmatprep.subr.bf16.mxu0 0
      %513 = vmatpush1.bf16.xpose.msra.mxu0 0
      %514 = vmatprep.subr.bf16.mxu0 0
      %515 = vmatpush1.bf16.xpose.msra.mxu0 0
      %516 = vmatprep.mubr.bf16.mxu0 0
      %517 = vmatmul.mubr.bf16.gmra.mrb[0].mxu0 %v479
      %v518 = vpop.f32.mrb[0].mxu0
      %v519 = vadd.f32 0.0, %v518
      %v520 = vpop.f32.mrb[0].mxu0
      %v521 = vpop.f32.mrb[0].mxu0
      %v522 = vadd.f32 0.0, %v521
      %v523 = vpop.f32.mrb[0].mxu0
      %524 = vdwg.mxu0
      %v525 = vmul.f32 %v519, 0.17677669
      %v526 = vmul.f32 %v522, 0.17677669
      %s527 = scalar_lea.vmem [#allocation2], 16
      %v528 = vld [vmem:[%s527] sm:$0xff]
      %v529 = vld [vmem:[%s527 + $0x8] sm:$0xff]
      %v530 = vsel %vm360, %v525, -inf
      %531 = vmax.xlane.f32.xlu0 %v530
      %v532 = vpop.xlane.xlu0 %531
      %v533 = vsel %vm360, %v526, -inf
      %534 = vmax.xlane.f32.xlu0 %v533
      %v535 = vpop.xlane.xlu0 %534
      %v536 = vmax.f32 %v528, %v532
      %v537 = vmax.f32 %v529, %v535
      %v538 = vsub.f32 %v528, %v536
      %v539 = vsub.f32 %v529, %v537
      %v540 = vmul.f32 %v538, 1.442695
      %v541 = vpow.pop %v540
      %v542 = vmul.f32 %v539, 1.442695
      %v543 = vpow.pop %v542
      %545 = vset.pattern.permute.xlu0 0
      %546 = vperm.xlu0 %545, %v536
      %v547 = vpop.permute.xlu0 %546
      %550 = vset.pattern.permute.xlu0 0
      %551 = vperm.xlu0 %550, %v537
      %v552 = vpop.permute.xlu0 %551
      %v554 = vsub.f32 %v525, %v547
      %v555 = vsub.f32 %v526, %v552
      %v556 = vmul.f32 %v554, 1.442695
      %v557 = vpow.pop %v556
      %v558 = vmul.f32 %v555, 1.442695
      %v559 = vpow.pop %v558
      %s560 = scalar_lea.vmem [#allocation3], 16
      %v561 = vld [vmem:[%s560] sm:$0xff]
      %v562 = vld [vmem:[%s560 + $0x8] sm:$0xff]
      %v563 = vmul.f32 %v541, %v561
      %v564 = vmul.f32 %v543, %v562
      %v565 = vsel %vm360, %v557, 0.0
      %566 = vadd.xlane.f32.xlu0 %v565
      %v567 = vpop.xlane.xlu0 %566
      %v568 = vsel %vm360, %v559, 0.0
      %569 = vadd.xlane.f32.xlu0 %v568
      %v570 = vpop.xlane.xlu0 %569
      %v571 = vadd.f32 %v563, %v567
      %v572 = vadd.f32 %v564, %v570
      %573 = vst.msk [vmem:[%s560] sm:$0xff] %vm403, %v571
      %574 = vst.msk [vmem:[%s560 + $0x8] sm:$0xff] %vm403, %v572
      %s575 = scalar_lea.vmem [#allocation4], 16
      %v576 = vld [vmem:[%s575] sm:$0xff]
      %v577 = vld [vmem:[%s575 + $0x8] sm:$0xff]
      %579 = vset.pattern.permute.xlu0 0
      %580 = vperm.xlu0 %579, %v541
      %v581 = vpop.permute.xlu0 %580
      %584 = vset.pattern.permute.xlu0 0
      %585 = vperm.xlu0 %584, %v543
      %v586 = vpop.permute.xlu0 %585
      %v588 = vmul.f32 %v581, %v576
      %v589 = vmul.f32 %v586, %v577
      %v590 = vpack.c.bf16 %v559, %v557
      %591 = vrot.lane.b32.xlu0 %v307, 88
      %v592 = vpop.permute.xlu0 %591
      %v595 = vsel %vm360, %v590, 0
      %597 = vmatprep.subr.bf16.mxu0 0
      %598 = vmatpush1.bf16.msra.mxu0 %v592
      %599 = vmatprep.subr.bf16.mxu0 0
      %600 = vmatpush1.bf16.msra.mxu0 0
      %601 = vmatprep.subr.bf16.mxu0 0
      %602 = vmatpush1.bf16.msra.mxu0 0
      %603 = vmatprep.subr.bf16.mxu0 0
      %604 = vmatpush1.bf16.msra.mxu0 0
      %605 = vmatprep.subr.bf16.mxu0 0
      %606 = vmatpush1.bf16.msra.mxu0 0
      %607 = vmatprep.subr.bf16.mxu0 0
      %608 = vmatpush1.bf16.msra.mxu0 0
      %609 = vmatprep.subr.bf16.mxu0 0
      %610 = vmatpush1.bf16.msra.mxu0 0
      %611 = vmatprep.subr.bf16.mxu0 0
      %612 = vmatpush1.bf16.msra.mxu0 0
      %613 = vmatprep.subr.bf16.mxu0 0
      %614 = vmatpush1.bf16.msra.mxu0 0
      %615 = vmatprep.subr.bf16.mxu0 0
      %616 = vmatpush1.bf16.msra.mxu0 0
      %617 = vmatprep.subr.bf16.mxu0 0
      %618 = vmatpush1.bf16.msra.mxu0 0
      %619 = vmatprep.subr.bf16.mxu0 0
      %620 = vmatpush1.bf16.msra.mxu0 0
      %621 = vmatprep.subr.bf16.mxu0 0
      %622 = vmatpush1.bf16.msra.mxu0 0
      %623 = vmatprep.subr.bf16.mxu0 0
      %624 = vmatpush1.bf16.msra.mxu0 0
      %625 = vmatprep.subr.bf16.mxu0 0
      %626 = vmatpush1.bf16.msra.mxu0 0
      %627 = vmatprep.subr.bf16.mxu0 0
      %628 = vmatpush1.bf16.msra.mxu0 0
      %629 = vmatprep.mubr.bf16.mxu0 0
      %630 = vmatmul.mubr.bf16.gmra.mrb[0].mxu0 %v595
      %v631 = vpop.f32.mrb[0].mxu0
      %v632 = vadd.f32 0.0, %v631
      %v633 = vpop.f32.mrb[0].mxu0
      %v634 = vpop.f32.mrb[0].mxu0
      %v635 = vadd.f32 0.0, %v634
      %v636 = vpop.f32.mrb[0].mxu0
      %637 = vdwg.mxu0
      %v638 = vadd.f32 %v588, %v632
      %v639 = vadd.f32 %v589, %v635
      %640 = vst.msk [vmem:[%s575] sm:$0xff] %vm308, %v638
      %641 = vst.msk [vmem:[%s575 + $0x8] sm:$0xff] %vm308, %v639
      %642 = vst.msk [vmem:[%s527] sm:$0xff] %vm403, %v536
      %643 = vst.msk [vmem:[%s527 + $0x8] sm:$0xff] %vm403, %v537
      %644 = vrot.lane.b32.xlu0 %v302, 112
      %v645 = vpop.permute.xlu0 %644
      %646 = vrot.lane.b32.xlu0 %v307, 112
      %v647 = vpop.permute.xlu0 %646
      %v649 = vsel %vm308, %v645, 0
      %v652 = vsel %vm308, %v647, 0
      %654 = vmatprep.subr.bf16.mxu0 0
      %655 = vmatpush1.bf16.xpose.msra.mxu0 %v652
      %656 = vmatprep.subr.bf16.mxu0 0
      %657 = vmatpush1.bf16.xpose.msra.mxu0 0
      %658 = vmatprep.subr.bf16.mxu0 0
      %659 = vmatpush1.bf16.xpose.msra.mxu0 0
      %660 = vmatprep.subr.bf16.mxu0 0
      %661 = vmatpush1.bf16.xpose.msra.mxu0 0
      %662 = vmatprep.subr.bf16.mxu0 0
      %663 = vmatpush1.bf16.xpose.msra.mxu0 0
      %664 = vmatprep.subr.bf16.mxu0 0
      %665 = vmatpush1.bf16.xpose.msra.mxu0 0
      %666 = vmatprep.subr.bf16.mxu0 0
      %667 = vmatpush1.bf16.xpose.msra.mxu0 0
      %668 = vmatprep.subr.bf16.mxu0 0
      %669 = vmatpush1.bf16.xpose.msra.mxu0 0
      %670 = vmatprep.subr.bf16.mxu0 0
      %671 = vmatpush1.bf16.xpose.msra.mxu0 0
      %672 = vmatprep.subr.bf16.mxu0 0
      %673 = vmatpush1.bf16.xpose.msra.mxu0 0
      %674 = vmatprep.subr.bf16.mxu0 0
      %675 = vmatpush1.bf16.xpose.msra.mxu0 0
      %676 = vmatprep.subr.bf16.mxu0 0
      %677 = vmatpush1.bf16.xpose.msra.mxu0 0
      %678 = vmatprep.subr.bf16.mxu0 0
      %679 = vmatpush1.bf16.xpose.msra.mxu0 0
      %680 = vmatprep.subr.bf16.mxu0 0
      %681 = vmatpush1.bf16.xpose.msra.mxu0 0
      %682 = vmatprep.subr.bf16.mxu0 0
      %683 = vmatpush1.bf16.xpose.msra.mxu0 0
      %684 = vmatprep.subr.bf16.mxu0 0
      %685 = vmatpush1.bf16.xpose.msra.mxu0 0
      %686 = vmatprep.mubr.bf16.mxu0 0
      %687 = vmatmul.mubr.bf16.gmra.mrb[0].mxu0 %v649
      %v688 = vpop.f32.mrb[0].mxu0
      %v689 = vadd.f32 0.0, %v688
      %v690 = vpop.f32.mrb[0].mxu0
      %v691 = vpop.f32.mrb[0].mxu0
      %v692 = vadd.f32 0.0, %v691
      %v693 = vpop.f32.mrb[0].mxu0
      %694 = vdwg.mxu0
      %v695 = vmul.f32 %v689, 0.17677669
      %v696 = vmul.f32 %v692, 0.17677669
      %s697 = scalar_lea.vmem [#allocation2], 32
      %v698 = vld [vmem:[%s697] sm:$0xff]
      %v699 = vld [vmem:[%s697 + $0x8] sm:$0xff]
      %v700 = vsel %vm360, %v695, -inf
      %701 = vmax.xlane.f32.xlu0 %v700
      %v702 = vpop.xlane.xlu0 %701
      %v703 = vsel %vm360, %v696, -inf
      %704 = vmax.xlane.f32.xlu0 %v703
      %v705 = vpop.xlane.xlu0 %704
      %v706 = vmax.f32 %v698, %v702
      %v707 = vmax.f32 %v699, %v705
      %v708 = vsub.f32 %v698, %v706
      %v709 = vsub.f32 %v699, %v707
      %v710 = vmul.f32 %v708, 1.442695
      %v711 = vpow.pop %v710
      %v712 = vmul.f32 %v709, 1.442695
      %v713 = vpow.pop %v712
      %715 = vset.pattern.permute.xlu0 0
      %716 = vperm.xlu0 %715, %v706
      %v717 = vpop.permute.xlu0 %716
      %720 = vset.pattern.permute.xlu0 0
      %721 = vperm.xlu0 %720, %v707
      %v722 = vpop.permute.xlu0 %721
      %v724 = vsub.f32 %v695, %v717
      %v725 = vsub.f32 %v696, %v722
      %v726 = vmul.f32 %v724, 1.442695
      %v727 = vpow.pop %v726
      %v728 = vmul.f32 %v725, 1.442695
      %v729 = vpow.pop %v728
      %s730 = scalar_lea.vmem [#allocation3], 32
      %v731 = vld [vmem:[%s730] sm:$0xff]
      %v732 = vld [vmem:[%s730 + $0x8] sm:$0xff]
      %v733 = vmul.f32 %v711, %v731
      %v734 = vmul.f32 %v713, %v732
      %v735 = vsel %vm360, %v727, 0.0
      %736 = vadd.xlane.f32.xlu0 %v735
      %v737 = vpop.xlane.xlu0 %736
      %v738 = vsel %vm360, %v729, 0.0
      %739 = vadd.xlane.f32.xlu0 %v738
      %v740 = vpop.xlane.xlu0 %739
      %v741 = vadd.f32 %v733, %v737
      %v742 = vadd.f32 %v734, %v740
      %743 = vst.msk [vmem:[%s730] sm:$0xff] %vm403, %v741
      %744 = vst.msk [vmem:[%s730 + $0x8] sm:$0xff] %vm403, %v742
      %s745 = scalar_lea.vmem [#allocation4], 32
      %v746 = vld [vmem:[%s745] sm:$0xff]
      %v747 = vld [vmem:[%s745 + $0x8] sm:$0xff]
      %749 = vset.pattern.permute.xlu0 0
      %750 = vperm.xlu0 %749, %v711
      %v751 = vpop.permute.xlu0 %750
      %754 = vset.pattern.permute.xlu0 0
      %755 = vperm.xlu0 %754, %v713
      %v756 = vpop.permute.xlu0 %755
      %v758 = vmul.f32 %v751, %v746
      %v759 = vmul.f32 %v756, %v747
      %v760 = vpack.c.bf16 %v729, %v727
      %761 = vrot.lane.b32.xlu0 %v307, 80
      %v762 = vpop.permute.xlu0 %761
      %v765 = vsel %vm360, %v760, 0
      %767 = vmatprep.subr.bf16.mxu0 0
      %768 = vmatpush1.bf16.msra.mxu0 %v762
      %769 = vmatprep.subr.bf16.mxu0 0
      %770 = vmatpush1.bf16.msra.mxu0 0
      %771 = vmatprep.subr.bf16.mxu0 0
      %772 = vmatpush1.bf16.msra.mxu0 0
      %773 = vmatprep.subr.bf16.mxu0 0
      %774 = vmatpush1.bf16.msra.mxu0 0
      %775 = vmatprep.subr.bf16.mxu0 0
      %776 = vmatpush1.bf16.msra.mxu0 0
      %777 = vmatprep.subr.bf16.mxu0 0
      %778 = vmatpush1.bf16.msra.mxu0 0
      %779 = vmatprep.subr.bf16.mxu0 0
      %780 = vmatpush1.bf16.msra.mxu0 0
      %781 = vmatprep.subr.bf16.mxu0 0
      %782 = vmatpush1.bf16.msra.mxu0 0
      %783 = vmatprep.subr.bf16.mxu0 0
      %784 = vmatpush1.bf16.msra.mxu0 0
      %785 = vmatprep.subr.bf16.mxu0 0
      %786 = vmatpush1.bf16.msra.mxu0 0
      %787 = vmatprep.subr.bf16.mxu0 0
      %788 = vmatpush1.bf16.msra.mxu0 0
      %789 = vmatprep.subr.bf16.mxu0 0
      %790 = vmatpush1.bf16.msra.mxu0 0
      %791 = vmatprep.subr.bf16.mxu0 0
      %792 = vmatpush1.bf16.msra.mxu0 0
      %793 = vmatprep.subr.bf16.mxu0 0
      %794 = vmatpush1.bf16.msra.mxu0 0
      %795 = vmatprep.subr.bf16.mxu0 0
      %796 = vmatpush1.bf16.msra.mxu0 0
      %797 = vmatprep.subr.bf16.mxu0 0
      %798 = vmatpush1.bf16.msra.mxu0 0
      %799 = vmatprep.mubr.bf16.mxu0 0
      %800 = vmatmul.mubr.bf16.gmra.mrb[0].mxu0 %v765
      %v801 = vpop.f32.mrb[0].mxu0
      %v802 = vadd.f32 0.0, %v801
      %v803 = vpop.f32.mrb[0].mxu0
      %v804 = vpop.f32.mrb[0].mxu0
      %v805 = vadd.f32 0.0, %v804
      %v806 = vpop.f32.mrb[0].mxu0
      %807 = vdwg.mxu0
      %v808 = vadd.f32 %v758, %v802
      %v809 = vadd.f32 %v759, %v805
      %810 = vst.msk [vmem:[%s745] sm:$0xff] %vm308, %v808
      %811 = vst.msk [vmem:[%s745 + $0x8] sm:$0xff] %vm308, %v809
      %812 = vst.msk [vmem:[%s697] sm:$0xff] %vm403, %v706
      %813 = vst.msk [vmem:[%s697 + $0x8] sm:$0xff] %vm403, %v707
      %814 = vrot.lane.b32.xlu0 %v302, 104
      %v815 = vpop.permute.xlu0 %814
      %816 = vrot.lane.b32.xlu0 %v307, 104
      %v817 = vpop.permute.xlu0 %816
      %v819 = vsel %vm308, %v815, 0
      %v822 = vsel %vm308, %v817, 0
      %824 = vmatprep.subr.bf16.mxu0 0
      %825 = vmatpush1.bf16.xpose.msra.mxu0 %v822
      %826 = vmatprep.subr.bf16.mxu0 0
      %827 = vmatpush1.bf16.xpose.msra.mxu0 0
      %828 = vmatprep.subr.bf16.mxu0 0
      %829 = vmatpush1.bf16.xpose.msra.mxu0 0
      %830 = vmatprep.subr.bf16.mxu0 0
      %831 = vmatpush1.bf16.xpose.msra.mxu0 0
      %832 = vmatprep.subr.bf16.mxu0 0
      %833 = vmatpush1.bf16.xpose.msra.mxu0 0
      %834 = vmatprep.subr.bf16.mxu0 0
      %835 = vmatpush1.bf16.xpose.msra.mxu0 0
      %836 = vmatprep.subr.bf16.mxu0 0
      %837 = vmatpush1.bf16.xpose.msra.mxu0 0
      %838 = vmatprep.subr.bf16.mxu0 0
      %839 = vmatpush1.bf16.xpose.msra.mxu0 0
      %840 = vmatprep.subr.bf16.mxu0 0
      %841 = vmatpush1.bf16.xpose.msra.mxu0 0
      %842 = vmatprep.subr.bf16.mxu0 0
      %843 = vmatpush1.bf16.xpose.msra.mxu0 0
      %844 = vmatprep.subr.bf16.mxu0 0
      %845 = vmatpush1.bf16.xpose.msra.mxu0 0
      %846 = vmatprep.subr.bf16.mxu0 0
      %847 = vmatpush1.bf16.xpose.msra.mxu0 0
      %848 = vmatprep.subr.bf16.mxu0 0
      %849 = vmatpush1.bf16.xpose.msra.mxu0 0
      %850 = vmatprep.subr.bf16.mxu0 0
      %851 = vmatpush1.bf16.xpose.msra.mxu0 0
      %852 = vmatprep.subr.bf16.mxu0 0
      %853 = vmatpush1.bf16.xpose.msra.mxu0 0
      %854 = vmatprep.subr.bf16.mxu0 0
      %855 = vmatpush1.bf16.xpose.msra.mxu0 0
      %856 = vmatprep.mubr.bf16.mxu0 0
      %857 = vmatmul.mubr.bf16.gmra.mrb[0].mxu0 %v819
      %v858 = vpop.f32.mrb[0].mxu0
      %v859 = vadd.f32 0.0, %v858
      %v860 = vpop.f32.mrb[0].mxu0
      %v861 = vpop.f32.mrb[0].mxu0
      %v862 = vadd.f32 0.0, %v861
      %v863 = vpop.f32.mrb[0].mxu0
      %864 = vdwg.mxu0
      %v865 = vmul.f32 %v859, 0.17677669
      %v866 = vmul.f32 %v862, 0.17677669
      %s867 = scalar_lea.vmem [#allocation2], 48
      %v868 = vld [vmem:[%s867] sm:$0xff]
      %v869 = vld [vmem:[%s867 + $0x8] sm:$0xff]
      %v870 = vsel %vm360, %v865, -inf
      %871 = vmax.xlane.f32.xlu0 %v870
      %v872 = vpop.xlane.xlu0 %871
      %v873 = vsel %vm360, %v866, -inf
      %874 = vmax.xlane.f32.xlu0 %v873
      %v875 = vpop.xlane.xlu0 %874
      %v876 = vmax.f32 %v868, %v872
      %v877 = vmax.f32 %v869, %v875
      %v878 = vsub.f32 %v868, %v876
      %v879 = vsub.f32 %v869, %v877
      %v880 = vmul.f32 %v878, 1.442695
      %v881 = vpow.pop %v880
      %v882 = vmul.f32 %v879, 1.442695
      %v883 = vpow.pop %v882
      %885 = vset.pattern.permute.xlu0 0
      %886 = vperm.xlu0 %885, %v876
      %v887 = vpop.permute.xlu0 %886
      %890 = vset.pattern.permute.xlu0 0
      %891 = vperm.xlu0 %890, %v877
      %v892 = vpop.permute.xlu0 %891
      %v894 = vsub.f32 %v865, %v887
      %v895 = vsub.f32 %v866, %v892
      %v896 = vmul.f32 %v894, 1.442695
      %v897 = vpow.pop %v896
      %v898 = vmul.f32 %v895, 1.442695
      %v899 = vpow.pop %v898
      %s900 = scalar_lea.vmem [#allocation3], 48
      %v901 = vld [vmem:[%s900] sm:$0xff]
      %v902 = vld [vmem:[%s900 + $0x8] sm:$0xff]
      %v903 = vmul.f32 %v881, %v901
      %v904 = vmul.f32 %v883, %v902
      %v905 = vsel %vm360, %v897, 0.0
      %906 = vadd.xlane.f32.xlu0 %v905
      %v907 = vpop.xlane.xlu0 %906
      %v908 = vsel %vm360, %v899, 0.0
      %909 = vadd.xlane.f32.xlu0 %v908
      %v910 = vpop.xlane.xlu0 %909
      %v911 = vadd.f32 %v903, %v907
      %v912 = vadd.f32 %v904, %v910
      %913 = vst.msk [vmem:[%s900] sm:$0xff] %vm403, %v911
      %914 = vst.msk [vmem:[%s900 + $0x8] sm:$0xff] %vm403, %v912
      %s915 = scalar_lea.vmem [#allocation4], 48
      %v916 = vld [vmem:[%s915] sm:$0xff]
      %v917 = vld [vmem:[%s915 + $0x8] sm:$0xff]
      %919 = vset.pattern.permute.xlu0 0
      %920 = vperm.xlu0 %919, %v881
      %v921 = vpop.permute.xlu0 %920
      %924 = vset.pattern.permute.xlu0 0
      %925 = vperm.xlu0 %924, %v883
      %v926 = vpop.permute.xlu0 %925
      %v928 = vmul.f32 %v921, %v916
      %v929 = vmul.f32 %v926, %v917
      %v930 = vpack.c.bf16 %v899, %v897
      %931 = vrot.lane.b32.xlu0 %v307, 72
      %v932 = vpop.permute.xlu0 %931
      %v935 = vsel %vm360, %v930, 0
      %937 = vmatprep.subr.bf16.mxu0 0
      %938 = vmatpush1.bf16.msra.mxu0 %v932
      %939 = vmatprep.subr.bf16.mxu0 0
      %940 = vmatpush1.bf16.msra.mxu0 0
      %941 = vmatprep.subr.bf16.mxu0 0
      %942 = vmatpush1.bf16.msra.mxu0 0
      %943 = vmatprep.subr.bf16.mxu0 0
      %944 = vmatpush1.bf16.msra.mxu0 0
      %945 = vmatprep.subr.bf16.mxu0 0
      %946 = vmatpush1.bf16.msra.mxu0 0
      %947 = vmatprep.subr.bf16.mxu0 0
      %948 = vmatpush1.bf16.msra.mxu0 0
      %949 = vmatprep.subr.bf16.mxu0 0
      %950 = vmatpush1.bf16.msra.mxu0 0
      %951 = vmatprep.subr.bf16.mxu0 0
      %952 = vmatpush1.bf16.msra.mxu0 0
      %953 = vmatprep.subr.bf16.mxu0 0
      %954 = vmatpush1.bf16.msra.mxu0 0
      %955 = vmatprep.subr.bf16.mxu0 0
      %956 = vmatpush1.bf16.msra.mxu0 0
      %957 = vmatprep.subr.bf16.mxu0 0
      %958 = vmatpush1.bf16.msra.mxu0 0
      %959 = vmatprep.subr.bf16.mxu0 0
      %960 = vmatpush1.bf16.msra.mxu0 0
      %961 = vmatprep.subr.bf16.mxu0 0
      %962 = vmatpush1.bf16.msra.mxu0 0
      %963 = vmatprep.subr.bf16.mxu0 0
      %964 = vmatpush1.bf16.msra.mxu0 0
      %965 = vmatprep.subr.bf16.mxu0 0
      %966 = vmatpush1.bf16.msra.mxu0 0
      %967 = vmatprep.subr.bf16.mxu0 0
      %968 = vmatpush1.bf16.msra.mxu0 0
      %969 = vmatprep.mubr.bf16.mxu0 0
      %970 = vmatmul.mubr.bf16.gmra.mrb[0].mxu0 %v935
      %v971 = vpop.f32.mrb[0].mxu0
      %v972 = vadd.f32 0.0, %v971
      %v973 = vpop.f32.mrb[0].mxu0
      %v974 = vpop.f32.mrb[0].mxu0
      %v975 = vadd.f32 0.0, %v974
      %v976 = vpop.f32.mrb[0].mxu0
      %977 = vdwg.mxu0
      %v978 = vadd.f32 %v928, %v972
      %v979 = vadd.f32 %v929, %v975
      %980 = vst.msk [vmem:[%s915] sm:$0xff] %vm308, %v978
      %981 = vst.msk [vmem:[%s915 + $0x8] sm:$0xff] %vm308, %v979
      %982 = vst.msk [vmem:[%s867] sm:$0xff] %vm403, %v876
      %983 = vst.msk [vmem:[%s867 + $0x8] sm:$0xff] %vm403, %v877
      %p984 = scmp.eq.s32.totalorder %s27, 1
      // Predicated region
      $region33: #{attention_forward.6} parent=27 // pred_check
        %p985 = pneg %p984
      $region34: #{attention_forward.6} parent=27 // pred_check_branch
        %987 = sbr.rel (%p985) target = $region36
      $region35: #{attention_forward.6} parent=27 // pred_region
        %v988 = vld [vmem:[#allocation4] sm:$0xff]
        %v989 = vld [vmem:[#allocation4 + $0x8] sm:$0xff]
        %v990 = vld [vmem:[#allocation3] sm:$0xff]
        %v991 = vld [vmem:[#allocation3 + $0x8] sm:$0xff]
        %v992 = vrcp.pop %v990
        %v993 = vrcp.pop %v991
        %995 = vset.pattern.permute.xlu0 0
        %996 = vperm.xlu0 %995, %v992
        %v997 = vpop.permute.xlu0 %996
        %1000 = vset.pattern.permute.xlu0 0
        %1001 = vperm.xlu0 %1000, %v993
        %v1002 = vpop.permute.xlu0 %1001
        %v1004 = vmul.f32 %v988, %v997
        %v1005 = vmul.f32 %v989, %v1002
        %v1006 = vld [vmem:[%s575] sm:$0xff]
        %v1007 = vld [vmem:[%s575 + $0x8] sm:$0xff]
        %v1008 = vld [vmem:[%s560] sm:$0xff]
        %v1009 = vld [vmem:[%s560 + $0x8] sm:$0xff]
        %v1010 = vrcp.pop %v1008
        %v1011 = vrcp.pop %v1009
        %1013 = vset.pattern.permute.xlu0 0
        %1014 = vperm.xlu0 %1013, %v1010
        %v1015 = vpop.permute.xlu0 %1014
        %1018 = vset.pattern.permute.xlu0 0
        %1019 = vperm.xlu0 %1018, %v1011
        %v1020 = vpop.permute.xlu0 %1019
        %v1022 = vmul.f32 %v1006, %v1015
        %v1023 = vmul.f32 %v1007, %v1020
        %v1024 = vld [vmem:[%s745] sm:$0xff]
        %v1025 = vld [vmem:[%s745 + $0x8] sm:$0xff]
        %v1026 = vld [vmem:[%s730] sm:$0xff]
        %v1027 = vld [vmem:[%s730 + $0x8] sm:$0xff]
        %v1028 = vrcp.pop %v1026
        %v1029 = vrcp.pop %v1027
        %1031 = vset.pattern.permute.xlu0 0
        %1032 = vperm.xlu0 %1031, %v1028
        %v1033 = vpop.permute.xlu0 %1032
        %1036 = vset.pattern.permute.xlu0 0
        %1037 = vperm.xlu0 %1036, %v1029
        %v1038 = vpop.permute.xlu0 %1037
        %v1040 = vmul.f32 %v1024, %v1033
        %v1041 = vmul.f32 %v1025, %v1038
        %v1042 = vld [vmem:[%s915] sm:$0xff]
        %v1043 = vld [vmem:[%s915 + $0x8] sm:$0xff]
        %v1044 = vld [vmem:[%s900] sm:$0xff]
        %v1045 = vld [vmem:[%s900 + $0x8] sm:$0xff]
        %v1046 = vrcp.pop %v1044
        %v1047 = vrcp.pop %v1045
        %1049 = vset.pattern.permute.xlu0 0
        %1050 = vperm.xlu0 %1049, %v1046
        %v1051 = vpop.permute.xlu0 %1050
        %1054 = vset.pattern.permute.xlu0 0
        %1055 = vperm.xlu0 %1054, %v1047
        %v1056 = vpop.permute.xlu0 %1055
        %v1058 = vmul.f32 %v1042, %v1051
        %v1059 = vmul.f32 %v1043, %v1056
        %1062 = vrot.lane.b32.xlu0 %v1022, 8
        %v1063 = vpop.permute.xlu0 %1062
        %1064 = vrot.lane.b32.xlu0 %v1023, 8
        %v1065 = vpop.permute.xlu0 %1064
        %1070 = vrot.lane.b32.xlu0 %v1040, 16
        %v1071 = vpop.permute.xlu0 %1070
        %1072 = vrot.lane.b32.xlu0 %v1041, 16
        %v1073 = vpop.permute.xlu0 %1072
        %1078 = vrot.lane.b32.xlu0 %v1058, 24
        %v1079 = vpop.permute.xlu0 %1078
        %1080 = vrot.lane.b32.xlu0 %v1059, 24
        %v1081 = vpop.permute.xlu0 %1080
        %v1084 = vsel %vm308, %v1004, %v1063
        %v1085 = vsel %vm308, %v1005, %v1065
        %v1086 = vsel %vm360, %v1084, %v1071
        %v1087 = vsel %vm360, %v1085, %v1073
        %vm1088 = vcmask 195584
        %v1089 = vsel %vm1088, %v1086, %v1079
        %v1090 = vsel %vm1088, %v1087, %v1081
        %vm1091 = vcmask 261120
        %1092 = vst.msk [vmem:[%s262] sm:$0xff] %vm1091, %v1089
        %1093 = vst.msk [vmem:[%s262 + $0x8] sm:$0xff] %vm1091, %v1090
      $region36: #{attention_forward.6} parent=27 // pred_fallthru
        _
      %p1094 = scmp.lt.s32.totalorder %s25, 1
      %s1095 = scalar_select %p1094, %s25, 1
      %p1096 = scmp.lt.s32.totalorder %s26, 3
      %s1097 = scalar_select %p1096, %s26, 3
      %s1098 = smul.addr %s1097, 2
      %s1099 = smul.addr %s1095, 8
      %s1100 = sadd.s32 %s1098, %s1099
      %s1101 = smul.addr %s1100, 8
      %s1102 = scalar_lea.vmem %s3, %s1101
      // Predicated region
      $region37: #{attention_forward.6} parent=27 // pred_check
        %p1103 = pneg %p125
      $region38: #{attention_forward.6} parent=27 // pred_check_branch
        %1105 = sbr.rel (%p1103) target = $region40
      $region39: #{attention_forward.6} parent=27 // pred_region
        _
      $region40: #{attention_forward.6} parent=27 // pred_fallthru
        _
    $region28: #{attention_forward.6} parent=5 // pred_fallthru
      _
    %p1106 = scmp.le.s32.totalorder 2, %s15
    // Predicated region
    $region41: #{attention_forward.6} parent=5 // pred_check
      %p1107 = pneg %p1106
    $region42: #{attention_forward.6} parent=5 // pred_check_branch
      %1109 = sbr.rel (%p1107) target = $region44
    $region43: #{attention_forward.6} parent=5 // pred_region
      %s1110 = ssub.s32 %s15, 2
      // Predicated region
      $region45: #{attention_forward.6} parent=43 // pred_check
        %p1111 = pneg %p131
      $region46: #{attention_forward.6} parent=43 // pred_check_branch
        %1113 = sbr.rel (%p1111) target = $region48
      $region47: #{attention_forward.6} parent=43 // pred_region
        %p1114 = scmp.lt.s32.totalorder %s28, 1
        %s1115 = scalar_select %p1114, %s28, 1
        %p1116 = scmp.lt.s32.totalorder %s29, 3
        %s1117 = scalar_select %p1116, %s29, 3
        %s1118 = smul.addr %s1117, 2
        %s1119 = smul.addr %s1115, 8
        %s1120 = sadd.s32 %s1118, %s1119
        %s1121 = smul.addr %s1120, 8
        %s1122 = scalar_lea.vmem %s3, %s1121
      $region48: #{attention_forward.6} parent=43 // pred_fallthru
        _
    $region44: #{attention_forward.6} parent=5 // pred_fallthru
      _
  $region6: #{attention_forward.6} parent=0 // loop_footer
    %s19 = sadd.s32 1, %s15
  $region7: #{attention_forward.6} parent=0 // loop_footer_branch
    %14 = sbr.rel target = $region3
  $region8: #{attention_forward.6} parent=0 // loop_exit
    _

</llo_original>
